<compile_context>
chip_gen: v7x
topology: tpu7x:2x2x1
jax: 0.10.0
libtpu: 0.0.40
codegen_flags: <defaults>
</compile_context>

<pallas_src>
import functools

import jax
import jax.numpy as jnp
from jax.experimental import pallas as pl
from jax.experimental.pallas import tpu as pltpu

# ------------------------------- config ------------------------------------
N_FFT = 16
HOP = 8
N_FREQ = N_FFT // 2 + 1          # = input_size = 9
HIDDEN = 32
NUM_LAYERS = 2
BATCH = 2
WAVE_LEN = 72                    # -> T = (72 - 16)//8 + 1 = 8 frames
T_FRAMES = (WAVE_LEN - N_FFT) // HOP + 1
EPS = 1e-8


def _round_up(x, m):
    return ((x + m - 1) // m) * m


# ---- packed parameter slab layouts (row offsets, sublane-aligned) ----------
# Slab A: every matrix whose lane width is 4*HIDDEN = 128.
_A_WIH0 = 0                                         # (2F, 4H) stacked [far; mic]
_A_WHH0 = _round_up(_A_WIH0 + 2 * N_FREQ, 8)        # (H, 4H)
_A_WIH1 = _A_WHH0 + HIDDEN                          # (H, 4H)
_A_WHH1 = _A_WIH1 + HIDDEN                          # (H, 4H)
_A_B0 = _A_WHH1 + HIDDEN                            # (1, 4H)
_A_B1 = _round_up(_A_B0 + 1, 8)                     # (1, 4H)
_A_ROWS = _round_up(_A_B1 + 1, 8)

# Slab B: everything else, zero-padded to 128 lanes.
_B_DFTW = 0                                         # (N, 2F)  fwd rDFT, analysis win folded
_B_INVD = _round_up(_B_DFTW + N_FFT, 8)             # (2F, N)  inv rDFT, synthesis win folded
_B_WHEAD = _round_up(_B_INVD + 2 * N_FREQ, 8)       # (H, 2F)  fused [mask | mu] head
_B_BHEAD = _B_WHEAD + HIDDEN                        # (1, 2F)
_B_WSUM = _round_up(_B_BHEAD + 1, 8)                # (T+1, HOP) OLA 1/sum(win^2)
_B_ROWS = _round_up(_B_WSUM + T_FRAMES + 1, 8)


# ------------------------- fused Pallas kernel ------------------------------
def _naec_fdaf_kernel(frames_ref, slab_a_ref, slab_b_ref, out_ref, *, n_frames):
    # frames_ref : (2T, N)        [far frames ; mic frames] of ONE batch element
    # slab_a_ref : (_A_ROWS, 128) packed LSTM weights/biases
    # slab_b_ref : (_B_ROWS, 128) packed DFT matrices / head / OLA norm
    # out_ref    : (T+1, HOP)     OLA'd AEC output blocks of this batch element
    T, F, H, N = n_frames, N_FREQ, HIDDEN, N_FFT

    # ---- unpack parameter slabs with static slices --------------------------
    wih0s = slab_a_ref[_A_WIH0:_A_WIH0 + 2 * F, :]        # (2F, 4H)
    whh0 = slab_a_ref[_A_WHH0:_A_WHH0 + H, :]             # (H, 4H)
    wih1 = slab_a_ref[_A_WIH1:_A_WIH1 + H, :]             # (H, 4H)
    whh1 = slab_a_ref[_A_WHH1:_A_WHH1 + H, :]             # (H, 4H)
    b0 = slab_a_ref[_A_B0:_A_B0 + 1, :]                   # (1, 4H)
    b1 = slab_a_ref[_A_B1:_A_B1 + 1, :]                   # (1, 4H)

    dftw = slab_b_ref[_B_DFTW:_B_DFTW + N, 0:2 * F]       # (N, 2F)
    invd = slab_b_ref[_B_INVD:_B_INVD + 2 * F, 0:N]       # (2F, N)
    whead = slab_b_ref[_B_WHEAD:_B_WHEAD + H, 0:2 * F]    # (H, 2F)
    bhead = slab_b_ref[_B_BHEAD:_B_BHEAD + 1, 0:2 * F]    # (1, 2F)
    wsinv = slab_b_ref[_B_WSUM:_B_WSUM + T + 1, 0:HOP]    # (T+1, HOP)

    # ---- STFT of far-end + mic: one (2T,N) x (N,2F) MXU matmul -------------
    spec = jnp.dot(frames_ref[...], dftw, preferred_element_type=jnp.float32)  # (2T, 2F)
    re_all, im_all = spec[:, :F], spec[:, F:]
    mag_all = jnp.sqrt(re_all * re_all + im_all * im_all)                      # (2T, F)
    spec_far = spec[:T, :]                                                     # (T, 2F)
    d_re, d_im = re_all[T:], im_all[T:]          # mic spectrum = FDAF "desired"

    # ---- 2-layer LSTM: fused input projection, unrolled recurrence,
    #      hidden states kept in vregs ---------------------------------------
    def lstm_layer(xproj, whh):
        h = jnp.zeros((1, H), jnp.float32)
        c = jnp.zeros((1, H), jnp.float32)
        hs = []
        for t in range(T):                 # T = 8, fully unrolled; same whh RHS
            gates = xproj[t:t + 1, :] + jnp.dot(
                h, whh, preferred_element_type=jnp.float32)        # (1, 4H)
            sig = jax.nn.sigmoid(gates)    # one full-width (128-lane) EUP pass
            th = jnp.tanh(gates)           # one full-width EUP pass
            i = sig[:, 0 * H:1 * H]
            f = sig[:, 1 * H:2 * H]
            g = th[:, 2 * H:3 * H]
            o = sig[:, 3 * H:4 * H]
            c = f * c + i * g
            h = o * jnp.tanh(c)
            hs.append(h)
        return jnp.concatenate(hs, axis=0)                          # (T, H)

    xcat = jnp.concatenate([mag_all[:T], mag_all[T:]], axis=1)      # (T, 2F)
    xproj0 = jnp.dot(xcat, wih0s, preferred_element_type=jnp.float32) + b0
    h0 = lstm_layer(xproj0, whh0)
    xproj1 = jnp.dot(h0, wih1, preferred_element_type=jnp.float32) + b1
    h1 = lstm_layer(xproj1, whh1)

    # ---- fused mask / mu heads: one Linear + Sigmoid ------------------------
    heads = jax.nn.sigmoid(
        jnp.dot(h1, whead, preferred_element_type=jnp.float32) + bhead)  # (T, 2F)
    mask, mu = heads[:, :F], heads[:, F:]

    # ---- spec_estimate = spec_farend * mask ; iSTFT (one fused dot) ---------
    masked = spec_far * jnp.concatenate([mask, mask], axis=1)            # (T, 2F)
    est_frames = jnp.dot(masked, invd, preferred_element_type=jnp.float32)  # (T, N)

    zero_hop = jnp.zeros((1, HOP), jnp.float32)

    def overlap_add(frames_w):
        # frames_w: (T, N) synthesis-windowed frames, hop = N/2.
        head = jnp.concatenate([frames_w[:, :HOP], zero_hop], axis=0)    # (T+1, HOP)
        tail = jnp.concatenate([zero_hop, frames_w[:, HOP:]], axis=0)    # (T+1, HOP)
        return (head + tail) * wsinv

    wave_est = overlap_add(est_frames)                                   # (T+1, HOP)

    # ---- re-frame wave_estimate (frame t = blocks t, t+1) + STFT -----------
    reframed = jnp.concatenate([wave_est[:T, :], wave_est[1:, :]], axis=1)  # (T, N)
    spec_est = jnp.dot(reframed, dftw, preferred_element_type=jnp.float32)  # (T, 2F)
    x_re, x_im = spec_est[:, :F], spec_est[:, F:]

    # ---- FDAF: per-hop frequency-domain NLMS (unrolled, state in vregs) -----
    w_re = jnp.zeros((1, F), jnp.float32)
    w_im = jnp.zeros((1, F), jnp.float32)
    e_res, e_ims = [], []
    for t in range(T):
        xr, xi = x_re[t:t + 1], x_im[t:t + 1]
        dr, di = d_re[t:t + 1], d_im[t:t + 1]
        yr = w_re * xr - w_im * xi
        yi = w_re * xi + w_im * xr
        er, ei = dr - yr, di - yi
        e_res.append(er)
        e_ims.append(ei)
        step = mu[t:t + 1] / (xr * xr + xi * xi + EPS)   # exact divide (fidelity)
        w_re = w_re + step * (xr * er + xi * ei)
        w_im = w_im + step * (xr * ei - xi * er)

    err_cat = jnp.concatenate(
        [jnp.concatenate(e_res, axis=0), jnp.concatenate(e_ims, axis=0)],
        axis=1)                                                          # (T, 2F)
    err_frames = jnp.dot(err_cat, invd, preferred_element_type=jnp.float32)  # (T, N)

    # ---- iSTFT of the AEC error + overlap-add: single full-block store ------
    out_ref[...] = overlap_add(err_frames)


# ------------------------------ JAX glue ------------------------------------
def _make_dft_consts(window):
    n_fft = window.shape[0]
    F = n_fft // 2 + 1
    n = jnp.arange(n_fft, dtype=jnp.float32)[:, None]                # (N, 1)
    f = jnp.arange(F, dtype=jnp.float32)[None, :]                    # (1, F)
    ang = 2.0 * jnp.pi * n * f / n_fft                               # (N, F)
    cos_m = jnp.cos(ang)
    sin_m = -jnp.sin(ang)
    w = jnp.ones((F,), jnp.float32).at[1:-1].set(2.0)
    icos = (w[:, None] * jnp.cos(ang.T)) / n_fft                     # (F, N)
    isin = (-w[:, None] * jnp.sin(ang.T)) / n_fft                    # (F, N)
    dft_win = window[:, None] * jnp.concatenate([cos_m, sin_m], axis=1)      # (N, 2F)
    inv_dft_win = jnp.concatenate([icos, isin], axis=0) * window[None, :]    # (2F, N)
    return dft_win, inv_dft_win


def init_params(key):
    F, H, T = N_FREQ, HIDDEN, T_FRAMES
    keys = list(jax.random.split(key, 4 * NUM_LAYERS + 4))
    ki = iter(keys)
    k = 1.0 / jnp.sqrt(jnp.float32(H))
    lstm = []
    for layer in range(NUM_LAYERS):
        din = 2 * F if layer == 0 else H
        wih = jax.random.uniform(next(ki), (4 * H, din), jnp.float32, -k, k)
        whh = jax.random.uniform(next(ki), (4 * H, H), jnp.float32, -k, k)
        b_ih = jax.random.uniform(next(ki), (4 * H,), jnp.float32, -k, k)
        b_hh = jax.random.uniform(next(ki), (4 * H,), jnp.float32, -k, k)
        lstm.append((wih.T, whh.T, (b_ih + b_hh)[None, :]))
    w_mask = jax.random.uniform(next(ki), (F, H), jnp.float32, -k, k)
    b_mask = jax.random.uniform(next(ki), (F,), jnp.float32, -k, k)
    w_mu = jax.random.uniform(next(ki), (F, H), jnp.float32, -k, k)
    b_mu = jax.random.uniform(next(ki), (F,), jnp.float32, -k, k)

    # periodic Hann analysis/synthesis window, folded into the DFT matrices
    n = jnp.arange(N_FFT, dtype=jnp.float32)
    window = 0.5 - 0.5 * jnp.cos(2.0 * jnp.pi * n / N_FFT)
    dft_win, inv_dft_win = _make_dft_consts(window)

    # overlap-add normalization 1 / sum(win^2) per half-frame block
    w2 = window * window
    wsum = (jnp.zeros((T + 1, HOP), jnp.float32)
            .at[:T].add(w2[:HOP][None, :])
            .at[1:].add(w2[HOP:][None, :]))
    wsum_inv = 1.0 / jnp.maximum(wsum, 1e-8)

    wih0_t, whh0_t, b0 = lstm[0]
    wih1_t, whh1_t, b1 = lstm[1]
    whead = jnp.concatenate([w_mask.T, w_mu.T], axis=1)              # (H, 2F)
    bhead = jnp.concatenate([b_mask, b_mu])[None, :]                 # (1, 2F)

    # ---- pack everything into two lane-aligned slabs (2 input DMAs) --------
    slab_a = jnp.zeros((_A_ROWS, 4 * H), jnp.float32)
    slab_a = slab_a.at[_A_WIH0:_A_WIH0 + 2 * F].set(wih0_t)
    slab_a = slab_a.at[_A_WHH0:_A_WHH0 + H].set(whh0_t)
    slab_a = slab_a.at[_A_WIH1:_A_WIH1 + H].set(wih1_t)
    slab_a = slab_a.at[_A_WHH1:_A_WHH1 + H].set(whh1_t)
    slab_a = slab_a.at[_A_B0:_A_B0 + 1].set(b0)
    slab_a = slab_a.at[_A_B1:_A_B1 + 1].set(b1)

    slab_b = jnp.zeros((_B_ROWS, 128), jnp.float32)
    slab_b = slab_b.at[_B_DFTW:_B_DFTW + N_FFT, :2 * F].set(dft_win)
    slab_b = slab_b.at[_B_INVD:_B_INVD + 2 * F, :N_FFT].set(inv_dft_win)
    slab_b = slab_b.at[_B_WHEAD:_B_WHEAD + H, :2 * F].set(whead)
    slab_b = slab_b.at[_B_BHEAD:_B_BHEAD + 1, :2 * F].set(bhead)
    slab_b = slab_b.at[_B_WSUM:_B_WSUM + T + 1, :HOP].set(wsum_inv)

    frame_idx = (jnp.arange(T)[:, None] * HOP
                 + jnp.arange(N_FFT)[None, :]).astype(jnp.int32)     # (T, N)
    return {"slab_a": slab_a, "slab_b": slab_b, "frame_idx": frame_idx}


def naec_with_fdaf_forward(params, farend_x, input_y):
    B, L = farend_x.shape
    T = (L - N_FFT) // HOP + 1
    assert T == T_FRAMES, "params were packed for WAVE_LEN; re-run init_params"

    # frame both signals; per batch element: [far frames ; mic frames]
    idx = params["frame_idx"]
    frames_both = jnp.concatenate([farend_x[:, idx], input_y[:, idx]], axis=1)  # (B, 2T, N)

    kernel = functools.partial(_naec_fdaf_kernel, n_frames=T)

    out_blocks = pl.pallas_call(
        kernel,
        grid=(B,),
        out_shape=jax.ShapeDtypeStruct((B, T + 1, HOP), jnp.float32),
        in_specs=[
            pl.BlockSpec((None, 2 * T, N_FFT), lambda b: (b, 0, 0)),   # frames
            pl.BlockSpec((_A_ROWS, 4 * HIDDEN), lambda b: (0, 0)),     # slab A
            pl.BlockSpec((_B_ROWS, 128), lambda b: (0, 0)),            # slab B
        ],
        out_specs=pl.BlockSpec((None, T + 1, HOP), lambda b: (b, 0, 0)),
        compiler_params=pltpu.CompilerParams(
            dimension_semantics=("parallel",)),   # both TCs on v7x
    )(frames_both, params["slab_a"], params["slab_b"])

    # (B, T+1, HOP) blocks -> (B, (T+1)*HOP) waveform
    wave = out_blocks.reshape(B, (T + 1) * HOP)
    full_len = (T + 1) * HOP
    if full_len >= L:
        return wave[:, :L]
    # TODO(synk): trailing samples not covered by full hops are zero-padded.
    return jnp.pad(wave, ((0, 0), (0, L - full_len)))


if __name__ == "__main__":
    key = jax.random.PRNGKey(0)
    kp, kx, ky = jax.random.split(key, 3)
    params = init_params(kp)
    farend_x = jax.random.normal(kx, (BATCH, WAVE_LEN), jnp.float32)
    input_y = jax.random.normal(ky, (BATCH, WAVE_LEN), jnp.float32)

    fwd = jax.jit(functools.partial(naec_with_fdaf_forward, params))
    out = fwd(farend_x, input_y)
    jax.block_until_ready(out)

    assert out.shape == (BATCH, WAVE_LEN), out.shape
    assert bool(jnp.all(jnp.isfinite(out)))
    print("KERNEL_OK")
</pallas_src>

<mosaic_0001>
module attributes {stable_mosaic.version = 11 : i64} {
  func.func @_naec_fdaf_kernel(%arg0: i32, %arg1: memref<1x16x16xf32, #tpu.memory_space<vmem>>, %arg2: memref<136x128xf32, #tpu.memory_space<vmem>>, %arg3: memref<96x128xf32, #tpu.memory_space<vmem>>, %arg4: memref<1x9x8xf32, #tpu.memory_space<vmem>>) attributes {dimension_semantics = [#tpu.dimension_semantics<parallel>], iteration_bounds = array<i64: 2>, scalar_prefetch = 0 : i64, scratch_operands = 0 : i64, tpu.core_type = #tpu.core_type<tc>, window_params = [{transform_indices = @transform_0, window_bounds = array<i64: 1, 16, 16>}, {pipeline_mode = #tpu.pipeline_mode<synchronous>, transform_indices = @transform_1, window_bounds = array<i64: 136, 128>}, {pipeline_mode = #tpu.pipeline_mode<synchronous>, transform_indices = @transform_2, window_bounds = array<i64: 96, 128>}, {transform_indices = @transform_3, window_bounds = array<i64: 1, 9, 8>}]} {
    %c0 = arith.constant 0 : index
    %c0_0 = arith.constant 0 : index
    %0 = vector.load %arg2[%c0, %c0_0] : memref<136x128xf32, #tpu.memory_space<vmem>>, vector<18x128xf32>
    %c24 = arith.constant 24 : index
    %c0_1 = arith.constant 0 : index
    %1 = vector.load %arg2[%c24, %c0_1] : memref<136x128xf32, #tpu.memory_space<vmem>>, vector<32x128xf32>
    %c56 = arith.constant 56 : index
    %c0_2 = arith.constant 0 : index
    %2 = vector.load %arg2[%c56, %c0_2] : memref<136x128xf32, #tpu.memory_space<vmem>>, vector<32x128xf32>
    %c88 = arith.constant 88 : index
    %c0_3 = arith.constant 0 : index
    %3 = vector.load %arg2[%c88, %c0_3] : memref<136x128xf32, #tpu.memory_space<vmem>>, vector<32x128xf32>
    %c120 = arith.constant 120 : index
    %c0_4 = arith.constant 0 : index
    %4 = vector.load %arg2[%c120, %c0_4] : memref<136x128xf32, #tpu.memory_space<vmem>>, vector<1x128xf32>
    %c128 = arith.constant 128 : index
    %c0_5 = arith.constant 0 : index
    %5 = vector.load %arg2[%c128, %c0_5] : memref<136x128xf32, #tpu.memory_space<vmem>>, vector<1x128xf32>
    %c0_6 = arith.constant 0 : index
    %c0_7 = arith.constant 0 : index
    %6 = vector.load %arg3[%c0_6, %c0_7] : memref<96x128xf32, #tpu.memory_space<vmem>>, vector<16x18xf32>
    %c16 = arith.constant 16 : index
    %c0_8 = arith.constant 0 : index
    %7 = vector.load %arg3[%c16, %c0_8] : memref<96x128xf32, #tpu.memory_space<vmem>>, vector<18x16xf32>
    %c40 = arith.constant 40 : index
    %c0_9 = arith.constant 0 : index
    %8 = vector.load %arg3[%c40, %c0_9] : memref<96x128xf32, #tpu.memory_space<vmem>>, vector<32x18xf32>
    %c72 = arith.constant 72 : index
    %c0_10 = arith.constant 0 : index
    %9 = vector.load %arg3[%c72, %c0_10] : memref<96x128xf32, #tpu.memory_space<vmem>>, vector<1x18xf32>
    %c80 = arith.constant 80 : index
    %c0_11 = arith.constant 0 : index
    %10 = vector.load %arg3[%c80, %c0_11] : memref<96x128xf32, #tpu.memory_space<vmem>>, vector<9x8xf32>
    %c0_12 = arith.constant 0 : index
    %c0_13 = arith.constant 0 : index
    %c0_14 = arith.constant 0 : index
    %11 = vector.load %arg1[%c0_12, %c0_13, %c0_14] : memref<1x16x16xf32, #tpu.memory_space<vmem>>, vector<1x16x16xf32>
    %12 = vector.shape_cast %11 : vector<1x16x16xf32> to vector<16x16xf32>
    %cst = arith.constant dense<0.000000e+00> : vector<16x18xf32>
    %13 = tpu.matmul %12, %6, %cst {dimension_numbers = #tpu.dot_dimension_numbers<[1], [0], [0], [1], [0, 0, 1, 1], [], []>} : vector<16x16xf32>, vector<16x18xf32>, vector<16x18xf32> -> vector<16x18xf32>
    %14 = vector.extract_strided_slice %13 {offsets = [0, 0], sizes = [16, 9], strides = [1, 1]} : vector<16x18xf32> to vector<16x9xf32>
    %15 = vector.extract_strided_slice %13 {offsets = [0, 9], sizes = [16, 9], strides = [1, 1]} : vector<16x18xf32> to vector<16x9xf32>
    %16 = arith.mulf %14, %14 : vector<16x9xf32>
    %17 = arith.mulf %15, %15 : vector<16x9xf32>
    %18 = arith.addf %16, %17 : vector<16x9xf32>
    %19 = math.sqrt %18 : vector<16x9xf32>
    %20 = vector.extract_strided_slice %13 {offsets = [0, 0], sizes = [8, 18], strides = [1, 1]} : vector<16x18xf32> to vector<8x18xf32>
    %21 = vector.extract_strided_slice %14 {offsets = [8, 0], sizes = [8, 9], strides = [1, 1]} : vector<16x9xf32> to vector<8x9xf32>
    %22 = vector.extract_strided_slice %15 {offsets = [8, 0], sizes = [8, 9], strides = [1, 1]} : vector<16x9xf32> to vector<8x9xf32>
    %23 = vector.extract_strided_slice %19 {offsets = [0, 0], sizes = [8, 9], strides = [1, 1]} : vector<16x9xf32> to vector<8x9xf32>
    %24 = vector.extract_strided_slice %19 {offsets = [8, 0], sizes = [8, 9], strides = [1, 1]} : vector<16x9xf32> to vector<8x9xf32>
    %25 = tpu.concatenate %23, %24 in 1 : vector<8x9xf32>, vector<8x9xf32> -> vector<8x18xf32>
    %cst_15 = arith.constant dense<0.000000e+00> : vector<8x128xf32>
    %26 = tpu.matmul %25, %0, %cst_15 {dimension_numbers = #tpu.dot_dimension_numbers<[1], [0], [0], [1], [0, 0, 1, 1], [], []>} : vector<8x18xf32>, vector<18x128xf32>, vector<8x128xf32> -> vector<8x128xf32>
    %27 = vector.broadcast %4 : vector<1x128xf32> to vector<8x128xf32>
    %28 = arith.addf %26, %27 : vector<8x128xf32>
    %cst_16 = arith.constant 0.000000e+00 : f32
    %29 = vector.broadcast %cst_16 : f32 to vector<1x32xf32>
    %cst_17 = arith.constant 0.000000e+00 : f32
    %30 = vector.broadcast %cst_17 : f32 to vector<1x32xf32>
    %31 = vector.extract_strided_slice %28 {offsets = [0, 0], sizes = [1, 128], strides = [1, 1]} : vector<8x128xf32> to vector<1x128xf32>
    %cst_18 = arith.constant dense<0.000000e+00> : vector<1x128xf32>
    %32 = tpu.matmul %29, %1, %cst_18 {dimension_numbers = #tpu.dot_dimension_numbers<[1], [0], [0], [1], [0, 0, 1, 1], [], []>} : vector<1x32xf32>, vector<32x128xf32>, vector<1x128xf32> -> vector<1x128xf32>
    %33 = arith.addf %31, %32 : vector<1x128xf32>
    %34 = arith.negf %33 : vector<1x128xf32>
    %35 = math.exp %34 : vector<1x128xf32>
    %cst_19 = arith.constant 1.000000e+00 : f32
    %36 = vector.broadcast %cst_19 : f32 to vector<1x128xf32>
    %37 = arith.addf %36, %35 : vector<1x128xf32>
    %38 = arith.divf %36, %37 : vector<1x128xf32>
    %39 = math.tanh %33 : vector<1x128xf32>
    %40 = vector.extract_strided_slice %38 {offsets = [0, 0], sizes = [1, 32], strides = [1, 1]} : vector<1x128xf32> to vector<1x32xf32>
    %41 = vector.extract_strided_slice %38 {offsets = [0, 32], sizes = [1, 32], strides = [1, 1]} : vector<1x128xf32> to vector<1x32xf32>
    %42 = vector.extract_strided_slice %39 {offsets = [0, 64], sizes = [1, 32], strides = [1, 1]} : vector<1x128xf32> to vector<1x32xf32>
    %43 = vector.extract_strided_slice %38 {offsets = [0, 96], sizes = [1, 32], strides = [1, 1]} : vector<1x128xf32> to vector<1x32xf32>
    %44 = arith.mulf %41, %30 : vector<1x32xf32>
    %45 = arith.mulf %40, %42 : vector<1x32xf32>
    %46 = arith.addf %44, %45 : vector<1x32xf32>
    %47 = math.tanh %46 : vector<1x32xf32>
    %48 = arith.mulf %43, %47 : vector<1x32xf32>
    %49 = vector.extract_strided_slice %28 {offsets = [1, 0], sizes = [1, 128], strides = [1, 1]} : vector<8x128xf32> to vector<1x128xf32>
    %cst_20 = arith.constant dense<0.000000e+00> : vector<1x128xf32>
    %50 = tpu.matmul %48, %1, %cst_20 {dimension_numbers = #tpu.dot_dimension_numbers<[1], [0], [0], [1], [0, 0, 1, 1], [], []>} : vector<1x32xf32>, vector<32x128xf32>, vector<1x128xf32> -> vector<1x128xf32>
    %51 = arith.addf %49, %50 : vector<1x128xf32>
    %52 = arith.negf %51 : vector<1x128xf32>
    %53 = math.exp %52 : vector<1x128xf32>
    %cst_21 = arith.constant 1.000000e+00 : f32
    %54 = vector.broadcast %cst_21 : f32 to vector<1x128xf32>
    %55 = arith.addf %54, %53 : vector<1x128xf32>
    %56 = arith.divf %54, %55 : vector<1x128xf32>
    %57 = math.tanh %51 : vector<1x128xf32>
    %58 = vector.extract_strided_slice %56 {offsets = [0, 0], sizes = [1, 32], strides = [1, 1]} : vector<1x128xf32> to vector<1x32xf32>
    %59 = vector.extract_strided_slice %56 {offsets = [0, 32], sizes = [1, 32], strides = [1, 1]} : vector<1x128xf32> to vector<1x32xf32>
    %60 = vector.extract_strided_slice %57 {offsets = [0, 64], sizes = [1, 32], strides = [1, 1]} : vector<1x128xf32> to vector<1x32xf32>
    %61 = vector.extract_strided_slice %56 {offsets = [0, 96], sizes = [1, 32], strides = [1, 1]} : vector<1x128xf32> to vector<1x32xf32>
    %62 = arith.mulf %59, %46 : vector<1x32xf32>
    %63 = arith.mulf %58, %60 : vector<1x32xf32>
    %64 = arith.addf %62, %63 : vector<1x32xf32>
    %65 = math.tanh %64 : vector<1x32xf32>
    %66 = arith.mulf %61, %65 : vector<1x32xf32>
    %67 = vector.extract_strided_slice %28 {offsets = [2, 0], sizes = [1, 128], strides = [1, 1]} : vector<8x128xf32> to vector<1x128xf32>
    %cst_22 = arith.constant dense<0.000000e+00> : vector<1x128xf32>
    %68 = tpu.matmul %66, %1, %cst_22 {dimension_numbers = #tpu.dot_dimension_numbers<[1], [0], [0], [1], [0, 0, 1, 1], [], []>} : vector<1x32xf32>, vector<32x128xf32>, vector<1x128xf32> -> vector<1x128xf32>
    %69 = arith.addf %67, %68 : vector<1x128xf32>
    %70 = arith.negf %69 : vector<1x128xf32>
    %71 = math.exp %70 : vector<1x128xf32>
    %cst_23 = arith.constant 1.000000e+00 : f32
    %72 = vector.broadcast %cst_23 : f32 to vector<1x128xf32>
    %73 = arith.addf %72, %71 : vector<1x128xf32>
    %74 = arith.divf %72, %73 : vector<1x128xf32>
    %75 = math.tanh %69 : vector<1x128xf32>
    %76 = vector.extract_strided_slice %74 {offsets = [0, 0], sizes = [1, 32], strides = [1, 1]} : vector<1x128xf32> to vector<1x32xf32>
    %77 = vector.extract_strided_slice %74 {offsets = [0, 32], sizes = [1, 32], strides = [1, 1]} : vector<1x128xf32> to vector<1x32xf32>
    %78 = vector.extract_strided_slice %75 {offsets = [0, 64], sizes = [1, 32], strides = [1, 1]} : vector<1x128xf32> to vector<1x32xf32>
    %79 = vector.extract_strided_slice %74 {offsets = [0, 96], sizes = [1, 32], strides = [1, 1]} : vector<1x128xf32> to vector<1x32xf32>
    %80 = arith.mulf %77, %64 : vector<1x32xf32>
    %81 = arith.mulf %76, %78 : vector<1x32xf32>
    %82 = arith.addf %80, %81 : vector<1x32xf32>
    %83 = math.tanh %82 : vector<1x32xf32>
    %84 = arith.mulf %79, %83 : vector<1x32xf32>
    %85 = vector.extract_strided_slice %28 {offsets = [3, 0], sizes = [1, 128], strides = [1, 1]} : vector<8x128xf32> to vector<1x128xf32>
    %cst_24 = arith.constant dense<0.000000e+00> : vector<1x128xf32>
    %86 = tpu.matmul %84, %1, %cst_24 {dimension_numbers = #tpu.dot_dimension_numbers<[1], [0], [0], [1], [0, 0, 1, 1], [], []>} : vector<1x32xf32>, vector<32x128xf32>, vector<1x128xf32> -> vector<1x128xf32>
    %87 = arith.addf %85, %86 : vector<1x128xf32>
    %88 = arith.negf %87 : vector<1x128xf32>
    %89 = math.exp %88 : vector<1x128xf32>
    %cst_25 = arith.constant 1.000000e+00 : f32
    %90 = vector.broadcast %cst_25 : f32 to vector<1x128xf32>
    %91 = arith.addf %90, %89 : vector<1x128xf32>
    %92 = arith.divf %90, %91 : vector<1x128xf32>
    %93 = math.tanh %87 : vector<1x128xf32>
    %94 = vector.extract_strided_slice %92 {offsets = [0, 0], sizes = [1, 32], strides = [1, 1]} : vector<1x128xf32> to vector<1x32xf32>
    %95 = vector.extract_strided_slice %92 {offsets = [0, 32], sizes = [1, 32], strides = [1, 1]} : vector<1x128xf32> to vector<1x32xf32>
    %96 = vector.extract_strided_slice %93 {offsets = [0, 64], sizes = [1, 32], strides = [1, 1]} : vector<1x128xf32> to vector<1x32xf32>
    %97 = vector.extract_strided_slice %92 {offsets = [0, 96], sizes = [1, 32], strides = [1, 1]} : vector<1x128xf32> to vector<1x32xf32>
    %98 = arith.mulf %95, %82 : vector<1x32xf32>
    %99 = arith.mulf %94, %96 : vector<1x32xf32>
    %100 = arith.addf %98, %99 : vector<1x32xf32>
    %101 = math.tanh %100 : vector<1x32xf32>
    %102 = arith.mulf %97, %101 : vector<1x32xf32>
    %103 = vector.extract_strided_slice %28 {offsets = [4, 0], sizes = [1, 128], strides = [1, 1]} : vector<8x128xf32> to vector<1x128xf32>
    %cst_26 = arith.constant dense<0.000000e+00> : vector<1x128xf32>
    %104 = tpu.matmul %102, %1, %cst_26 {dimension_numbers = #tpu.dot_dimension_numbers<[1], [0], [0], [1], [0, 0, 1, 1], [], []>} : vector<1x32xf32>, vector<32x128xf32>, vector<1x128xf32> -> vector<1x128xf32>
    %105 = arith.addf %103, %104 : vector<1x128xf32>
    %106 = arith.negf %105 : vector<1x128xf32>
    %107 = math.exp %106 : vector<1x128xf32>
    %cst_27 = arith.constant 1.000000e+00 : f32
    %108 = vector.broadcast %cst_27 : f32 to vector<1x128xf32>
    %109 = arith.addf %108, %107 : vector<1x128xf32>
    %110 = arith.divf %108, %109 : vector<1x128xf32>
    %111 = math.tanh %105 : vector<1x128xf32>
    %112 = vector.extract_strided_slice %110 {offsets = [0, 0], sizes = [1, 32], strides = [1, 1]} : vector<1x128xf32> to vector<1x32xf32>
    %113 = vector.extract_strided_slice %110 {offsets = [0, 32], sizes = [1, 32], strides = [1, 1]} : vector<1x128xf32> to vector<1x32xf32>
    %114 = vector.extract_strided_slice %111 {offsets = [0, 64], sizes = [1, 32], strides = [1, 1]} : vector<1x128xf32> to vector<1x32xf32>
    %115 = vector.extract_strided_slice %110 {offsets = [0, 96], sizes = [1, 32], strides = [1, 1]} : vector<1x128xf32> to vector<1x32xf32>
    %116 = arith.mulf %113, %100 : vector<1x32xf32>
    %117 = arith.mulf %112, %114 : vector<1x32xf32>
    %118 = arith.addf %116, %117 : vector<1x32xf32>
    %119 = math.tanh %118 : vector<1x32xf32>
    %120 = arith.mulf %115, %119 : vector<1x32xf32>
    %121 = vector.extract_strided_slice %28 {offsets = [5, 0], sizes = [1, 128], strides = [1, 1]} : vector<8x128xf32> to vector<1x128xf32>
    %cst_28 = arith.constant dense<0.000000e+00> : vector<1x128xf32>
    %122 = tpu.matmul %120, %1, %cst_28 {dimension_numbers = #tpu.dot_dimension_numbers<[1], [0], [0], [1], [0, 0, 1, 1], [], []>} : vector<1x32xf32>, vector<32x128xf32>, vector<1x128xf32> -> vector<1x128xf32>
    %123 = arith.addf %121, %122 : vector<1x128xf32>
    %124 = arith.negf %123 : vector<1x128xf32>
    %125 = math.exp %124 : vector<1x128xf32>
    %cst_29 = arith.constant 1.000000e+00 : f32
    %126 = vector.broadcast %cst_29 : f32 to vector<1x128xf32>
    %127 = arith.addf %126, %125 : vector<1x128xf32>
    %128 = arith.divf %126, %127 : vector<1x128xf32>
    %129 = math.tanh %123 : vector<1x128xf32>
    %130 = vector.extract_strided_slice %128 {offsets = [0, 0], sizes = [1, 32], strides = [1, 1]} : vector<1x128xf32> to vector<1x32xf32>
    %131 = vector.extract_strided_slice %128 {offsets = [0, 32], sizes = [1, 32], strides = [1, 1]} : vector<1x128xf32> to vector<1x32xf32>
    %132 = vector.extract_strided_slice %129 {offsets = [0, 64], sizes = [1, 32], strides = [1, 1]} : vector<1x128xf32> to vector<1x32xf32>
    %133 = vector.extract_strided_slice %128 {offsets = [0, 96], sizes = [1, 32], strides = [1, 1]} : vector<1x128xf32> to vector<1x32xf32>
    %134 = arith.mulf %131, %118 : vector<1x32xf32>
    %135 = arith.mulf %130, %132 : vector<1x32xf32>
    %136 = arith.addf %134, %135 : vector<1x32xf32>
    %137 = math.tanh %136 : vector<1x32xf32>
    %138 = arith.mulf %133, %137 : vector<1x32xf32>
    %139 = vector.extract_strided_slice %28 {offsets = [6, 0], sizes = [1, 128], strides = [1, 1]} : vector<8x128xf32> to vector<1x128xf32>
    %cst_30 = arith.constant dense<0.000000e+00> : vector<1x128xf32>
    %140 = tpu.matmul %138, %1, %cst_30 {dimension_numbers = #tpu.dot_dimension_numbers<[1], [0], [0], [1], [0, 0, 1, 1], [], []>} : vector<1x32xf32>, vector<32x128xf32>, vector<1x128xf32> -> vector<1x128xf32>
    %141 = arith.addf %139, %140 : vector<1x128xf32>
    %142 = arith.negf %141 : vector<1x128xf32>
    %143 = math.exp %142 : vector<1x128xf32>
    %cst_31 = arith.constant 1.000000e+00 : f32
    %144 = vector.broadcast %cst_31 : f32 to vector<1x128xf32>
    %145 = arith.addf %144, %143 : vector<1x128xf32>
    %146 = arith.divf %144, %145 : vector<1x128xf32>
    %147 = math.tanh %141 : vector<1x128xf32>
    %148 = vector.extract_strided_slice %146 {offsets = [0, 0], sizes = [1, 32], strides = [1, 1]} : vector<1x128xf32> to vector<1x32xf32>
    %149 = vector.extract_strided_slice %146 {offsets = [0, 32], sizes = [1, 32], strides = [1, 1]} : vector<1x128xf32> to vector<1x32xf32>
    %150 = vector.extract_strided_slice %147 {offsets = [0, 64], sizes = [1, 32], strides = [1, 1]} : vector<1x128xf32> to vector<1x32xf32>
    %151 = vector.extract_strided_slice %146 {offsets = [0, 96], sizes = [1, 32], strides = [1, 1]} : vector<1x128xf32> to vector<1x32xf32>
    %152 = arith.mulf %149, %136 : vector<1x32xf32>
    %153 = arith.mulf %148, %150 : vector<1x32xf32>
    %154 = arith.addf %152, %153 : vector<1x32xf32>
    %155 = math.tanh %154 : vector<1x32xf32>
    %156 = arith.mulf %151, %155 : vector<1x32xf32>
    %157 = vector.extract_strided_slice %28 {offsets = [7, 0], sizes = [1, 128], strides = [1, 1]} : vector<8x128xf32> to vector<1x128xf32>
    %cst_32 = arith.constant dense<0.000000e+00> : vector<1x128xf32>
    %158 = tpu.matmul %156, %1, %cst_32 {dimension_numbers = #tpu.dot_dimension_numbers<[1], [0], [0], [1], [0, 0, 1, 1], [], []>} : vector<1x32xf32>, vector<32x128xf32>, vector<1x128xf32> -> vector<1x128xf32>
    %159 = arith.addf %157, %158 : vector<1x128xf32>
    %160 = arith.negf %159 : vector<1x128xf32>
    %161 = math.exp %160 : vector<1x128xf32>
    %cst_33 = arith.constant 1.000000e+00 : f32
    %162 = vector.broadcast %cst_33 : f32 to vector<1x128xf32>
    %163 = arith.addf %162, %161 : vector<1x128xf32>
    %164 = arith.divf %162, %163 : vector<1x128xf32>
    %165 = math.tanh %159 : vector<1x128xf32>
    %166 = vector.extract_strided_slice %164 {offsets = [0, 0], sizes = [1, 32], strides = [1, 1]} : vector<1x128xf32> to vector<1x32xf32>
    %167 = vector.extract_strided_slice %164 {offsets = [0, 32], sizes = [1, 32], strides = [1, 1]} : vector<1x128xf32> to vector<1x32xf32>
    %168 = vector.extract_strided_slice %165 {offsets = [0, 64], sizes = [1, 32], strides = [1, 1]} : vector<1x128xf32> to vector<1x32xf32>
    %169 = vector.extract_strided_slice %164 {offsets = [0, 96], sizes = [1, 32], strides = [1, 1]} : vector<1x128xf32> to vector<1x32xf32>
    %170 = arith.mulf %167, %154 : vector<1x32xf32>
    %171 = arith.mulf %166, %168 : vector<1x32xf32>
    %172 = arith.addf %170, %171 : vector<1x32xf32>
    %173 = math.tanh %172 : vector<1x32xf32>
    %174 = arith.mulf %169, %173 : vector<1x32xf32>
    %175 = tpu.concatenate %48, %66, %84, %102, %120, %138, %156, %174 in 0 : vector<1x32xf32>, vector<1x32xf32>, vector<1x32xf32>, vector<1x32xf32>, vector<1x32xf32>, vector<1x32xf32>, vector<1x32xf32>, vector<1x32xf32> -> vector<8x32xf32>
    %cst_34 = arith.constant dense<0.000000e+00> : vector<8x128xf32>
    %176 = tpu.matmul %175, %2, %cst_34 {dimension_numbers = #tpu.dot_dimension_numbers<[1], [0], [0], [1], [0, 0, 1, 1], [], []>} : vector<8x32xf32>, vector<32x128xf32>, vector<8x128xf32> -> vector<8x128xf32>
    %177 = vector.broadcast %5 : vector<1x128xf32> to vector<8x128xf32>
    %178 = arith.addf %176, %177 : vector<8x128xf32>
    %cst_35 = arith.constant 0.000000e+00 : f32
    %179 = vector.broadcast %cst_35 : f32 to vector<1x32xf32>
    %cst_36 = arith.constant 0.000000e+00 : f32
    %180 = vector.broadcast %cst_36 : f32 to vector<1x32xf32>
    %181 = vector.extract_strided_slice %178 {offsets = [0, 0], sizes = [1, 128], strides = [1, 1]} : vector<8x128xf32> to vector<1x128xf32>
    %cst_37 = arith.constant dense<0.000000e+00> : vector<1x128xf32>
    %182 = tpu.matmul %179, %3, %cst_37 {dimension_numbers = #tpu.dot_dimension_numbers<[1], [0], [0], [1], [0, 0, 1, 1], [], []>} : vector<1x32xf32>, vector<32x128xf32>, vector<1x128xf32> -> vector<1x128xf32>
    %183 = arith.addf %181, %182 : vector<1x128xf32>
    %184 = arith.negf %183 : vector<1x128xf32>
    %185 = math.exp %184 : vector<1x128xf32>
    %cst_38 = arith.constant 1.000000e+00 : f32
    %186 = vector.broadcast %cst_38 : f32 to vector<1x128xf32>
    %187 = arith.addf %186, %185 : vector<1x128xf32>
    %188 = arith.divf %186, %187 : vector<1x128xf32>
    %189 = math.tanh %183 : vector<1x128xf32>
    %190 = vector.extract_strided_slice %188 {offsets = [0, 0], sizes = [1, 32], strides = [1, 1]} : vector<1x128xf32> to vector<1x32xf32>
    %191 = vector.extract_strided_slice %188 {offsets = [0, 32], sizes = [1, 32], strides = [1, 1]} : vector<1x128xf32> to vector<1x32xf32>
    %192 = vector.extract_strided_slice %189 {offsets = [0, 64], sizes = [1, 32], strides = [1, 1]} : vector<1x128xf32> to vector<1x32xf32>
    %193 = vector.extract_strided_slice %188 {offsets = [0, 96], sizes = [1, 32], strides = [1, 1]} : vector<1x128xf32> to vector<1x32xf32>
    %194 = arith.mulf %191, %180 : vector<1x32xf32>
    %195 = arith.mulf %190, %192 : vector<1x32xf32>
    %196 = arith.addf %194, %195 : vector<1x32xf32>
    %197 = math.tanh %196 : vector<1x32xf32>
    %198 = arith.mulf %193, %197 : vector<1x32xf32>
    %199 = vector.extract_strided_slice %178 {offsets = [1, 0], sizes = [1, 128], strides = [1, 1]} : vector<8x128xf32> to vector<1x128xf32>
    %cst_39 = arith.constant dense<0.000000e+00> : vector<1x128xf32>
    %200 = tpu.matmul %198, %3, %cst_39 {dimension_numbers = #tpu.dot_dimension_numbers<[1], [0], [0], [1], [0, 0, 1, 1], [], []>} : vector<1x32xf32>, vector<32x128xf32>, vector<1x128xf32> -> vector<1x128xf32>
    %201 = arith.addf %199, %200 : vector<1x128xf32>
    %202 = arith.negf %201 : vector<1x128xf32>
    %203 = math.exp %202 : vector<1x128xf32>
    %cst_40 = arith.constant 1.000000e+00 : f32
    %204 = vector.broadcast %cst_40 : f32 to vector<1x128xf32>
    %205 = arith.addf %204, %203 : vector<1x128xf32>
    %206 = arith.divf %204, %205 : vector<1x128xf32>
    %207 = math.tanh %201 : vector<1x128xf32>
    %208 = vector.extract_strided_slice %206 {offsets = [0, 0], sizes = [1, 32], strides = [1, 1]} : vector<1x128xf32> to vector<1x32xf32>
    %209 = vector.extract_strided_slice %206 {offsets = [0, 32], sizes = [1, 32], strides = [1, 1]} : vector<1x128xf32> to vector<1x32xf32>
    %210 = vector.extract_strided_slice %207 {offsets = [0, 64], sizes = [1, 32], strides = [1, 1]} : vector<1x128xf32> to vector<1x32xf32>
    %211 = vector.extract_strided_slice %206 {offsets = [0, 96], sizes = [1, 32], strides = [1, 1]} : vector<1x128xf32> to vector<1x32xf32>
    %212 = arith.mulf %209, %196 : vector<1x32xf32>
    %213 = arith.mulf %208, %210 : vector<1x32xf32>
    %214 = arith.addf %212, %213 : vector<1x32xf32>
    %215 = math.tanh %214 : vector<1x32xf32>
    %216 = arith.mulf %211, %215 : vector<1x32xf32>
    %217 = vector.extract_strided_slice %178 {offsets = [2, 0], sizes = [1, 128], strides = [1, 1]} : vector<8x128xf32> to vector<1x128xf32>
    %cst_41 = arith.constant dense<0.000000e+00> : vector<1x128xf32>
    %218 = tpu.matmul %216, %3, %cst_41 {dimension_numbers = #tpu.dot_dimension_numbers<[1], [0], [0], [1], [0, 0, 1, 1], [], []>} : vector<1x32xf32>, vector<32x128xf32>, vector<1x128xf32> -> vector<1x128xf32>
    %219 = arith.addf %217, %218 : vector<1x128xf32>
    %220 = arith.negf %219 : vector<1x128xf32>
    %221 = math.exp %220 : vector<1x128xf32>
    %cst_42 = arith.constant 1.000000e+00 : f32
    %222 = vector.broadcast %cst_42 : f32 to vector<1x128xf32>
    %223 = arith.addf %222, %221 : vector<1x128xf32>
    %224 = arith.divf %222, %223 : vector<1x128xf32>
    %225 = math.tanh %219 : vector<1x128xf32>
    %226 = vector.extract_strided_slice %224 {offsets = [0, 0], sizes = [1, 32], strides = [1, 1]} : vector<1x128xf32> to vector<1x32xf32>
    %227 = vector.extract_strided_slice %224 {offsets = [0, 32], sizes = [1, 32], strides = [1, 1]} : vector<1x128xf32> to vector<1x32xf32>
    %228 = vector.extract_strided_slice %225 {offsets = [0, 64], sizes = [1, 32], strides = [1, 1]} : vector<1x128xf32> to vector<1x32xf32>
    %229 = vector.extract_strided_slice %224 {offsets = [0, 96], sizes = [1, 32], strides = [1, 1]} : vector<1x128xf32> to vector<1x32xf32>
    %230 = arith.mulf %227, %214 : vector<1x32xf32>
    %231 = arith.mulf %226, %228 : vector<1x32xf32>
    %232 = arith.addf %230, %231 : vector<1x32xf32>
    %233 = math.tanh %232 : vector<1x32xf32>
    %234 = arith.mulf %229, %233 : vector<1x32xf32>
    %235 = vector.extract_strided_slice %178 {offsets = [3, 0], sizes = [1, 128], strides = [1, 1]} : vector<8x128xf32> to vector<1x128xf32>
    %cst_43 = arith.constant dense<0.000000e+00> : vector<1x128xf32>
    %236 = tpu.matmul %234, %3, %cst_43 {dimension_numbers = #tpu.dot_dimension_numbers<[1], [0], [0], [1], [0, 0, 1, 1], [], []>} : vector<1x32xf32>, vector<32x128xf32>, vector<1x128xf32> -> vector<1x128xf32>
    %237 = arith.addf %235, %236 : vector<1x128xf32>
    %238 = arith.negf %237 : vector<1x128xf32>
    %239 = math.exp %238 : vector<1x128xf32>
    %cst_44 = arith.constant 1.000000e+00 : f32
    %240 = vector.broadcast %cst_44 : f32 to vector<1x128xf32>
    %241 = arith.addf %240, %239 : vector<1x128xf32>
    %242 = arith.divf %240, %241 : vector<1x128xf32>
    %243 = math.tanh %237 : vector<1x128xf32>
    %244 = vector.extract_strided_slice %242 {offsets = [0, 0], sizes = [1, 32], strides = [1, 1]} : vector<1x128xf32> to vector<1x32xf32>
    %245 = vector.extract_strided_slice %242 {offsets = [0, 32], sizes = [1, 32], strides = [1, 1]} : vector<1x128xf32> to vector<1x32xf32>
    %246 = vector.extract_strided_slice %243 {offsets = [0, 64], sizes = [1, 32], strides = [1, 1]} : vector<1x128xf32> to vector<1x32xf32>
    %247 = vector.extract_strided_slice %242 {offsets = [0, 96], sizes = [1, 32], strides = [1, 1]} : vector<1x128xf32> to vector<1x32xf32>
    %248 = arith.mulf %245, %232 : vector<1x32xf32>
    %249 = arith.mulf %244, %246 : vector<1x32xf32>
    %250 = arith.addf %248, %249 : vector<1x32xf32>
    %251 = math.tanh %250 : vector<1x32xf32>
    %252 = arith.mulf %247, %251 : vector<1x32xf32>
    %253 = vector.extract_strided_slice %178 {offsets = [4, 0], sizes = [1, 128], strides = [1, 1]} : vector<8x128xf32> to vector<1x128xf32>
    %cst_45 = arith.constant dense<0.000000e+00> : vector<1x128xf32>
    %254 = tpu.matmul %252, %3, %cst_45 {dimension_numbers = #tpu.dot_dimension_numbers<[1], [0], [0], [1], [0, 0, 1, 1], [], []>} : vector<1x32xf32>, vector<32x128xf32>, vector<1x128xf32> -> vector<1x128xf32>
    %255 = arith.addf %253, %254 : vector<1x128xf32>
    %256 = arith.negf %255 : vector<1x128xf32>
    %257 = math.exp %256 : vector<1x128xf32>
    %cst_46 = arith.constant 1.000000e+00 : f32
    %258 = vector.broadcast %cst_46 : f32 to vector<1x128xf32>
    %259 = arith.addf %258, %257 : vector<1x128xf32>
    %260 = arith.divf %258, %259 : vector<1x128xf32>
    %261 = math.tanh %255 : vector<1x128xf32>
    %262 = vector.extract_strided_slice %260 {offsets = [0, 0], sizes = [1, 32], strides = [1, 1]} : vector<1x128xf32> to vector<1x32xf32>
    %263 = vector.extract_strided_slice %260 {offsets = [0, 32], sizes = [1, 32], strides = [1, 1]} : vector<1x128xf32> to vector<1x32xf32>
    %264 = vector.extract_strided_slice %261 {offsets = [0, 64], sizes = [1, 32], strides = [1, 1]} : vector<1x128xf32> to vector<1x32xf32>
    %265 = vector.extract_strided_slice %260 {offsets = [0, 96], sizes = [1, 32], strides = [1, 1]} : vector<1x128xf32> to vector<1x32xf32>
    %266 = arith.mulf %263, %250 : vector<1x32xf32>
    %267 = arith.mulf %262, %264 : vector<1x32xf32>
    %268 = arith.addf %266, %267 : vector<1x32xf32>
    %269 = math.tanh %268 : vector<1x32xf32>
    %270 = arith.mulf %265, %269 : vector<1x32xf32>
    %271 = vector.extract_strided_slice %178 {offsets = [5, 0], sizes = [1, 128], strides = [1, 1]} : vector<8x128xf32> to vector<1x128xf32>
    %cst_47 = arith.constant dense<0.000000e+00> : vector<1x128xf32>
    %272 = tpu.matmul %270, %3, %cst_47 {dimension_numbers = #tpu.dot_dimension_numbers<[1], [0], [0], [1], [0, 0, 1, 1], [], []>} : vector<1x32xf32>, vector<32x128xf32>, vector<1x128xf32> -> vector<1x128xf32>
    %273 = arith.addf %271, %272 : vector<1x128xf32>
    %274 = arith.negf %273 : vector<1x128xf32>
    %275 = math.exp %274 : vector<1x128xf32>
    %cst_48 = arith.constant 1.000000e+00 : f32
    %276 = vector.broadcast %cst_48 : f32 to vector<1x128xf32>
    %277 = arith.addf %276, %275 : vector<1x128xf32>
    %278 = arith.divf %276, %277 : vector<1x128xf32>
    %279 = math.tanh %273 : vector<1x128xf32>
    %280 = vector.extract_strided_slice %278 {offsets = [0, 0], sizes = [1, 32], strides = [1, 1]} : vector<1x128xf32> to vector<1x32xf32>
    %281 = vector.extract_strided_slice %278 {offsets = [0, 32], sizes = [1, 32], strides = [1, 1]} : vector<1x128xf32> to vector<1x32xf32>
    %282 = vector.extract_strided_slice %279 {offsets = [0, 64], sizes = [1, 32], strides = [1, 1]} : vector<1x128xf32> to vector<1x32xf32>
    %283 = vector.extract_strided_slice %278 {offsets = [0, 96], sizes = [1, 32], strides = [1, 1]} : vector<1x128xf32> to vector<1x32xf32>
    %284 = arith.mulf %281, %268 : vector<1x32xf32>
    %285 = arith.mulf %280, %282 : vector<1x32xf32>
    %286 = arith.addf %284, %285 : vector<1x32xf32>
    %287 = math.tanh %286 : vector<1x32xf32>
    %288 = arith.mulf %283, %287 : vector<1x32xf32>
    %289 = vector.extract_strided_slice %178 {offsets = [6, 0], sizes = [1, 128], strides = [1, 1]} : vector<8x128xf32> to vector<1x128xf32>
    %cst_49 = arith.constant dense<0.000000e+00> : vector<1x128xf32>
    %290 = tpu.matmul %288, %3, %cst_49 {dimension_numbers = #tpu.dot_dimension_numbers<[1], [0], [0], [1], [0, 0, 1, 1], [], []>} : vector<1x32xf32>, vector<32x128xf32>, vector<1x128xf32> -> vector<1x128xf32>
    %291 = arith.addf %289, %290 : vector<1x128xf32>
    %292 = arith.negf %291 : vector<1x128xf32>
    %293 = math.exp %292 : vector<1x128xf32>
    %cst_50 = arith.constant 1.000000e+00 : f32
    %294 = vector.broadcast %cst_50 : f32 to vector<1x128xf32>
    %295 = arith.addf %294, %293 : vector<1x128xf32>
    %296 = arith.divf %294, %295 : vector<1x128xf32>
    %297 = math.tanh %291 : vector<1x128xf32>
    %298 = vector.extract_strided_slice %296 {offsets = [0, 0], sizes = [1, 32], strides = [1, 1]} : vector<1x128xf32> to vector<1x32xf32>
    %299 = vector.extract_strided_slice %296 {offsets = [0, 32], sizes = [1, 32], strides = [1, 1]} : vector<1x128xf32> to vector<1x32xf32>
    %300 = vector.extract_strided_slice %297 {offsets = [0, 64], sizes = [1, 32], strides = [1, 1]} : vector<1x128xf32> to vector<1x32xf32>
    %301 = vector.extract_strided_slice %296 {offsets = [0, 96], sizes = [1, 32], strides = [1, 1]} : vector<1x128xf32> to vector<1x32xf32>
    %302 = arith.mulf %299, %286 : vector<1x32xf32>
    %303 = arith.mulf %298, %300 : vector<1x32xf32>
    %304 = arith.addf %302, %303 : vector<1x32xf32>
    %305 = math.tanh %304 : vector<1x32xf32>
    %306 = arith.mulf %301, %305 : vector<1x32xf32>
    %307 = vector.extract_strided_slice %178 {offsets = [7, 0], sizes = [1, 128], strides = [1, 1]} : vector<8x128xf32> to vector<1x128xf32>
    %cst_51 = arith.constant dense<0.000000e+00> : vector<1x128xf32>
    %308 = tpu.matmul %306, %3, %cst_51 {dimension_numbers = #tpu.dot_dimension_numbers<[1], [0], [0], [1], [0, 0, 1, 1], [], []>} : vector<1x32xf32>, vector<32x128xf32>, vector<1x128xf32> -> vector<1x128xf32>
    %309 = arith.addf %307, %308 : vector<1x128xf32>
    %310 = arith.negf %309 : vector<1x128xf32>
    %311 = math.exp %310 : vector<1x128xf32>
    %cst_52 = arith.constant 1.000000e+00 : f32
    %312 = vector.broadcast %cst_52 : f32 to vector<1x128xf32>
    %313 = arith.addf %312, %311 : vector<1x128xf32>
    %314 = arith.divf %312, %313 : vector<1x128xf32>
    %315 = math.tanh %309 : vector<1x128xf32>
    %316 = vector.extract_strided_slice %314 {offsets = [0, 0], sizes = [1, 32], strides = [1, 1]} : vector<1x128xf32> to vector<1x32xf32>
    %317 = vector.extract_strided_slice %314 {offsets = [0, 32], sizes = [1, 32], strides = [1, 1]} : vector<1x128xf32> to vector<1x32xf32>
    %318 = vector.extract_strided_slice %315 {offsets = [0, 64], sizes = [1, 32], strides = [1, 1]} : vector<1x128xf32> to vector<1x32xf32>
    %319 = vector.extract_strided_slice %314 {offsets = [0, 96], sizes = [1, 32], strides = [1, 1]} : vector<1x128xf32> to vector<1x32xf32>
    %320 = arith.mulf %317, %304 : vector<1x32xf32>
    %321 = arith.mulf %316, %318 : vector<1x32xf32>
    %322 = arith.addf %320, %321 : vector<1x32xf32>
    %323 = math.tanh %322 : vector<1x32xf32>
    %324 = arith.mulf %319, %323 : vector<1x32xf32>
    %325 = tpu.concatenate %198, %216, %234, %252, %270, %288, %306, %324 in 0 : vector<1x32xf32>, vector<1x32xf32>, vector<1x32xf32>, vector<1x32xf32>, vector<1x32xf32>, vector<1x32xf32>, vector<1x32xf32>, vector<1x32xf32> -> vector<8x32xf32>
    %cst_53 = arith.constant dense<0.000000e+00> : vector<8x18xf32>
    %326 = tpu.matmul %325, %8, %cst_53 {dimension_numbers = #tpu.dot_dimension_numbers<[1], [0], [0], [1], [0, 0, 1, 1], [], []>} : vector<8x32xf32>, vector<32x18xf32>, vector<8x18xf32> -> vector<8x18xf32>
    %327 = vector.broadcast %9 : vector<1x18xf32> to vector<8x18xf32>
    %328 = arith.addf %326, %327 : vector<8x18xf32>
    %329 = arith.negf %328 : vector<8x18xf32>
    %330 = math.exp %329 : vector<8x18xf32>
    %cst_54 = arith.constant 1.000000e+00 : f32
    %331 = vector.broadcast %cst_54 : f32 to vector<8x18xf32>
    %332 = arith.addf %331, %330 : vector<8x18xf32>
    %333 = arith.divf %331, %332 : vector<8x18xf32>
    %334 = vector.extract_strided_slice %333 {offsets = [0, 0], sizes = [8, 9], strides = [1, 1]} : vector<8x18xf32> to vector<8x9xf32>
    %335 = vector.extract_strided_slice %333 {offsets = [0, 9], sizes = [8, 9], strides = [1, 1]} : vector<8x18xf32> to vector<8x9xf32>
    %336 = tpu.concatenate %334, %334 in 1 : vector<8x9xf32>, vector<8x9xf32> -> vector<8x18xf32>
    %337 = arith.mulf %20, %336 : vector<8x18xf32>
    %cst_55 = arith.constant dense<0.000000e+00> : vector<8x16xf32>
    %338 = tpu.matmul %337, %7, %cst_55 {dimension_numbers = #tpu.dot_dimension_numbers<[1], [0], [0], [1], [0, 0, 1, 1], [], []>} : vector<8x18xf32>, vector<18x16xf32>, vector<8x16xf32> -> vector<8x16xf32>
    %cst_56 = arith.constant 0.000000e+00 : f32
    %339 = vector.broadcast %cst_56 : f32 to vector<1x8xf32>
    %340 = vector.extract_strided_slice %338 {offsets = [0, 0], sizes = [8, 8], strides = [1, 1]} : vector<8x16xf32> to vector<8x8xf32>
    %341 = tpu.concatenate %340, %339 in 0 : vector<8x8xf32>, vector<1x8xf32> -> vector<9x8xf32>
    %342 = vector.extract_strided_slice %338 {offsets = [0, 8], sizes = [8, 8], strides = [1, 1]} : vector<8x16xf32> to vector<8x8xf32>
    %343 = tpu.concatenate %339, %342 in 0 : vector<1x8xf32>, vector<8x8xf32> -> vector<9x8xf32>
    %344 = arith.addf %341, %343 : vector<9x8xf32>
    %345 = arith.mulf %344, %10 : vector<9x8xf32>
    %346 = vector.extract_strided_slice %345 {offsets = [0, 0], sizes = [8, 8], strides = [1, 1]} : vector<9x8xf32> to vector<8x8xf32>
    %347 = vector.extract_strided_slice %345 {offsets = [1, 0], sizes = [8, 8], strides = [1, 1]} : vector<9x8xf32> to vector<8x8xf32>
    %348 = tpu.concatenate %346, %347 in 1 : vector<8x8xf32>, vector<8x8xf32> -> vector<8x16xf32>
    %cst_57 = arith.constant dense<0.000000e+00> : vector<8x18xf32>
    %349 = tpu.matmul %348, %6, %cst_57 {dimension_numbers = #tpu.dot_dimension_numbers<[1], [0], [0], [1], [0, 0, 1, 1], [], []>} : vector<8x16xf32>, vector<16x18xf32>, vector<8x18xf32> -> vector<8x18xf32>
    %350 = vector.extract_strided_slice %349 {offsets = [0, 0], sizes = [8, 9], strides = [1, 1]} : vector<8x18xf32> to vector<8x9xf32>
    %351 = vector.extract_strided_slice %349 {offsets = [0, 9], sizes = [8, 9], strides = [1, 1]} : vector<8x18xf32> to vector<8x9xf32>
    %cst_58 = arith.constant 0.000000e+00 : f32
    %352 = vector.broadcast %cst_58 : f32 to vector<1x9xf32>
    %cst_59 = arith.constant 0.000000e+00 : f32
    %353 = vector.broadcast %cst_59 : f32 to vector<1x9xf32>
    %354 = vector.extract_strided_slice %350 {offsets = [0, 0], sizes = [1, 9], strides = [1, 1]} : vector<8x9xf32> to vector<1x9xf32>
    %355 = vector.extract_strided_slice %351 {offsets = [0, 0], sizes = [1, 9], strides = [1, 1]} : vector<8x9xf32> to vector<1x9xf32>
    %356 = vector.extract_strided_slice %21 {offsets = [0, 0], sizes = [1, 9], strides = [1, 1]} : vector<8x9xf32> to vector<1x9xf32>
    %357 = vector.extract_strided_slice %22 {offsets = [0, 0], sizes = [1, 9], strides = [1, 1]} : vector<8x9xf32> to vector<1x9xf32>
    %358 = arith.mulf %352, %354 : vector<1x9xf32>
    %359 = arith.mulf %353, %355 : vector<1x9xf32>
    %360 = arith.subf %358, %359 : vector<1x9xf32>
    %361 = arith.mulf %352, %355 : vector<1x9xf32>
    %362 = arith.mulf %353, %354 : vector<1x9xf32>
    %363 = arith.addf %361, %362 : vector<1x9xf32>
    %364 = arith.subf %356, %360 : vector<1x9xf32>
    %365 = arith.subf %357, %363 : vector<1x9xf32>
    %366 = vector.extract_strided_slice %335 {offsets = [0, 0], sizes = [1, 9], strides = [1, 1]} : vector<8x9xf32> to vector<1x9xf32>
    %367 = arith.mulf %354, %354 : vector<1x9xf32>
    %368 = arith.mulf %355, %355 : vector<1x9xf32>
    %369 = arith.addf %367, %368 : vector<1x9xf32>
    %cst_60 = arith.constant 9.99999993E-9 : f32
    %370 = vector.broadcast %cst_60 : f32 to vector<1x9xf32>
    %371 = arith.addf %369, %370 : vector<1x9xf32>
    %372 = arith.divf %366, %371 : vector<1x9xf32>
    %373 = arith.mulf %354, %364 : vector<1x9xf32>
    %374 = arith.mulf %355, %365 : vector<1x9xf32>
    %375 = arith.addf %373, %374 : vector<1x9xf32>
    %376 = arith.mulf %372, %375 : vector<1x9xf32>
    %377 = arith.addf %352, %376 : vector<1x9xf32>
    %378 = arith.mulf %354, %365 : vector<1x9xf32>
    %379 = arith.mulf %355, %364 : vector<1x9xf32>
    %380 = arith.subf %378, %379 : vector<1x9xf32>
    %381 = arith.mulf %372, %380 : vector<1x9xf32>
    %382 = arith.addf %353, %381 : vector<1x9xf32>
    %383 = vector.extract_strided_slice %350 {offsets = [1, 0], sizes = [1, 9], strides = [1, 1]} : vector<8x9xf32> to vector<1x9xf32>
    %384 = vector.extract_strided_slice %351 {offsets = [1, 0], sizes = [1, 9], strides = [1, 1]} : vector<8x9xf32> to vector<1x9xf32>
    %385 = vector.extract_strided_slice %21 {offsets = [1, 0], sizes = [1, 9], strides = [1, 1]} : vector<8x9xf32> to vector<1x9xf32>
    %386 = vector.extract_strided_slice %22 {offsets = [1, 0], sizes = [1, 9], strides = [1, 1]} : vector<8x9xf32> to vector<1x9xf32>
    %387 = arith.mulf %377, %383 : vector<1x9xf32>
    %388 = arith.mulf %382, %384 : vector<1x9xf32>
    %389 = arith.subf %387, %388 : vector<1x9xf32>
    %390 = arith.mulf %377, %384 : vector<1x9xf32>
    %391 = arith.mulf %382, %383 : vector<1x9xf32>
    %392 = arith.addf %390, %391 : vector<1x9xf32>
    %393 = arith.subf %385, %389 : vector<1x9xf32>
    %394 = arith.subf %386, %392 : vector<1x9xf32>
    %395 = vector.extract_strided_slice %335 {offsets = [1, 0], sizes = [1, 9], strides = [1, 1]} : vector<8x9xf32> to vector<1x9xf32>
    %396 = arith.mulf %383, %383 : vector<1x9xf32>
    %397 = arith.mulf %384, %384 : vector<1x9xf32>
    %398 = arith.addf %396, %397 : vector<1x9xf32>
    %cst_61 = arith.constant 9.99999993E-9 : f32
    %399 = vector.broadcast %cst_61 : f32 to vector<1x9xf32>
    %400 = arith.addf %398, %399 : vector<1x9xf32>
    %401 = arith.divf %395, %400 : vector<1x9xf32>
    %402 = arith.mulf %383, %393 : vector<1x9xf32>
    %403 = arith.mulf %384, %394 : vector<1x9xf32>
    %404 = arith.addf %402, %403 : vector<1x9xf32>
    %405 = arith.mulf %401, %404 : vector<1x9xf32>
    %406 = arith.addf %377, %405 : vector<1x9xf32>
    %407 = arith.mulf %383, %394 : vector<1x9xf32>
    %408 = arith.mulf %384, %393 : vector<1x9xf32>
    %409 = arith.subf %407, %408 : vector<1x9xf32>
    %410 = arith.mulf %401, %409 : vector<1x9xf32>
    %411 = arith.addf %382, %410 : vector<1x9xf32>
    %412 = vector.extract_strided_slice %350 {offsets = [2, 0], sizes = [1, 9], strides = [1, 1]} : vector<8x9xf32> to vector<1x9xf32>
    %413 = vector.extract_strided_slice %351 {offsets = [2, 0], sizes = [1, 9], strides = [1, 1]} : vector<8x9xf32> to vector<1x9xf32>
    %414 = vector.extract_strided_slice %21 {offsets = [2, 0], sizes = [1, 9], strides = [1, 1]} : vector<8x9xf32> to vector<1x9xf32>
    %415 = vector.extract_strided_slice %22 {offsets = [2, 0], sizes = [1, 9], strides = [1, 1]} : vector<8x9xf32> to vector<1x9xf32>
    %416 = arith.mulf %406, %412 : vector<1x9xf32>
    %417 = arith.mulf %411, %413 : vector<1x9xf32>
    %418 = arith.subf %416, %417 : vector<1x9xf32>
    %419 = arith.mulf %406, %413 : vector<1x9xf32>
    %420 = arith.mulf %411, %412 : vector<1x9xf32>
    %421 = arith.addf %419, %420 : vector<1x9xf32>
    %422 = arith.subf %414, %418 : vector<1x9xf32>
    %423 = arith.subf %415, %421 : vector<1x9xf32>
    %424 = vector.extract_strided_slice %335 {offsets = [2, 0], sizes = [1, 9], strides = [1, 1]} : vector<8x9xf32> to vector<1x9xf32>
    %425 = arith.mulf %412, %412 : vector<1x9xf32>
    %426 = arith.mulf %413, %413 : vector<1x9xf32>
    %427 = arith.addf %425, %426 : vector<1x9xf32>
    %cst_62 = arith.constant 9.99999993E-9 : f32
    %428 = vector.broadcast %cst_62 : f32 to vector<1x9xf32>
    %429 = arith.addf %427, %428 : vector<1x9xf32>
    %430 = arith.divf %424, %429 : vector<1x9xf32>
    %431 = arith.mulf %412, %422 : vector<1x9xf32>
    %432 = arith.mulf %413, %423 : vector<1x9xf32>
    %433 = arith.addf %431, %432 : vector<1x9xf32>
    %434 = arith.mulf %430, %433 : vector<1x9xf32>
    %435 = arith.addf %406, %434 : vector<1x9xf32>
    %436 = arith.mulf %412, %423 : vector<1x9xf32>
    %437 = arith.mulf %413, %422 : vector<1x9xf32>
    %438 = arith.subf %436, %437 : vector<1x9xf32>
    %439 = arith.mulf %430, %438 : vector<1x9xf32>
    %440 = arith.addf %411, %439 : vector<1x9xf32>
    %441 = vector.extract_strided_slice %350 {offsets = [3, 0], sizes = [1, 9], strides = [1, 1]} : vector<8x9xf32> to vector<1x9xf32>
    %442 = vector.extract_strided_slice %351 {offsets = [3, 0], sizes = [1, 9], strides = [1, 1]} : vector<8x9xf32> to vector<1x9xf32>
    %443 = vector.extract_strided_slice %21 {offsets = [3, 0], sizes = [1, 9], strides = [1, 1]} : vector<8x9xf32> to vector<1x9xf32>
    %444 = vector.extract_strided_slice %22 {offsets = [3, 0], sizes = [1, 9], strides = [1, 1]} : vector<8x9xf32> to vector<1x9xf32>
    %445 = arith.mulf %435, %441 : vector<1x9xf32>
    %446 = arith.mulf %440, %442 : vector<1x9xf32>
    %447 = arith.subf %445, %446 : vector<1x9xf32>
    %448 = arith.mulf %435, %442 : vector<1x9xf32>
    %449 = arith.mulf %440, %441 : vector<1x9xf32>
    %450 = arith.addf %448, %449 : vector<1x9xf32>
    %451 = arith.subf %443, %447 : vector<1x9xf32>
    %452 = arith.subf %444, %450 : vector<1x9xf32>
    %453 = vector.extract_strided_slice %335 {offsets = [3, 0], sizes = [1, 9], strides = [1, 1]} : vector<8x9xf32> to vector<1x9xf32>
    %454 = arith.mulf %441, %441 : vector<1x9xf32>
    %455 = arith.mulf %442, %442 : vector<1x9xf32>
    %456 = arith.addf %454, %455 : vector<1x9xf32>
    %cst_63 = arith.constant 9.99999993E-9 : f32
    %457 = vector.broadcast %cst_63 : f32 to vector<1x9xf32>
    %458 = arith.addf %456, %457 : vector<1x9xf32>
    %459 = arith.divf %453, %458 : vector<1x9xf32>
    %460 = arith.mulf %441, %451 : vector<1x9xf32>
    %461 = arith.mulf %442, %452 : vector<1x9xf32>
    %462 = arith.addf %460, %461 : vector<1x9xf32>
    %463 = arith.mulf %459, %462 : vector<1x9xf32>
    %464 = arith.addf %435, %463 : vector<1x9xf32>
    %465 = arith.mulf %441, %452 : vector<1x9xf32>
    %466 = arith.mulf %442, %451 : vector<1x9xf32>
    %467 = arith.subf %465, %466 : vector<1x9xf32>
    %468 = arith.mulf %459, %467 : vector<1x9xf32>
    %469 = arith.addf %440, %468 : vector<1x9xf32>
    %470 = vector.extract_strided_slice %350 {offsets = [4, 0], sizes = [1, 9], strides = [1, 1]} : vector<8x9xf32> to vector<1x9xf32>
    %471 = vector.extract_strided_slice %351 {offsets = [4, 0], sizes = [1, 9], strides = [1, 1]} : vector<8x9xf32> to vector<1x9xf32>
    %472 = vector.extract_strided_slice %21 {offsets = [4, 0], sizes = [1, 9], strides = [1, 1]} : vector<8x9xf32> to vector<1x9xf32>
    %473 = vector.extract_strided_slice %22 {offsets = [4, 0], sizes = [1, 9], strides = [1, 1]} : vector<8x9xf32> to vector<1x9xf32>
    %474 = arith.mulf %464, %470 : vector<1x9xf32>
    %475 = arith.mulf %469, %471 : vector<1x9xf32>
    %476 = arith.subf %474, %475 : vector<1x9xf32>
    %477 = arith.mulf %464, %471 : vector<1x9xf32>
    %478 = arith.mulf %469, %470 : vector<1x9xf32>
    %479 = arith.addf %477, %478 : vector<1x9xf32>
    %480 = arith.subf %472, %476 : vector<1x9xf32>
    %481 = arith.subf %473, %479 : vector<1x9xf32>
    %482 = vector.extract_strided_slice %335 {offsets = [4, 0], sizes = [1, 9], strides = [1, 1]} : vector<8x9xf32> to vector<1x9xf32>
    %483 = arith.mulf %470, %470 : vector<1x9xf32>
    %484 = arith.mulf %471, %471 : vector<1x9xf32>
    %485 = arith.addf %483, %484 : vector<1x9xf32>
    %cst_64 = arith.constant 9.99999993E-9 : f32
    %486 = vector.broadcast %cst_64 : f32 to vector<1x9xf32>
    %487 = arith.addf %485, %486 : vector<1x9xf32>
    %488 = arith.divf %482, %487 : vector<1x9xf32>
    %489 = arith.mulf %470, %480 : vector<1x9xf32>
    %490 = arith.mulf %471, %481 : vector<1x9xf32>
    %491 = arith.addf %489, %490 : vector<1x9xf32>
    %492 = arith.mulf %488, %491 : vector<1x9xf32>
    %493 = arith.addf %464, %492 : vector<1x9xf32>
    %494 = arith.mulf %470, %481 : vector<1x9xf32>
    %495 = arith.mulf %471, %480 : vector<1x9xf32>
    %496 = arith.subf %494, %495 : vector<1x9xf32>
    %497 = arith.mulf %488, %496 : vector<1x9xf32>
    %498 = arith.addf %469, %497 : vector<1x9xf32>
    %499 = vector.extract_strided_slice %350 {offsets = [5, 0], sizes = [1, 9], strides = [1, 1]} : vector<8x9xf32> to vector<1x9xf32>
    %500 = vector.extract_strided_slice %351 {offsets = [5, 0], sizes = [1, 9], strides = [1, 1]} : vector<8x9xf32> to vector<1x9xf32>
    %501 = vector.extract_strided_slice %21 {offsets = [5, 0], sizes = [1, 9], strides = [1, 1]} : vector<8x9xf32> to vector<1x9xf32>
    %502 = vector.extract_strided_slice %22 {offsets = [5, 0], sizes = [1, 9], strides = [1, 1]} : vector<8x9xf32> to vector<1x9xf32>
    %503 = arith.mulf %493, %499 : vector<1x9xf32>
    %504 = arith.mulf %498, %500 : vector<1x9xf32>
    %505 = arith.subf %503, %504 : vector<1x9xf32>
    %506 = arith.mulf %493, %500 : vector<1x9xf32>
    %507 = arith.mulf %498, %499 : vector<1x9xf32>
    %508 = arith.addf %506, %507 : vector<1x9xf32>
    %509 = arith.subf %501, %505 : vector<1x9xf32>
    %510 = arith.subf %502, %508 : vector<1x9xf32>
    %511 = vector.extract_strided_slice %335 {offsets = [5, 0], sizes = [1, 9], strides = [1, 1]} : vector<8x9xf32> to vector<1x9xf32>
    %512 = arith.mulf %499, %499 : vector<1x9xf32>
    %513 = arith.mulf %500, %500 : vector<1x9xf32>
    %514 = arith.addf %512, %513 : vector<1x9xf32>
    %cst_65 = arith.constant 9.99999993E-9 : f32
    %515 = vector.broadcast %cst_65 : f32 to vector<1x9xf32>
    %516 = arith.addf %514, %515 : vector<1x9xf32>
    %517 = arith.divf %511, %516 : vector<1x9xf32>
    %518 = arith.mulf %499, %509 : vector<1x9xf32>
    %519 = arith.mulf %500, %510 : vector<1x9xf32>
    %520 = arith.addf %518, %519 : vector<1x9xf32>
    %521 = arith.mulf %517, %520 : vector<1x9xf32>
    %522 = arith.addf %493, %521 : vector<1x9xf32>
    %523 = arith.mulf %499, %510 : vector<1x9xf32>
    %524 = arith.mulf %500, %509 : vector<1x9xf32>
    %525 = arith.subf %523, %524 : vector<1x9xf32>
    %526 = arith.mulf %517, %525 : vector<1x9xf32>
    %527 = arith.addf %498, %526 : vector<1x9xf32>
    %528 = vector.extract_strided_slice %350 {offsets = [6, 0], sizes = [1, 9], strides = [1, 1]} : vector<8x9xf32> to vector<1x9xf32>
    %529 = vector.extract_strided_slice %351 {offsets = [6, 0], sizes = [1, 9], strides = [1, 1]} : vector<8x9xf32> to vector<1x9xf32>
    %530 = vector.extract_strided_slice %21 {offsets = [6, 0], sizes = [1, 9], strides = [1, 1]} : vector<8x9xf32> to vector<1x9xf32>
    %531 = vector.extract_strided_slice %22 {offsets = [6, 0], sizes = [1, 9], strides = [1, 1]} : vector<8x9xf32> to vector<1x9xf32>
    %532 = arith.mulf %522, %528 : vector<1x9xf32>
    %533 = arith.mulf %527, %529 : vector<1x9xf32>
    %534 = arith.subf %532, %533 : vector<1x9xf32>
    %535 = arith.mulf %522, %529 : vector<1x9xf32>
    %536 = arith.mulf %527, %528 : vector<1x9xf32>
    %537 = arith.addf %535, %536 : vector<1x9xf32>
    %538 = arith.subf %530, %534 : vector<1x9xf32>
    %539 = arith.subf %531, %537 : vector<1x9xf32>
    %540 = vector.extract_strided_slice %335 {offsets = [6, 0], sizes = [1, 9], strides = [1, 1]} : vector<8x9xf32> to vector<1x9xf32>
    %541 = arith.mulf %528, %528 : vector<1x9xf32>
    %542 = arith.mulf %529, %529 : vector<1x9xf32>
    %543 = arith.addf %541, %542 : vector<1x9xf32>
    %cst_66 = arith.constant 9.99999993E-9 : f32
    %544 = vector.broadcast %cst_66 : f32 to vector<1x9xf32>
    %545 = arith.addf %543, %544 : vector<1x9xf32>
    %546 = arith.divf %540, %545 : vector<1x9xf32>
    %547 = arith.mulf %528, %538 : vector<1x9xf32>
    %548 = arith.mulf %529, %539 : vector<1x9xf32>
    %549 = arith.addf %547, %548 : vector<1x9xf32>
    %550 = arith.mulf %546, %549 : vector<1x9xf32>
    %551 = arith.addf %522, %550 : vector<1x9xf32>
    %552 = arith.mulf %528, %539 : vector<1x9xf32>
    %553 = arith.mulf %529, %538 : vector<1x9xf32>
    %554 = arith.subf %552, %553 : vector<1x9xf32>
    %555 = arith.mulf %546, %554 : vector<1x9xf32>
    %556 = arith.addf %527, %555 : vector<1x9xf32>
    %557 = vector.extract_strided_slice %350 {offsets = [7, 0], sizes = [1, 9], strides = [1, 1]} : vector<8x9xf32> to vector<1x9xf32>
    %558 = vector.extract_strided_slice %351 {offsets = [7, 0], sizes = [1, 9], strides = [1, 1]} : vector<8x9xf32> to vector<1x9xf32>
    %559 = vector.extract_strided_slice %21 {offsets = [7, 0], sizes = [1, 9], strides = [1, 1]} : vector<8x9xf32> to vector<1x9xf32>
    %560 = vector.extract_strided_slice %22 {offsets = [7, 0], sizes = [1, 9], strides = [1, 1]} : vector<8x9xf32> to vector<1x9xf32>
    %561 = arith.mulf %551, %557 : vector<1x9xf32>
    %562 = arith.mulf %556, %558 : vector<1x9xf32>
    %563 = arith.subf %561, %562 : vector<1x9xf32>
    %564 = arith.mulf %551, %558 : vector<1x9xf32>
    %565 = arith.mulf %556, %557 : vector<1x9xf32>
    %566 = arith.addf %564, %565 : vector<1x9xf32>
    %567 = arith.subf %559, %563 : vector<1x9xf32>
    %568 = arith.subf %560, %566 : vector<1x9xf32>
    %569 = tpu.concatenate %364, %393, %422, %451, %480, %509, %538, %567 in 0 : vector<1x9xf32>, vector<1x9xf32>, vector<1x9xf32>, vector<1x9xf32>, vector<1x9xf32>, vector<1x9xf32>, vector<1x9xf32>, vector<1x9xf32> -> vector<8x9xf32>
    %570 = tpu.concatenate %365, %394, %423, %452, %481, %510, %539, %568 in 0 : vector<1x9xf32>, vector<1x9xf32>, vector<1x9xf32>, vector<1x9xf32>, vector<1x9xf32>, vector<1x9xf32>, vector<1x9xf32>, vector<1x9xf32> -> vector<8x9xf32>
    %571 = tpu.concatenate %569, %570 in 1 : vector<8x9xf32>, vector<8x9xf32> -> vector<8x18xf32>
    %cst_67 = arith.constant dense<0.000000e+00> : vector<8x16xf32>
    %572 = tpu.matmul %571, %7, %cst_67 {dimension_numbers = #tpu.dot_dimension_numbers<[1], [0], [0], [1], [0, 0, 1, 1], [], []>} : vector<8x18xf32>, vector<18x16xf32>, vector<8x16xf32> -> vector<8x16xf32>
    %573 = vector.extract_strided_slice %572 {offsets = [0, 0], sizes = [8, 8], strides = [1, 1]} : vector<8x16xf32> to vector<8x8xf32>
    %574 = tpu.concatenate %573, %339 in 0 : vector<8x8xf32>, vector<1x8xf32> -> vector<9x8xf32>
    %575 = vector.extract_strided_slice %572 {offsets = [0, 8], sizes = [8, 8], strides = [1, 1]} : vector<8x16xf32> to vector<8x8xf32>
    %576 = tpu.concatenate %339, %575 in 0 : vector<1x8xf32>, vector<8x8xf32> -> vector<9x8xf32>
    %577 = arith.addf %574, %576 : vector<9x8xf32>
    %578 = arith.mulf %577, %10 : vector<9x8xf32>
    %c0_68 = arith.constant 0 : index
    %c0_69 = arith.constant 0 : index
    %c0_70 = arith.constant 0 : index
    %579 = vector.load %arg4[%c0_68, %c0_69, %c0_70] : memref<1x9x8xf32, #tpu.memory_space<vmem>>, vector<1x9x8xf32>
    %580 = vector.shape_cast %579 : vector<1x9x8xf32> to vector<9x8xf32>
    %581 = vector.shape_cast %578 : vector<9x8xf32> to vector<1x9x8xf32>
    tpu.vector_store %arg4[%c0_68, %c0_69, %c0_70], %581 {strides = array<i32>} : memref<1x9x8xf32, #tpu.memory_space<vmem>>, vector<1x9x8xf32>,
    return
  }
  func.func @transform_0(%arg0: i32) -> (i32, i32, i32) {
    %c0_i32 = arith.constant 0 : i32
    %c0_i32_0 = arith.constant 0 : i32
    %c0_i32_1 = arith.constant 0 : i32
    return %arg0, %c0_i32, %c0_i32_0 : i32, i32, i32
  }
  func.func @transform_1(%arg0: i32) -> (i32, i32) {
    %c0_i32 = arith.constant 0 : i32
    %c0_i32_0 = arith.constant 0 : i32
    %c0_i32_1 = arith.constant 0 : i32
    return %c0_i32, %c0_i32_0 : i32, i32
  }
  func.func @transform_2(%arg0: i32) -> (i32, i32) {
    %c0_i32 = arith.constant 0 : i32
    %c0_i32_0 = arith.constant 0 : i32
    %c0_i32_1 = arith.constant 0 : i32
    return %c0_i32, %c0_i32_0 : i32, i32
  }
  func.func @transform_3(%arg0: i32) -> (i32, i32, i32) {
    %c0_i32 = arith.constant 0 : i32
    %c0_i32_0 = arith.constant 0 : i32
    %c0_i32_1 = arith.constant 0 : i32
    return %arg0, %c0_i32, %c0_i32_0 : i32, i32, i32
  }
}

</mosaic_0001>

<llo_original>
// kernel: naec_with_fdaf_forward.1
$region0: #{naec_with_fdaf_forward.1}
  #allocation0 [shape = 'u32[]', space=smem, size = 0x4, offset = 0x4, fixed_abs, tag = 'smem constant byte address 0x4 - core index']
  #allocation1 [shape = 'u32[144,128]{1,0:T(1,128)}', space=vmem, size = 0x12000, scoped, tag = 'internal scratch']
  %s0 = inlined_call_operand.vmem [shape: f32[2,16,16], index: 0, kind: input, shape index: {}]
  %s1 = inlined_call_operand.vmem [shape: f32[136,128], index: 1, kind: input, shape index: {}]
  %s2 = inlined_call_operand.vmem [shape: f32[96,128], index: 2, kind: input, shape index: {}]
  %s3 = inlined_call_operand.vmem [shape: f32[2,9,8], index: 3, kind: output, shape index: {}]
  %s4 = sld [smem:[#allocation0]]
  $region45: #{naec_with_fdaf_forward.1} parent=0
    _
  %s6 = ssub.s32 1, %s4
  %s7 = scalar_select 0, %s6, %s4
  loop: start=0, step=1, limit=4
  $region2: #{naec_with_fdaf_forward.1} parent=0 // loop_pre_header
    _
  $region3: #{naec_with_fdaf_forward.1} parent=0 // loop_header
    %s9 = sphi 0, %s13
    %p10 = scmp.ge.s32.totalorder %s9, 4
    %s19 = sphi 0, %s21
    %s22 = sphi 0, %s19
    %s23 = sphi 0, %s22
    %s39 = sphi 0, %s23
    %s43 = sphi 0, %s43
    %s45 = sphi 0, %s43
    %s46 = sphi 0, %s45
    %s60 = sphi 0, %s46
    %s64 = sphi 0, %s64
    %s66 = sphi 0, %s64
    %s67 = sphi 0, %s66
    %s81 = sphi 0, %s67
    %s87 = sphi 0, %s89
    %s90 = sphi 0, %s87
    %s91 = sphi 0, %s90
    %s107 = sphi 0, %s91
  $region4: #{naec_with_fdaf_forward.1} parent=0 // loop_header_branch
    %12 = sbr.rel (%p10) target = $region8
  $region5: #{naec_with_fdaf_forward.1} parent=0 // loop_body
    %s14 = ssub.s32 %s9, 1
    %s15 = ssub.s32 %s9, 2
    %s16 = sadd.s32 %s9, 1
    %s17 = ssub.s32 %s9, %s16
    %p18 = scmp.eq.s32.totalorder %s17, 0
    %s20 = sadd.s32 %s19, 1
    %s21 = scalar_select %p18, %s19, %s20
    %p24 = pneg %p18
    %p25 = scmp.eq.s32.totalorder %s9, 1
    %p26 = por %p24, %p25
    %p27 = scmp.ne.s32.totalorder %s19, %s22
    %p28 = scmp.eq.s32.totalorder %s9, 0
    %p29 = por %p27, %p28
    %p30 = scmp.ne.s32.totalorder %s19, %s22
    %p31 = scmp.eq.s32.totalorder %s14, 1
    %p32 = por %p30, %p31
    %p33 = scmp.ne.s32.totalorder %s22, %s23
    %p34 = scmp.eq.s32.totalorder %s14, 0
    %p35 = por %p33, %p34
    %p36 = scmp.ne.s32.totalorder %s22, %s23
    %p37 = scmp.eq.s32.totalorder %s15, 1
    %p38 = por %p36, %p37
    %p40 = scmp.ne.s32.totalorder %s23, %s39
    %p41 = scmp.eq.s32.totalorder %s15, 0
    %p42 = por %p40, %p41
    %s44 = sadd.s32 %s43, 1
    %p47 = scmp.eq.s32.totalorder %s9, 1
    %p48 = scmp.ne.s32.totalorder %s43, %s45
    %p49 = scmp.eq.s32.totalorder %s9, 0
    %p50 = por %p48, %p49
    %p51 = scmp.ne.s32.totalorder %s43, %s45
    %p52 = scmp.eq.s32.totalorder %s14, 1
    %p53 = por %p51, %p52
    %p54 = scmp.ne.s32.totalorder %s45, %s46
    %p55 = scmp.eq.s32.totalorder %s14, 0
    %p56 = por %p54, %p55
    %p57 = scmp.ne.s32.totalorder %s45, %s46
    %p58 = scmp.eq.s32.totalorder %s15, 1
    %p59 = por %p57, %p58
    %p61 = scmp.ne.s32.totalorder %s46, %s60
    %p62 = scmp.eq.s32.totalorder %s15, 0
    %p63 = por %p61, %p62
    %s65 = sadd.s32 %s64, 1
    %p68 = scmp.eq.s32.totalorder %s9, 1
    %p69 = scmp.ne.s32.totalorder %s64, %s66
    %p70 = scmp.eq.s32.totalorder %s9, 0
    %p71 = por %p69, %p70
    %p72 = scmp.ne.s32.totalorder %s64, %s66
    %p73 = scmp.eq.s32.totalorder %s14, 1
    %p74 = por %p72, %p73
    %p75 = scmp.ne.s32.totalorder %s66, %s67
    %p76 = scmp.eq.s32.totalorder %s14, 0
    %p77 = por %p75, %p76
    %p78 = scmp.ne.s32.totalorder %s66, %s67
    %p79 = scmp.eq.s32.totalorder %s15, 1
    %p80 = por %p78, %p79
    %p82 = scmp.ne.s32.totalorder %s67, %s81
    %p83 = scmp.eq.s32.totalorder %s15, 0
    %p84 = por %p82, %p83
    %s85 = ssub.s32 %s9, %s16
    %p86 = scmp.eq.s32.totalorder %s85, 0
    %s88 = sadd.s32 %s87, 1
    %s89 = scalar_select %p86, %s87, %s88
    %p92 = pneg %p86
    %p93 = scmp.eq.s32.totalorder %s9, 1
    %p94 = por %p92, %p93
    %p95 = scmp.ne.s32.totalorder %s87, %s90
    %p96 = scmp.eq.s32.totalorder %s9, 0
    %p97 = por %p95, %p96
    %p98 = scmp.ne.s32.totalorder %s87, %s90
    %p99 = scmp.eq.s32.totalorder %s14, 1
    %p100 = por %p98, %p99
    %p101 = scmp.ne.s32.totalorder %s90, %s91
    %p102 = scmp.eq.s32.totalorder %s14, 0
    %p103 = por %p101, %p102
    %p104 = scmp.ne.s32.totalorder %s90, %s91
    %p105 = scmp.eq.s32.totalorder %s15, 1
    %p106 = por %p104, %p105
    %p108 = scmp.ne.s32.totalorder %s91, %s107
    %p109 = scmp.eq.s32.totalorder %s15, 0
    %p110 = por %p108, %p109
    %p111 = scmp.le.s32.totalorder 1, %s9
    %p112 = scmp.lt.s32.totalorder %s9, 3
    %p113 = pnand %p111, %p112
    %p114 = pneg %p113
    // Predicated region
    $region9: #{naec_with_fdaf_forward.1} parent=5 // pred_check
      _
    $region10: #{naec_with_fdaf_forward.1} parent=5 // pred_check_branch
      %116 = sbr.rel (%p113) target = $region12
    $region11: #{naec_with_fdaf_forward.1} parent=5 // pred_region
      %s117 = ssub.s32 %s9, 1
      // Predicated region
      $region13: #{naec_with_fdaf_forward.1} parent=11 // pred_check
        %p118 = pneg %p56
      $region14: #{naec_with_fdaf_forward.1} parent=11 // pred_check_branch
        %120 = sbr.rel (%p118) target = $region16
      $region15: #{naec_with_fdaf_forward.1} parent=11 // pred_region
        _
      $region16: #{naec_with_fdaf_forward.1} parent=11 // pred_fallthru
        _
      // Predicated region
      $region17: #{naec_with_fdaf_forward.1} parent=11 // pred_check
        %p121 = pneg %p77
      $region18: #{naec_with_fdaf_forward.1} parent=11 // pred_check_branch
        %123 = sbr.rel (%p121) target = $region20
      $region19: #{naec_with_fdaf_forward.1} parent=11 // pred_region
        _
      $region20: #{naec_with_fdaf_forward.1} parent=11 // pred_fallthru
        _
    $region12: #{naec_with_fdaf_forward.1} parent=5 // pred_fallthru
      _
    %p124 = scmp.lt.s32.totalorder %s9, 2
    // Predicated region
    $region21: #{naec_with_fdaf_forward.1} parent=5 // pred_check
      %p125 = pneg %p124
    $region22: #{naec_with_fdaf_forward.1} parent=5 // pred_check_branch
      %127 = sbr.rel (%p125) target = $region24
    $region23: #{naec_with_fdaf_forward.1} parent=5 // pred_region
      // Predicated region
      $region25: #{naec_with_fdaf_forward.1} parent=23 // pred_check
        %p128 = pneg %p29
      $region26: #{naec_with_fdaf_forward.1} parent=23 // pred_check_branch
        %130 = sbr.rel (%p128) target = $region28
      $region27: #{naec_with_fdaf_forward.1} parent=23 // pred_region
        %p131 = scmp.lt.s32.totalorder %s9, 1
        %s132 = scalar_select %p131, %s9, 1
        %s133 = smul.addr %s132, 2
        %s134 = smul.addr %s133, 8
        %s135 = scalar_lea.vmem %s0, %s134
      $region28: #{naec_with_fdaf_forward.1} parent=23 // pred_fallthru
        _
    $region24: #{naec_with_fdaf_forward.1} parent=5 // pred_fallthru
      _
    %p136 = scmp.le.s32.totalorder 1, %s9
    %p137 = scmp.lt.s32.totalorder %s9, 3
    %p138 = pnand %p136, %p137
    %p139 = pneg %p138
    // Predicated region
    $region29: #{naec_with_fdaf_forward.1} parent=5 // pred_check
      _
    $region30: #{naec_with_fdaf_forward.1} parent=5 // pred_check_branch
      %141 = sbr.rel (%p138) target = $region32
    $region31: #{naec_with_fdaf_forward.1} parent=5 // pred_region
      %s142 = ssub.s32 %s9, 1
      %p143 = scmp.lt.s32.totalorder %s14, 1
      %s144 = scalar_select %p143, %s14, 1
      %s145 = smul.addr %s144, 2
      %s146 = smul.addr %s145, 8
      %s147 = scalar_lea.vmem %s0, %s146
      %p148 = pneg %p35
      %p149 = pneg %p32
      %p150 = pneg %p56
      %p151 = pneg %p53
      %p152 = pneg %p77
      %p153 = pneg %p74
      %p154 = pneg %p103
      %p155 = pneg %p100
      %p156 = scmp.lt.s32.totalorder %s14, 1
      %s157 = scalar_select %p156, %s14, 1
      %s158 = smul.addr %s157, 2
      %s159 = smul.addr %s158, 8
      %s160 = scalar_lea.vmem %s3, %s159
      %p161 = scmp.lt.s32.totalorder %s14, 1
      %s162 = scalar_select %p161, %s14, 1
      %s163 = smul.addr %s162, 2
      %s164 = smul.addr %s163, 8
      %s165 = scalar_lea.vmem %s0, %s164
      %p166 = scmp.lt.s32.totalorder %s14, 1
      %s167 = scalar_select %p166, %s14, 1
      %s168 = smul.addr %s167, 2
      %s169 = smul.addr %s168, 8
      %s170 = scalar_lea.vmem %s3, %s169
      %v171 = vld [vmem:[%s1] sm:$0xff]
      %v172 = vld [vmem:[%s1 + $0x8] sm:$0xff]
      %v173 = vld [vmem:[%s1 + $0x10] sm:$0x3]
      %v174 = vld [vmem:[%s1 + $0x18] sm:$0xff]
      %v175 = vld [vmem:[%s1 + $0x20] sm:$0xff]
      %v176 = vld [vmem:[%s1 + $0x28] sm:$0xff]
      %v177 = vld [vmem:[%s1 + $0x30] sm:$0xff]
      %v178 = vld [vmem:[%s1 + $0x38] sm:$0xff]
      %v179 = vld [vmem:[%s1 + $0x40] sm:$0xff]
      %v180 = vld [vmem:[%s1 + $0x48] sm:$0xff]
      %v181 = vld [vmem:[%s1 + $0x50] sm:$0xff]
      %v182 = vld [vmem:[%s1 + $0x58] sm:$0xff]
      %v183 = vld [vmem:[%s1 + $0x60] sm:$0xff]
      %v184 = vld [vmem:[%s1 + $0x68] sm:$0xff]
      %v185 = vld [vmem:[%s1 + $0x70] sm:$0xff]
      %v186 = vld [vmem:[%s1 + $0x78] sm:$0x1]
      %v187 = vld [vmem:[%s1 + $0x80] sm:$0x1]
      %v188 = vld [vmem:[%s2] sm:$0xff]
      %v189 = vld [vmem:[%s2 + $0x8] sm:$0xff]
      %v190 = vld [vmem:[%s2 + $0x10] sm:$0xff]
      %v191 = vld [vmem:[%s2 + $0x18] sm:$0xff]
      %v192 = vld [vmem:[%s2 + $0x20] sm:$0x3]
      %v193 = vld [vmem:[%s2 + $0x28] sm:$0xff]
      %v194 = vld [vmem:[%s2 + $0x30] sm:$0xff]
      %v195 = vld [vmem:[%s2 + $0x38] sm:$0xff]
      %v196 = vld [vmem:[%s2 + $0x40] sm:$0xff]
      %v197 = vld [vmem:[%s2 + $0x48] sm:$0x1]
      %v198 = vld [vmem:[%s2 + $0x50] sm:$0xff]
      %v199 = vld [vmem:[%s2 + $0x58] sm:$0x1]
      %v200 = vld [vmem:[%s165] sm:$0xff]
      %v201 = vld [vmem:[%s165 + $0x8] sm:$0xff]
      %vm202 = vcmask 130048
      %v204 = vsel %vm202, %v200, 0
      %v207 = vsel %vm202, %v201, 0
      %209 = vmatprep.subr.mxu0 0.0
      %210 = vmatpush1.msra.mxu0 %v188
      %211 = vmatprep.subr.mxu0 0.0
      %212 = vmatpush1.msra.mxu0 %v189
      %213 = vmatprep.subr.mxu0 0.0
      %214 = vmatpush1.msra.mxu0 0.0
      %215 = vmatprep.subr.mxu0 0.0
      %216 = vmatpush1.msra.mxu0 0.0
      %217 = vmatprep.subr.mxu0 0.0
      %218 = vmatpush1.msra.mxu0 0.0
      %219 = vmatprep.subr.mxu0 0.0
      %220 = vmatpush1.msra.mxu0 0.0
      %221 = vmatprep.subr.mxu0 0.0
      %222 = vmatpush1.msra.mxu0 0.0
      %223 = vmatprep.subr.mxu0 0.0
      %224 = vmatpush1.msra.mxu0 0.0
      %225 = vmatprep.subr.mxu0 0.0
      %226 = vmatpush1.msra.mxu0 0.0
      %227 = vmatprep.subr.mxu0 0.0
      %228 = vmatpush1.msra.mxu0 0.0
      %229 = vmatprep.subr.mxu0 0.0
      %230 = vmatpush1.msra.mxu0 0.0
      %231 = vmatprep.subr.mxu0 0.0
      %232 = vmatpush1.msra.mxu0 0.0
      %233 = vmatprep.subr.mxu0 0.0
      %234 = vmatpush1.msra.mxu0 0.0
      %235 = vmatprep.subr.mxu0 0.0
      %236 = vmatpush1.msra.mxu0 0.0
      %237 = vmatprep.subr.mxu0 0.0
      %238 = vmatpush1.msra.mxu0 0.0
      %239 = vmatprep.subr.mxu0 0.0
      %240 = vmatpush1.msra.mxu0 0.0
      %241 = vmatprep.subr.mxu0 0.0
      %242 = vmatpush1.msra.mxu0 0.0
      %243 = vmatprep.subr.mxu0 0.0
      %244 = vmatpush1.msra.mxu0 0.0
      %245 = vmatprep.subr.mxu0 0.0
      %246 = vmatpush1.msra.mxu0 0.0
      %247 = vmatprep.subr.mxu0 0.0
      %248 = vmatpush1.msra.mxu0 0.0
      %249 = vmatprep.subr.mxu0 0.0
      %250 = vmatpush1.msra.mxu0 0.0
      %251 = vmatprep.subr.mxu0 0.0
      %252 = vmatpush1.msra.mxu0 0.0
      %253 = vmatprep.subr.mxu0 0.0
      %254 = vmatpush1.msra.mxu0 0.0
      %255 = vmatprep.subr.mxu0 0.0
      %256 = vmatpush1.msra.mxu0 0.0
      %257 = vmatprep.subr.mxu0 0.0
      %258 = vmatpush1.msra.mxu0 0.0
      %259 = vmatprep.subr.mxu0 0.0
      %260 = vmatpush1.msra.mxu0 0.0
      %261 = vmatprep.subr.mxu0 0.0
      %262 = vmatpush1.msra.mxu0 0.0
      %263 = vmatprep.subr.mxu0 0.0
      %264 = vmatpush1.msra.mxu0 0.0
      %265 = vmatprep.subr.mxu0 0.0
      %266 = vmatpush1.msra.mxu0 0.0
      %267 = vmatprep.subr.mxu0 0.0
      %268 = vmatpush1.msra.mxu0 0.0
      %269 = vmatprep.subr.mxu0 0.0
      %270 = vmatpush1.msra.mxu0 0.0
      %271 = vmatprep.subr.mxu0 0.0
      %272 = vmatpush1.msra.mxu0 0.0
      %273 = vmatprep.mubr.f32.mxu0 0.0
      %274 = vmatmul.mubr.f32.gmra.mrb[0].mxu0 %v204
      %v275 = vpop.f32.mrb[0].mxu0
      %v276 = vadd.f32 0.0, %v275
      %v277 = vpop.f32.mrb[0].mxu0
      %278 = vmatprep.mubr.f32.mxu0 0.0
      %279 = vmatmul.mubr.f32.gmra.mrb[0].mxu0 %v207
      %v280 = vpop.f32.mrb[0].mxu0
      %v281 = vadd.f32 0.0, %v280
      %v282 = vpop.f32.mrb[0].mxu0
      %283 = vdwg.mxu0
      %v284 = vmul.f32 %v276, %v276
      %v285 = vmul.f32 %v281, %v281
      %288 = vrot.lane.b32.xlu0 %v284, 119
      %v289 = vpop.permute.xlu0 %288
      %290 = vrot.lane.b32.xlu0 %v285, 119
      %v291 = vpop.permute.xlu0 %290
      %v294 = vadd.f32 %v284, %v289
      %v295 = vadd.f32 %v285, %v291
      %v296 = vrsqrt.pop %v294
      %v297 = vmul.f32 %v294, %v296
      %vm298 = vcmp.eq.f32.partialorder %v294, inf
      %v299 = vsel %vm298, %v294, %v297
      %vm300 = vcmp.eq.f32.partialorder %v294, 0.0
      %v301 = vand.u32 %v294, 2147483648
      %v302 = vsel %vm300, %v301, %v299
      %v303 = vrsqrt.pop %v295
      %v304 = vmul.f32 %v295, %v303
      %vm305 = vcmp.eq.f32.partialorder %v295, inf
      %v306 = vsel %vm305, %v295, %v304
      %vm307 = vcmp.eq.f32.partialorder %v295, 0.0
      %v308 = vand.u32 %v295, 2147483648
      %v309 = vsel %vm307, %v308, %v306
      %311 = vrot.lane.b32.xlu0 %v309, 9
      %v312 = vpop.permute.xlu0 %311
      %vm314 = vcmask 72704
      %v315 = vsel %vm314, %v302, %v312
      %v316 = vlaneseq
      %v317 = vshrl.u32 %v316, 7
      %v318 = vsub.s32 0, %v317
      %v319 = vrot.slane %v186, %v318
      %vm320 = vcmask 146432
      %v322 = vsel %vm320, %v315, 0
      %vm324 = vcmask 1041408
      %v326 = vsel %vm324, %v173, 0
      %328 = vmatprep.subr.mxu0 0.0
      %329 = vmatpush1.msra.mxu0 %v171
      %330 = vmatprep.subr.mxu0 0.0
      %331 = vmatpush1.msra.mxu0 %v172
      %332 = vmatprep.subr.mxu0 0.0
      %333 = vmatpush1.msra.mxu0 %v326
      %334 = vmatprep.subr.mxu0 0.0
      %335 = vmatpush1.msra.mxu0 0.0
      %336 = vmatprep.subr.mxu0 0.0
      %337 = vmatpush1.msra.mxu0 0.0
      %338 = vmatprep.subr.mxu0 0.0
      %339 = vmatpush1.msra.mxu0 0.0
      %340 = vmatprep.subr.mxu0 0.0
      %341 = vmatpush1.msra.mxu0 0.0
      %342 = vmatprep.subr.mxu0 0.0
      %343 = vmatpush1.msra.mxu0 0.0
      %344 = vmatprep.subr.mxu0 0.0
      %345 = vmatpush1.msra.mxu0 0.0
      %346 = vmatprep.subr.mxu0 0.0
      %347 = vmatpush1.msra.mxu0 0.0
      %348 = vmatprep.subr.mxu0 0.0
      %349 = vmatpush1.msra.mxu0 0.0
      %350 = vmatprep.subr.mxu0 0.0
      %351 = vmatpush1.msra.mxu0 0.0
      %352 = vmatprep.subr.mxu0 0.0
      %353 = vmatpush1.msra.mxu0 0.0
      %354 = vmatprep.subr.mxu0 0.0
      %355 = vmatpush1.msra.mxu0 0.0
      %356 = vmatprep.subr.mxu0 0.0
      %357 = vmatpush1.msra.mxu0 0.0
      %358 = vmatprep.subr.mxu0 0.0
      %359 = vmatpush1.msra.mxu0 0.0
      %360 = vmatprep.subr.mxu0 0.0
      %361 = vmatpush1.msra.mxu0 0.0
      %362 = vmatprep.subr.mxu0 0.0
      %363 = vmatpush1.msra.mxu0 0.0
      %364 = vmatprep.subr.mxu0 0.0
      %365 = vmatpush1.msra.mxu0 0.0
      %366 = vmatprep.subr.mxu0 0.0
      %367 = vmatpush1.msra.mxu0 0.0
      %368 = vmatprep.subr.mxu0 0.0
      %369 = vmatpush1.msra.mxu0 0.0
      %370 = vmatprep.subr.mxu0 0.0
      %371 = vmatpush1.msra.mxu0 0.0
      %372 = vmatprep.subr.mxu0 0.0
      %373 = vmatpush1.msra.mxu0 0.0
      %374 = vmatprep.subr.mxu0 0.0
      %375 = vmatpush1.msra.mxu0 0.0
      %376 = vmatprep.subr.mxu0 0.0
      %377 = vmatpush1.msra.mxu0 0.0
      %378 = vmatprep.subr.mxu0 0.0
      %379 = vmatpush1.msra.mxu0 0.0
      %380 = vmatprep.subr.mxu0 0.0
      %381 = vmatpush1.msra.mxu0 0.0
      %382 = vmatprep.subr.mxu0 0.0
      %383 = vmatpush1.msra.mxu0 0.0
      %384 = vmatprep.subr.mxu0 0.0
      %385 = vmatpush1.msra.mxu0 0.0
      %386 = vmatprep.subr.mxu0 0.0
      %387 = vmatpush1.msra.mxu0 0.0
      %388 = vmatprep.subr.mxu0 0.0
      %389 = vmatpush1.msra.mxu0 0.0
      %390 = vmatprep.subr.mxu0 0.0
      %391 = vmatpush1.msra.mxu0 0.0
      %392 = vmatprep.mubr.f32.mxu0 0.0
      %393 = vmatmul.mubr.f32.gmra.mrb[0].mxu0 %v322
      %v394 = vpop.f32.mrb[0].mxu0
      %v395 = vadd.f32 %v319, %v394
      %v396 = vpop.f32.mrb[0].mxu0
      %397 = vdwg.mxu0
      %vm398 = vcmask 261120
      %v400 = vsel %vm398, 0.0, 0
      %402 = vmatprep.subr.mxu0 0.0
      %403 = vmatpush1.msra.mxu0 %v174
      %404 = vmatprep.subr.mxu0 0.0
      %405 = vmatpush1.msra.mxu0 %v175
      %406 = vmatprep.subr.mxu0 0.0
      %407 = vmatpush1.msra.mxu0 %v176
      %408 = vmatprep.subr.mxu0 0.0
      %409 = vmatpush1.msra.mxu0 %v177
      %410 = vmatprep.subr.mxu0 0.0
      %411 = vmatpush1.msra.mxu0 0.0
      %412 = vmatprep.subr.mxu0 0.0
      %413 = vmatpush1.msra.mxu0 0.0
      %414 = vmatprep.subr.mxu0 0.0
      %415 = vmatpush1.msra.mxu0 0.0
      %416 = vmatprep.subr.mxu0 0.0
      %417 = vmatpush1.msra.mxu0 0.0
      %418 = vmatprep.subr.mxu0 0.0
      %419 = vmatpush1.msra.mxu0 0.0
      %420 = vmatprep.subr.mxu0 0.0
      %421 = vmatpush1.msra.mxu0 0.0
      %422 = vmatprep.subr.mxu0 0.0
      %423 = vmatpush1.msra.mxu0 0.0
      %424 = vmatprep.subr.mxu0 0.0
      %425 = vmatpush1.msra.mxu0 0.0
      %426 = vmatprep.subr.mxu0 0.0
      %427 = vmatpush1.msra.mxu0 0.0
      %428 = vmatprep.subr.mxu0 0.0
      %429 = vmatpush1.msra.mxu0 0.0
      %430 = vmatprep.subr.mxu0 0.0
      %431 = vmatpush1.msra.mxu0 0.0
      %432 = vmatprep.subr.mxu0 0.0
      %433 = vmatpush1.msra.mxu0 0.0
      %434 = vmatprep.subr.mxu0 0.0
      %435 = vmatpush1.msra.mxu0 0.0
      %436 = vmatprep.subr.mxu0 0.0
      %437 = vmatpush1.msra.mxu0 0.0
      %438 = vmatprep.subr.mxu0 0.0
      %439 = vmatpush1.msra.mxu0 0.0
      %440 = vmatprep.subr.mxu0 0.0
      %441 = vmatpush1.msra.mxu0 0.0
      %442 = vmatprep.subr.mxu0 0.0
      %443 = vmatpush1.msra.mxu0 0.0
      %444 = vmatprep.subr.mxu0 0.0
      %445 = vmatpush1.msra.mxu0 0.0
      %446 = vmatprep.subr.mxu0 0.0
      %447 = vmatpush1.msra.mxu0 0.0
      %448 = vmatprep.subr.mxu0 0.0
      %449 = vmatpush1.msra.mxu0 0.0
      %450 = vmatprep.subr.mxu0 0.0
      %451 = vmatpush1.msra.mxu0 0.0
      %452 = vmatprep.subr.mxu0 0.0
      %453 = vmatpush1.msra.mxu0 0.0
      %454 = vmatprep.subr.mxu0 0.0
      %455 = vmatpush1.msra.mxu0 0.0
      %456 = vmatprep.subr.mxu0 0.0
      %457 = vmatpush1.msra.mxu0 0.0
      %458 = vmatprep.subr.mxu0 0.0
      %459 = vmatpush1.msra.mxu0 0.0
      %460 = vmatprep.subr.mxu0 0.0
      %461 = vmatpush1.msra.mxu0 0.0
      %462 = vmatprep.subr.mxu0 0.0
      %463 = vmatpush1.msra.mxu0 0.0
      %464 = vmatprep.subr.mxu0 0.0
      %465 = vmatpush1.msra.mxu0 0.0
      %466 = vmatprep.mubr.f32.mxu0 0.0
      %467 = vmatmul.mubr.f32.gmra.mrb[0].mxu0 %v400
      %v468 = vpop.f32.mrb[0].mxu0
      %v469 = vadd.f32 0.0, %v468
      %v470 = vpop.f32.mrb[0].mxu0
      %471 = vdwg.mxu0
      %v472 = vadd.f32 %v395, %v469
      %v473 = vxor.u32 %v472, 2147483648
      %v474 = vmul.f32 %v473, 1.442695
      %v475 = vpow.pop %v474
      %v476 = vadd.f32 %v475, 1.0
      %v477 = vrcp.pop %v476
      %v478 = vmul.f32 1.0, %v477
      %v479 = vtanh.pop %v472
      %v480 = vmul.f32 %v478, 0.0
      %482 = vrot.lane.b32.xlu0 %v479, 64
      %v483 = vpop.permute.xlu0 %482
      %v485 = vmul.f32 %v478, %v483
      %487 = vrot.lane.b32.xlu0 %v485, 32
      %v488 = vpop.permute.xlu0 %487
      %v490 = vadd.f32 %v480, %v488
      %v491 = vtanh.pop %v490
      %493 = vrot.lane.b32.xlu0 %v491, 64
      %v494 = vpop.permute.xlu0 %493
      %v496 = vmul.f32 %v478, %v494
      %498 = vrot.lane.b32.xlu0 %v496, 32
      %v499 = vpop.permute.xlu0 %498
      %v500 = vsel %vm398, %v499, 0
      %502 = vmatprep.subr.mxu0 0.0
      %503 = vmatpush1.msra.mxu0 %v174
      %504 = vmatprep.subr.mxu0 0.0
      %505 = vmatpush1.msra.mxu0 %v175
      %506 = vmatprep.subr.mxu0 0.0
      %507 = vmatpush1.msra.mxu0 %v176
      %508 = vmatprep.subr.mxu0 0.0
      %509 = vmatpush1.msra.mxu0 %v177
      %510 = vmatprep.subr.mxu0 0.0
      %511 = vmatpush1.msra.mxu0 0.0
      %512 = vmatprep.subr.mxu0 0.0
      %513 = vmatpush1.msra.mxu0 0.0
      %514 = vmatprep.subr.mxu0 0.0
      %515 = vmatpush1.msra.mxu0 0.0
      %516 = vmatprep.subr.mxu0 0.0
      %517 = vmatpush1.msra.mxu0 0.0
      %518 = vmatprep.subr.mxu0 0.0
      %519 = vmatpush1.msra.mxu0 0.0
      %520 = vmatprep.subr.mxu0 0.0
      %521 = vmatpush1.msra.mxu0 0.0
      %522 = vmatprep.subr.mxu0 0.0
      %523 = vmatpush1.msra.mxu0 0.0
      %524 = vmatprep.subr.mxu0 0.0
      %525 = vmatpush1.msra.mxu0 0.0
      %526 = vmatprep.subr.mxu0 0.0
      %527 = vmatpush1.msra.mxu0 0.0
      %528 = vmatprep.subr.mxu0 0.0
      %529 = vmatpush1.msra.mxu0 0.0
      %530 = vmatprep.subr.mxu0 0.0
      %531 = vmatpush1.msra.mxu0 0.0
      %532 = vmatprep.subr.mxu0 0.0
      %533 = vmatpush1.msra.mxu0 0.0
      %534 = vmatprep.subr.mxu0 0.0
      %535 = vmatpush1.msra.mxu0 0.0
      %536 = vmatprep.subr.mxu0 0.0
      %537 = vmatpush1.msra.mxu0 0.0
      %538 = vmatprep.subr.mxu0 0.0
      %539 = vmatpush1.msra.mxu0 0.0
      %540 = vmatprep.subr.mxu0 0.0
      %541 = vmatpush1.msra.mxu0 0.0
      %542 = vmatprep.subr.mxu0 0.0
      %543 = vmatpush1.msra.mxu0 0.0
      %544 = vmatprep.subr.mxu0 0.0
      %545 = vmatpush1.msra.mxu0 0.0
      %546 = vmatprep.subr.mxu0 0.0
      %547 = vmatpush1.msra.mxu0 0.0
      %548 = vmatprep.subr.mxu0 0.0
      %549 = vmatpush1.msra.mxu0 0.0
      %550 = vmatprep.subr.mxu0 0.0
      %551 = vmatpush1.msra.mxu0 0.0
      %552 = vmatprep.subr.mxu0 0.0
      %553 = vmatpush1.msra.mxu0 0.0
      %554 = vmatprep.subr.mxu0 0.0
      %555 = vmatpush1.msra.mxu0 0.0
      %556 = vmatprep.subr.mxu0 0.0
      %557 = vmatpush1.msra.mxu0 0.0
      %558 = vmatprep.subr.mxu0 0.0
      %559 = vmatpush1.msra.mxu0 0.0
      %560 = vmatprep.subr.mxu0 0.0
      %561 = vmatpush1.msra.mxu0 0.0
      %562 = vmatprep.subr.mxu0 0.0
      %563 = vmatpush1.msra.mxu0 0.0
      %564 = vmatprep.subr.mxu0 0.0
      %565 = vmatpush1.msra.mxu0 0.0
      %566 = vmatprep.mubr.f32.mxu0 0.0
      %567 = vmatmul.mubr.f32.gmra.mrb[0].mxu0 %v500
      %v568 = vpop.f32.mrb[0].mxu0
      %v569 = vadd.f32 0.0, %v568
      %v570 = vpop.f32.mrb[0].mxu0
      %571 = vdwg.mxu0
      %v573 = vrot.slane %v569, 7
      %v575 = vadd.f32 %v395, %v573
      %v576 = vxor.u32 %v575, 2147483648
      %v577 = vmul.f32 %v576, 1.442695
      %v578 = vpow.pop %v577
      %v579 = vadd.f32 %v578, 1.0
      %v580 = vrcp.pop %v579
      %v581 = vmul.f32 1.0, %v580
      %v582 = vtanh.pop %v575
      %v584 = vrot.slane %v490, 7
      %v586 = vmul.f32 %v581, %v584
      %588 = vrot.lane.b32.xlu0 %v582, 64
      %v589 = vpop.permute.xlu0 %588
      %v591 = vmul.f32 %v581, %v589
      %593 = vrot.lane.b32.xlu0 %v591, 32
      %v594 = vpop.permute.xlu0 %593
      %v596 = vadd.f32 %v586, %v594
      %v597 = vtanh.pop %v596
      %599 = vrot.lane.b32.xlu0 %v597, 64
      %v600 = vpop.permute.xlu0 %599
      %v602 = vmul.f32 %v581, %v600
      %v604 = vrot.slane %v602, 1
      %605 = vrot.lane.b32.xlu0 %v604, 32
      %v606 = vpop.permute.xlu0 %605
      %v607 = vsel %vm398, %v606, 0
      %609 = vmatprep.subr.mxu0 0.0
      %610 = vmatpush1.msra.mxu0 %v174
      %611 = vmatprep.subr.mxu0 0.0
      %612 = vmatpush1.msra.mxu0 %v175
      %613 = vmatprep.subr.mxu0 0.0
      %614 = vmatpush1.msra.mxu0 %v176
      %615 = vmatprep.subr.mxu0 0.0
      %616 = vmatpush1.msra.mxu0 %v177
      %617 = vmatprep.subr.mxu0 0.0
      %618 = vmatpush1.msra.mxu0 0.0
      %619 = vmatprep.subr.mxu0 0.0
      %620 = vmatpush1.msra.mxu0 0.0
      %621 = vmatprep.subr.mxu0 0.0
      %622 = vmatpush1.msra.mxu0 0.0
      %623 = vmatprep.subr.mxu0 0.0
      %624 = vmatpush1.msra.mxu0 0.0
      %625 = vmatprep.subr.mxu0 0.0
      %626 = vmatpush1.msra.mxu0 0.0
      %627 = vmatprep.subr.mxu0 0.0
      %628 = vmatpush1.msra.mxu0 0.0
      %629 = vmatprep.subr.mxu0 0.0
      %630 = vmatpush1.msra.mxu0 0.0
      %631 = vmatprep.subr.mxu0 0.0
      %632 = vmatpush1.msra.mxu0 0.0
      %633 = vmatprep.subr.mxu0 0.0
      %634 = vmatpush1.msra.mxu0 0.0
      %635 = vmatprep.subr.mxu0 0.0
      %636 = vmatpush1.msra.mxu0 0.0
      %637 = vmatprep.subr.mxu0 0.0
      %638 = vmatpush1.msra.mxu0 0.0
      %639 = vmatprep.subr.mxu0 0.0
      %640 = vmatpush1.msra.mxu0 0.0
      %641 = vmatprep.subr.mxu0 0.0
      %642 = vmatpush1.msra.mxu0 0.0
      %643 = vmatprep.subr.mxu0 0.0
      %644 = vmatpush1.msra.mxu0 0.0
      %645 = vmatprep.subr.mxu0 0.0
      %646 = vmatpush1.msra.mxu0 0.0
      %647 = vmatprep.subr.mxu0 0.0
      %648 = vmatpush1.msra.mxu0 0.0
      %649 = vmatprep.subr.mxu0 0.0
      %650 = vmatpush1.msra.mxu0 0.0
      %651 = vmatprep.subr.mxu0 0.0
      %652 = vmatpush1.msra.mxu0 0.0
      %653 = vmatprep.subr.mxu0 0.0
      %654 = vmatpush1.msra.mxu0 0.0
      %655 = vmatprep.subr.mxu0 0.0
      %656 = vmatpush1.msra.mxu0 0.0
      %657 = vmatprep.subr.mxu0 0.0
      %658 = vmatpush1.msra.mxu0 0.0
      %659 = vmatprep.subr.mxu0 0.0
      %660 = vmatpush1.msra.mxu0 0.0
      %661 = vmatprep.subr.mxu0 0.0
      %662 = vmatpush1.msra.mxu0 0.0
      %663 = vmatprep.subr.mxu0 0.0
      %664 = vmatpush1.msra.mxu0 0.0
      %665 = vmatprep.subr.mxu0 0.0
      %666 = vmatpush1.msra.mxu0 0.0
      %667 = vmatprep.subr.mxu0 0.0
      %668 = vmatpush1.msra.mxu0 0.0
      %669 = vmatprep.subr.mxu0 0.0
      %670 = vmatpush1.msra.mxu0 0.0
      %671 = vmatprep.subr.mxu0 0.0
      %672 = vmatpush1.msra.mxu0 0.0
      %673 = vmatprep.mubr.f32.mxu0 0.0
      %674 = vmatmul.mubr.f32.gmra.mrb[0].mxu0 %v607
      %v675 = vpop.f32.mrb[0].mxu0
      %v676 = vadd.f32 0.0, %v675
      %v677 = vpop.f32.mrb[0].mxu0
      %678 = vdwg.mxu0
      %v680 = vrot.slane %v676, 6
      %v682 = vadd.f32 %v395, %v680
      %v683 = vxor.u32 %v682, 2147483648
      %v684 = vmul.f32 %v683, 1.442695
      %v685 = vpow.pop %v684
      %v686 = vadd.f32 %v685, 1.0
      %v687 = vrcp.pop %v686
      %v688 = vmul.f32 1.0, %v687
      %v689 = vtanh.pop %v682
      %v691 = vrot.slane %v596, 7
      %v693 = vmul.f32 %v688, %v691
      %695 = vrot.lane.b32.xlu0 %v689, 64
      %v696 = vpop.permute.xlu0 %695
      %v698 = vmul.f32 %v688, %v696
      %700 = vrot.lane.b32.xlu0 %v698, 32
      %v701 = vpop.permute.xlu0 %700
      %v703 = vadd.f32 %v693, %v701
      %v704 = vtanh.pop %v703
      %706 = vrot.lane.b32.xlu0 %v704, 64
      %v707 = vpop.permute.xlu0 %706
      %v709 = vmul.f32 %v688, %v707
      %v711 = vrot.slane %v709, 2
      %712 = vrot.lane.b32.xlu0 %v711, 32
      %v713 = vpop.permute.xlu0 %712
      %v714 = vsel %vm398, %v713, 0
      %716 = vmatprep.subr.mxu0 0.0
      %717 = vmatpush1.msra.mxu0 %v174
      %718 = vmatprep.subr.mxu0 0.0
      %719 = vmatpush1.msra.mxu0 %v175
      %720 = vmatprep.subr.mxu0 0.0
      %721 = vmatpush1.msra.mxu0 %v176
      %722 = vmatprep.subr.mxu0 0.0
      %723 = vmatpush1.msra.mxu0 %v177
      %724 = vmatprep.subr.mxu0 0.0
      %725 = vmatpush1.msra.mxu0 0.0
      %726 = vmatprep.subr.mxu0 0.0
      %727 = vmatpush1.msra.mxu0 0.0
      %728 = vmatprep.subr.mxu0 0.0
      %729 = vmatpush1.msra.mxu0 0.0
      %730 = vmatprep.subr.mxu0 0.0
      %731 = vmatpush1.msra.mxu0 0.0
      %732 = vmatprep.subr.mxu0 0.0
      %733 = vmatpush1.msra.mxu0 0.0
      %734 = vmatprep.subr.mxu0 0.0
      %735 = vmatpush1.msra.mxu0 0.0
      %736 = vmatprep.subr.mxu0 0.0
      %737 = vmatpush1.msra.mxu0 0.0
      %738 = vmatprep.subr.mxu0 0.0
      %739 = vmatpush1.msra.mxu0 0.0
      %740 = vmatprep.subr.mxu0 0.0
      %741 = vmatpush1.msra.mxu0 0.0
      %742 = vmatprep.subr.mxu0 0.0
      %743 = vmatpush1.msra.mxu0 0.0
      %744 = vmatprep.subr.mxu0 0.0
      %745 = vmatpush1.msra.mxu0 0.0
      %746 = vmatprep.subr.mxu0 0.0
      %747 = vmatpush1.msra.mxu0 0.0
      %748 = vmatprep.subr.mxu0 0.0
      %749 = vmatpush1.msra.mxu0 0.0
      %750 = vmatprep.subr.mxu0 0.0
      %751 = vmatpush1.msra.mxu0 0.0
      %752 = vmatprep.subr.mxu0 0.0
      %753 = vmatpush1.msra.mxu0 0.0
      %754 = vmatprep.subr.mxu0 0.0
      %755 = vmatpush1.msra.mxu0 0.0
      %756 = vmatprep.subr.mxu0 0.0
      %757 = vmatpush1.msra.mxu0 0.0
      %758 = vmatprep.subr.mxu0 0.0
      %759 = vmatpush1.msra.mxu0 0.0
      %760 = vmatprep.subr.mxu0 0.0
      %761 = vmatpush1.msra.mxu0 0.0
      %762 = vmatprep.subr.mxu0 0.0
      %763 = vmatpush1.msra.mxu0 0.0
      %764 = vmatprep.subr.mxu0 0.0
      %765 = vmatpush1.msra.mxu0 0.0
      %766 = vmatprep.subr.mxu0 0.0
      %767 = vmatpush1.msra.mxu0 0.0
      %768 = vmatprep.subr.mxu0 0.0
      %769 = vmatpush1.msra.mxu0 0.0
      %770 = vmatprep.subr.mxu0 0.0
      %771 = vmatpush1.msra.mxu0 0.0
      %772 = vmatprep.subr.mxu0 0.0
      %773 = vmatpush1.msra.mxu0 0.0
      %774 = vmatprep.subr.mxu0 0.0
      %775 = vmatpush1.msra.mxu0 0.0
      %776 = vmatprep.subr.mxu0 0.0
      %777 = vmatpush1.msra.mxu0 0.0
      %778 = vmatprep.subr.mxu0 0.0
      %779 = vmatpush1.msra.mxu0 0.0
      %780 = vmatprep.mubr.f32.mxu0 0.0
      %781 = vmatmul.mubr.f32.gmra.mrb[0].mxu0 %v714
      %v782 = vpop.f32.mrb[0].mxu0
      %v783 = vadd.f32 0.0, %v782
      %v784 = vpop.f32.mrb[0].mxu0
      %785 = vdwg.mxu0
      %v787 = vrot.slane %v783, 5
      %v789 = vadd.f32 %v395, %v787
      %v790 = vxor.u32 %v789, 2147483648
      %v791 = vmul.f32 %v790, 1.442695
      %v792 = vpow.pop %v791
      %v793 = vadd.f32 %v792, 1.0
      %v794 = vrcp.pop %v793
      %v795 = vmul.f32 1.0, %v794
      %v796 = vtanh.pop %v789
      %v798 = vrot.slane %v703, 7
      %v800 = vmul.f32 %v795, %v798
      %802 = vrot.lane.b32.xlu0 %v796, 64
      %v803 = vpop.permute.xlu0 %802
      %v805 = vmul.f32 %v795, %v803
      %807 = vrot.lane.b32.xlu0 %v805, 32
      %v808 = vpop.permute.xlu0 %807
      %v810 = vadd.f32 %v800, %v808
      %v811 = vtanh.pop %v810
      %813 = vrot.lane.b32.xlu0 %v811, 64
      %v814 = vpop.permute.xlu0 %813
      %v816 = vmul.f32 %v795, %v814
      %v818 = vrot.slane %v816, 3
      %819 = vrot.lane.b32.xlu0 %v818, 32
      %v820 = vpop.permute.xlu0 %819
      %v821 = vsel %vm398, %v820, 0
      %823 = vmatprep.subr.mxu0 0.0
      %824 = vmatpush1.msra.mxu0 %v174
      %825 = vmatprep.subr.mxu0 0.0
      %826 = vmatpush1.msra.mxu0 %v175
      %827 = vmatprep.subr.mxu0 0.0
      %828 = vmatpush1.msra.mxu0 %v176
      %829 = vmatprep.subr.mxu0 0.0
      %830 = vmatpush1.msra.mxu0 %v177
      %831 = vmatprep.subr.mxu0 0.0
      %832 = vmatpush1.msra.mxu0 0.0
      %833 = vmatprep.subr.mxu0 0.0
      %834 = vmatpush1.msra.mxu0 0.0
      %835 = vmatprep.subr.mxu0 0.0
      %836 = vmatpush1.msra.mxu0 0.0
      %837 = vmatprep.subr.mxu0 0.0
      %838 = vmatpush1.msra.mxu0 0.0
      %839 = vmatprep.subr.mxu0 0.0
      %840 = vmatpush1.msra.mxu0 0.0
      %841 = vmatprep.subr.mxu0 0.0
      %842 = vmatpush1.msra.mxu0 0.0
      %843 = vmatprep.subr.mxu0 0.0
      %844 = vmatpush1.msra.mxu0 0.0
      %845 = vmatprep.subr.mxu0 0.0
      %846 = vmatpush1.msra.mxu0 0.0
      %847 = vmatprep.subr.mxu0 0.0
      %848 = vmatpush1.msra.mxu0 0.0
      %849 = vmatprep.subr.mxu0 0.0
      %850 = vmatpush1.msra.mxu0 0.0
      %851 = vmatprep.subr.mxu0 0.0
      %852 = vmatpush1.msra.mxu0 0.0
      %853 = vmatprep.subr.mxu0 0.0
      %854 = vmatpush1.msra.mxu0 0.0
      %855 = vmatprep.subr.mxu0 0.0
      %856 = vmatpush1.msra.mxu0 0.0
      %857 = vmatprep.subr.mxu0 0.0
      %858 = vmatpush1.msra.mxu0 0.0
      %859 = vmatprep.subr.mxu0 0.0
      %860 = vmatpush1.msra.mxu0 0.0
      %861 = vmatprep.subr.mxu0 0.0
      %862 = vmatpush1.msra.mxu0 0.0
      %863 = vmatprep.subr.mxu0 0.0
      %864 = vmatpush1.msra.mxu0 0.0
      %865 = vmatprep.subr.mxu0 0.0
      %866 = vmatpush1.msra.mxu0 0.0
      %867 = vmatprep.subr.mxu0 0.0
      %868 = vmatpush1.msra.mxu0 0.0
      %869 = vmatprep.subr.mxu0 0.0
      %870 = vmatpush1.msra.mxu0 0.0
      %871 = vmatprep.subr.mxu0 0.0
      %872 = vmatpush1.msra.mxu0 0.0
      %873 = vmatprep.subr.mxu0 0.0
      %874 = vmatpush1.msra.mxu0 0.0
      %875 = vmatprep.subr.mxu0 0.0
      %876 = vmatpush1.msra.mxu0 0.0
      %877 = vmatprep.subr.mxu0 0.0
      %878 = vmatpush1.msra.mxu0 0.0
      %879 = vmatprep.subr.mxu0 0.0
      %880 = vmatpush1.msra.mxu0 0.0
      %881 = vmatprep.subr.mxu0 0.0
      %882 = vmatpush1.msra.mxu0 0.0
      %883 = vmatprep.subr.mxu0 0.0
      %884 = vmatpush1.msra.mxu0 0.0
      %885 = vmatprep.subr.mxu0 0.0
      %886 = vmatpush1.msra.mxu0 0.0
      %887 = vmatprep.mubr.f32.mxu0 0.0
      %888 = vmatmul.mubr.f32.gmra.mrb[0].mxu0 %v821
      %v889 = vpop.f32.mrb[0].mxu0
      %v890 = vadd.f32 0.0, %v889
      %v891 = vpop.f32.mrb[0].mxu0
      %892 = vdwg.mxu0
      %v894 = vrot.slane %v890, 4
      %v896 = vadd.f32 %v395, %v894
      %v897 = vxor.u32 %v896, 2147483648
      %v898 = vmul.f32 %v897, 1.442695
      %v899 = vpow.pop %v898
      %v900 = vadd.f32 %v899, 1.0
      %v901 = vrcp.pop %v900
      %v902 = vmul.f32 1.0, %v901
      %v903 = vtanh.pop %v896
      %v905 = vrot.slane %v810, 7
      %v907 = vmul.f32 %v902, %v905
      %909 = vrot.lane.b32.xlu0 %v903, 64
      %v910 = vpop.permute.xlu0 %909
      %v912 = vmul.f32 %v902, %v910
      %914 = vrot.lane.b32.xlu0 %v912, 32
      %v915 = vpop.permute.xlu0 %914
      %v917 = vadd.f32 %v907, %v915
      %v918 = vtanh.pop %v917
      %920 = vrot.lane.b32.xlu0 %v918, 64
      %v921 = vpop.permute.xlu0 %920
      %v923 = vmul.f32 %v902, %v921
      %v925 = vrot.slane %v923, 4
      %926 = vrot.lane.b32.xlu0 %v925, 32
      %v927 = vpop.permute.xlu0 %926
      %v928 = vsel %vm398, %v927, 0
      %930 = vmatprep.subr.mxu0 0.0
      %931 = vmatpush1.msra.mxu0 %v174
      %932 = vmatprep.subr.mxu0 0.0
      %933 = vmatpush1.msra.mxu0 %v175
      %934 = vmatprep.subr.mxu0 0.0
      %935 = vmatpush1.msra.mxu0 %v176
      %936 = vmatprep.subr.mxu0 0.0
      %937 = vmatpush1.msra.mxu0 %v177
      %938 = vmatprep.subr.mxu0 0.0
      %939 = vmatpush1.msra.mxu0 0.0
      %940 = vmatprep.subr.mxu0 0.0
      %941 = vmatpush1.msra.mxu0 0.0
      %942 = vmatprep.subr.mxu0 0.0
      %943 = vmatpush1.msra.mxu0 0.0
      %944 = vmatprep.subr.mxu0 0.0
      %945 = vmatpush1.msra.mxu0 0.0
      %946 = vmatprep.subr.mxu0 0.0
      %947 = vmatpush1.msra.mxu0 0.0
      %948 = vmatprep.subr.mxu0 0.0
      %949 = vmatpush1.msra.mxu0 0.0
      %950 = vmatprep.subr.mxu0 0.0
      %951 = vmatpush1.msra.mxu0 0.0
      %952 = vmatprep.subr.mxu0 0.0
      %953 = vmatpush1.msra.mxu0 0.0
      %954 = vmatprep.subr.mxu0 0.0
      %955 = vmatpush1.msra.mxu0 0.0
      %956 = vmatprep.subr.mxu0 0.0
      %957 = vmatpush1.msra.mxu0 0.0
      %958 = vmatprep.subr.mxu0 0.0
      %959 = vmatpush1.msra.mxu0 0.0
      %960 = vmatprep.subr.mxu0 0.0
      %961 = vmatpush1.msra.mxu0 0.0
      %962 = vmatprep.subr.mxu0 0.0
      %963 = vmatpush1.msra.mxu0 0.0
      %964 = vmatprep.subr.mxu0 0.0
      %965 = vmatpush1.msra.mxu0 0.0
      %966 = vmatprep.subr.mxu0 0.0
      %967 = vmatpush1.msra.mxu0 0.0
      %968 = vmatprep.subr.mxu0 0.0
      %969 = vmatpush1.msra.mxu0 0.0
      %970 = vmatprep.subr.mxu0 0.0
      %971 = vmatpush1.msra.mxu0 0.0
      %972 = vmatprep.subr.mxu0 0.0
      %973 = vmatpush1.msra.mxu0 0.0
      %974 = vmatprep.subr.mxu0 0.0
      %975 = vmatpush1.msra.mxu0 0.0
      %976 = vmatprep.subr.mxu0 0.0
      %977 = vmatpush1.msra.mxu0 0.0
      %978 = vmatprep.subr.mxu0 0.0
      %979 = vmatpush1.msra.mxu0 0.0
      %980 = vmatprep.subr.mxu0 0.0
      %981 = vmatpush1.msra.mxu0 0.0
      %982 = vmatprep.subr.mxu0 0.0
      %983 = vmatpush1.msra.mxu0 0.0
      %984 = vmatprep.subr.mxu0 0.0
      %985 = vmatpush1.msra.mxu0 0.0
      %986 = vmatprep.subr.mxu0 0.0
      %987 = vmatpush1.msra.mxu0 0.0
      %988 = vmatprep.subr.mxu0 0.0
      %989 = vmatpush1.msra.mxu0 0.0
      %990 = vmatprep.subr.mxu0 0.0
      %991 = vmatpush1.msra.mxu0 0.0
      %992 = vmatprep.subr.mxu0 0.0
      %993 = vmatpush1.msra.mxu0 0.0
      %994 = vmatprep.mubr.f32.mxu0 0.0
      %995 = vmatmul.mubr.f32.gmra.mrb[0].mxu0 %v928
      %v996 = vpop.f32.mrb[0].mxu0
      %v997 = vadd.f32 0.0, %v996
      %v998 = vpop.f32.mrb[0].mxu0
      %999 = vdwg.mxu0
      %v1001 = vrot.slane %v997, 3
      %v1003 = vadd.f32 %v395, %v1001
      %v1004 = vxor.u32 %v1003, 2147483648
      %v1005 = vmul.f32 %v1004, 1.442695
      %v1006 = vpow.pop %v1005
      %v1007 = vadd.f32 %v1006, 1.0
      %v1008 = vrcp.pop %v1007
      %v1009 = vmul.f32 1.0, %v1008
      %v1010 = vtanh.pop %v1003
      %v1012 = vrot.slane %v917, 7
      %v1014 = vmul.f32 %v1009, %v1012
      %1016 = vrot.lane.b32.xlu0 %v1010, 64
      %v1017 = vpop.permute.xlu0 %1016
      %v1019 = vmul.f32 %v1009, %v1017
      %1021 = vrot.lane.b32.xlu0 %v1019, 32
      %v1022 = vpop.permute.xlu0 %1021
      %v1024 = vadd.f32 %v1014, %v1022
      %v1025 = vtanh.pop %v1024
      %1027 = vrot.lane.b32.xlu0 %v1025, 64
      %v1028 = vpop.permute.xlu0 %1027
      %v1030 = vmul.f32 %v1009, %v1028
      %v1032 = vrot.slane %v1030, 5
      %1033 = vrot.lane.b32.xlu0 %v1032, 32
      %v1034 = vpop.permute.xlu0 %1033
      %v1035 = vsel %vm398, %v1034, 0
      %1037 = vmatprep.subr.mxu0 0.0
      %1038 = vmatpush1.msra.mxu0 %v174
      %1039 = vmatprep.subr.mxu0 0.0
      %1040 = vmatpush1.msra.mxu0 %v175
      %1041 = vmatprep.subr.mxu0 0.0
      %1042 = vmatpush1.msra.mxu0 %v176
      %1043 = vmatprep.subr.mxu0 0.0
      %1044 = vmatpush1.msra.mxu0 %v177
      %1045 = vmatprep.subr.mxu0 0.0
      %1046 = vmatpush1.msra.mxu0 0.0
      %1047 = vmatprep.subr.mxu0 0.0
      %1048 = vmatpush1.msra.mxu0 0.0
      %1049 = vmatprep.subr.mxu0 0.0
      %1050 = vmatpush1.msra.mxu0 0.0
      %1051 = vmatprep.subr.mxu0 0.0
      %1052 = vmatpush1.msra.mxu0 0.0
      %1053 = vmatprep.subr.mxu0 0.0
      %1054 = vmatpush1.msra.mxu0 0.0
      %1055 = vmatprep.subr.mxu0 0.0
      %1056 = vmatpush1.msra.mxu0 0.0
      %1057 = vmatprep.subr.mxu0 0.0
      %1058 = vmatpush1.msra.mxu0 0.0
      %1059 = vmatprep.subr.mxu0 0.0
      %1060 = vmatpush1.msra.mxu0 0.0
      %1061 = vmatprep.subr.mxu0 0.0
      %1062 = vmatpush1.msra.mxu0 0.0
      %1063 = vmatprep.subr.mxu0 0.0
      %1064 = vmatpush1.msra.mxu0 0.0
      %1065 = vmatprep.subr.mxu0 0.0
      %1066 = vmatpush1.msra.mxu0 0.0
      %1067 = vmatprep.subr.mxu0 0.0
      %1068 = vmatpush1.msra.mxu0 0.0
      %1069 = vmatprep.subr.mxu0 0.0
      %1070 = vmatpush1.msra.mxu0 0.0
      %1071 = vmatprep.subr.mxu0 0.0
      %1072 = vmatpush1.msra.mxu0 0.0
      %1073 = vmatprep.subr.mxu0 0.0
      %1074 = vmatpush1.msra.mxu0 0.0
      %1075 = vmatprep.subr.mxu0 0.0
      %1076 = vmatpush1.msra.mxu0 0.0
      %1077 = vmatprep.subr.mxu0 0.0
      %1078 = vmatpush1.msra.mxu0 0.0
      %1079 = vmatprep.subr.mxu0 0.0
      %1080 = vmatpush1.msra.mxu0 0.0
      %1081 = vmatprep.subr.mxu0 0.0
      %1082 = vmatpush1.msra.mxu0 0.0
      %1083 = vmatprep.subr.mxu0 0.0
      %1084 = vmatpush1.msra.mxu0 0.0
      %1085 = vmatprep.subr.mxu0 0.0
      %1086 = vmatpush1.msra.mxu0 0.0
      %1087 = vmatprep.subr.mxu0 0.0
      %1088 = vmatpush1.msra.mxu0 0.0
      %1089 = vmatprep.subr.mxu0 0.0
      %1090 = vmatpush1.msra.mxu0 0.0
      %1091 = vmatprep.subr.mxu0 0.0
      %1092 = vmatpush1.msra.mxu0 0.0
      %1093 = vmatprep.subr.mxu0 0.0
      %1094 = vmatpush1.msra.mxu0 0.0
      %1095 = vmatprep.subr.mxu0 0.0
      %1096 = vmatpush1.msra.mxu0 0.0
      %1097 = vmatprep.subr.mxu0 0.0
      %1098 = vmatpush1.msra.mxu0 0.0
      %1099 = vmatprep.subr.mxu0 0.0
      %1100 = vmatpush1.msra.mxu0 0.0
      %1101 = vmatprep.mubr.f32.mxu0 0.0
      %1102 = vmatmul.mubr.f32.gmra.mrb[0].mxu0 %v1035
      %v1103 = vpop.f32.mrb[0].mxu0
      %v1104 = vadd.f32 0.0, %v1103
      %v1105 = vpop.f32.mrb[0].mxu0
      %1106 = vdwg.mxu0
      %v1108 = vrot.slane %v1104, 2
      %v1110 = vadd.f32 %v395, %v1108
      %v1111 = vxor.u32 %v1110, 2147483648
      %v1112 = vmul.f32 %v1111, 1.442695
      %v1113 = vpow.pop %v1112
      %v1114 = vadd.f32 %v1113, 1.0
      %v1115 = vrcp.pop %v1114
      %v1116 = vmul.f32 1.0, %v1115
      %v1117 = vtanh.pop %v1110
      %v1119 = vrot.slane %v1024, 7
      %v1121 = vmul.f32 %v1116, %v1119
      %1123 = vrot.lane.b32.xlu0 %v1117, 64
      %v1124 = vpop.permute.xlu0 %1123
      %v1126 = vmul.f32 %v1116, %v1124
      %1128 = vrot.lane.b32.xlu0 %v1126, 32
      %v1129 = vpop.permute.xlu0 %1128
      %v1131 = vadd.f32 %v1121, %v1129
      %v1132 = vtanh.pop %v1131
      %1134 = vrot.lane.b32.xlu0 %v1132, 64
      %v1135 = vpop.permute.xlu0 %1134
      %v1137 = vmul.f32 %v1116, %v1135
      %v1139 = vrot.slane %v1137, 6
      %1140 = vrot.lane.b32.xlu0 %v1139, 32
      %v1141 = vpop.permute.xlu0 %1140
      %v1142 = vsel %vm398, %v1141, 0
      %1144 = vmatprep.subr.mxu0 0.0
      %1145 = vmatpush1.msra.mxu0 %v174
      %1146 = vmatprep.subr.mxu0 0.0
      %1147 = vmatpush1.msra.mxu0 %v175
      %1148 = vmatprep.subr.mxu0 0.0
      %1149 = vmatpush1.msra.mxu0 %v176
      %1150 = vmatprep.subr.mxu0 0.0
      %1151 = vmatpush1.msra.mxu0 %v177
      %1152 = vmatprep.subr.mxu0 0.0
      %1153 = vmatpush1.msra.mxu0 0.0
      %1154 = vmatprep.subr.mxu0 0.0
      %1155 = vmatpush1.msra.mxu0 0.0
      %1156 = vmatprep.subr.mxu0 0.0
      %1157 = vmatpush1.msra.mxu0 0.0
      %1158 = vmatprep.subr.mxu0 0.0
      %1159 = vmatpush1.msra.mxu0 0.0
      %1160 = vmatprep.subr.mxu0 0.0
      %1161 = vmatpush1.msra.mxu0 0.0
      %1162 = vmatprep.subr.mxu0 0.0
      %1163 = vmatpush1.msra.mxu0 0.0
      %1164 = vmatprep.subr.mxu0 0.0
      %1165 = vmatpush1.msra.mxu0 0.0
      %1166 = vmatprep.subr.mxu0 0.0
      %1167 = vmatpush1.msra.mxu0 0.0
      %1168 = vmatprep.subr.mxu0 0.0
      %1169 = vmatpush1.msra.mxu0 0.0
      %1170 = vmatprep.subr.mxu0 0.0
      %1171 = vmatpush1.msra.mxu0 0.0
      %1172 = vmatprep.subr.mxu0 0.0
      %1173 = vmatpush1.msra.mxu0 0.0
      %1174 = vmatprep.subr.mxu0 0.0
      %1175 = vmatpush1.msra.mxu0 0.0
      %1176 = vmatprep.subr.mxu0 0.0
      %1177 = vmatpush1.msra.mxu0 0.0
      %1178 = vmatprep.subr.mxu0 0.0
      %1179 = vmatpush1.msra.mxu0 0.0
      %1180 = vmatprep.subr.mxu0 0.0
      %1181 = vmatpush1.msra.mxu0 0.0
      %1182 = vmatprep.subr.mxu0 0.0
      %1183 = vmatpush1.msra.mxu0 0.0
      %1184 = vmatprep.subr.mxu0 0.0
      %1185 = vmatpush1.msra.mxu0 0.0
      %1186 = vmatprep.subr.mxu0 0.0
      %1187 = vmatpush1.msra.mxu0 0.0
      %1188 = vmatprep.subr.mxu0 0.0
      %1189 = vmatpush1.msra.mxu0 0.0
      %1190 = vmatprep.subr.mxu0 0.0
      %1191 = vmatpush1.msra.mxu0 0.0
      %1192 = vmatprep.subr.mxu0 0.0
      %1193 = vmatpush1.msra.mxu0 0.0
      %1194 = vmatprep.subr.mxu0 0.0
      %1195 = vmatpush1.msra.mxu0 0.0
      %1196 = vmatprep.subr.mxu0 0.0
      %1197 = vmatpush1.msra.mxu0 0.0
      %1198 = vmatprep.subr.mxu0 0.0
      %1199 = vmatpush1.msra.mxu0 0.0
      %1200 = vmatprep.subr.mxu0 0.0
      %1201 = vmatpush1.msra.mxu0 0.0
      %1202 = vmatprep.subr.mxu0 0.0
      %1203 = vmatpush1.msra.mxu0 0.0
      %1204 = vmatprep.subr.mxu0 0.0
      %1205 = vmatpush1.msra.mxu0 0.0
      %1206 = vmatprep.subr.mxu0 0.0
      %1207 = vmatpush1.msra.mxu0 0.0
      %1208 = vmatprep.mubr.f32.mxu0 0.0
      %1209 = vmatmul.mubr.f32.gmra.mrb[0].mxu0 %v1142
      %v1210 = vpop.f32.mrb[0].mxu0
      %v1211 = vadd.f32 0.0, %v1210
      %v1212 = vpop.f32.mrb[0].mxu0
      %1213 = vdwg.mxu0
      %v1215 = vrot.slane %v1211, 1
      %v1217 = vadd.f32 %v395, %v1215
      %v1218 = vxor.u32 %v1217, 2147483648
      %v1219 = vmul.f32 %v1218, 1.442695
      %v1220 = vpow.pop %v1219
      %v1221 = vadd.f32 %v1220, 1.0
      %v1222 = vrcp.pop %v1221
      %v1223 = vmul.f32 1.0, %v1222
      %v1224 = vtanh.pop %v1217
      %v1226 = vrot.slane %v1131, 7
      %v1228 = vmul.f32 %v1223, %v1226
      %1230 = vrot.lane.b32.xlu0 %v1224, 64
      %v1231 = vpop.permute.xlu0 %1230
      %v1233 = vmul.f32 %v1223, %v1231
      %1235 = vrot.lane.b32.xlu0 %v1233, 32
      %v1236 = vpop.permute.xlu0 %1235
      %v1238 = vadd.f32 %v1228, %v1236
      %v1239 = vtanh.pop %v1238
      %1241 = vrot.lane.b32.xlu0 %v1239, 64
      %v1242 = vpop.permute.xlu0 %1241
      %v1244 = vmul.f32 %v1223, %v1242
      %vm1245 = vcmask 1040384
      %v1246 = vsel %vm1245, %v496, %v602
      %v1247 = vsel %vm324, %v1246, %v709
      %vm1248 = vcmask 1042432
      %v1249 = vsel %vm1248, %v1247, %v816
      %vm1250 = vcmask 1043456
      %v1251 = vsel %vm1250, %v1249, %v923
      %vm1252 = vcmask 1044480
      %v1253 = vsel %vm1252, %v1251, %v1030
      %vm1254 = vcmask 1045504
      %v1255 = vsel %vm1254, %v1253, %v1137
      %vm1256 = vcmask 1046528
      %v1257 = vsel %vm1256, %v1255, %v1244
      %v1258 = vlaneseq
      %v1259 = vshrl.u32 %v1258, 7
      %v1260 = vsub.s32 0, %v1259
      %v1261 = vrot.slane %v187, %v1260
      %1263 = vrot.lane.b32.xlu0 %v1257, 32
      %v1264 = vpop.permute.xlu0 %1263
      %v1265 = vsel %vm398, %v1264, 0
      %1267 = vmatprep.subr.mxu0 0.0
      %1268 = vmatpush1.msra.mxu0 %v178
      %1269 = vmatprep.subr.mxu0 0.0
      %1270 = vmatpush1.msra.mxu0 %v179
      %1271 = vmatprep.subr.mxu0 0.0
      %1272 = vmatpush1.msra.mxu0 %v180
      %1273 = vmatprep.subr.mxu0 0.0
      %1274 = vmatpush1.msra.mxu0 %v181
      %1275 = vmatprep.subr.mxu0 0.0
      %1276 = vmatpush1.msra.mxu0 0.0
      %1277 = vmatprep.subr.mxu0 0.0
      %1278 = vmatpush1.msra.mxu0 0.0
      %1279 = vmatprep.subr.mxu0 0.0
      %1280 = vmatpush1.msra.mxu0 0.0
      %1281 = vmatprep.subr.mxu0 0.0
      %1282 = vmatpush1.msra.mxu0 0.0
      %1283 = vmatprep.subr.mxu0 0.0
      %1284 = vmatpush1.msra.mxu0 0.0
      %1285 = vmatprep.subr.mxu0 0.0
      %1286 = vmatpush1.msra.mxu0 0.0
      %1287 = vmatprep.subr.mxu0 0.0
      %1288 = vmatpush1.msra.mxu0 0.0
      %1289 = vmatprep.subr.mxu0 0.0
      %1290 = vmatpush1.msra.mxu0 0.0
      %1291 = vmatprep.subr.mxu0 0.0
      %1292 = vmatpush1.msra.mxu0 0.0
      %1293 = vmatprep.subr.mxu0 0.0
      %1294 = vmatpush1.msra.mxu0 0.0
      %1295 = vmatprep.subr.mxu0 0.0
      %1296 = vmatpush1.msra.mxu0 0.0
      %1297 = vmatprep.subr.mxu0 0.0
      %1298 = vmatpush1.msra.mxu0 0.0
      %1299 = vmatprep.subr.mxu0 0.0
      %1300 = vmatpush1.msra.mxu0 0.0
      %1301 = vmatprep.subr.mxu0 0.0
      %1302 = vmatpush1.msra.mxu0 0.0
      %1303 = vmatprep.subr.mxu0 0.0
      %1304 = vmatpush1.msra.mxu0 0.0
      %1305 = vmatprep.subr.mxu0 0.0
      %1306 = vmatpush1.msra.mxu0 0.0
      %1307 = vmatprep.subr.mxu0 0.0
      %1308 = vmatpush1.msra.mxu0 0.0
      %1309 = vmatprep.subr.mxu0 0.0
      %1310 = vmatpush1.msra.mxu0 0.0
      %1311 = vmatprep.subr.mxu0 0.0
      %1312 = vmatpush1.msra.mxu0 0.0
      %1313 = vmatprep.subr.mxu0 0.0
      %1314 = vmatpush1.msra.mxu0 0.0
      %1315 = vmatprep.subr.mxu0 0.0
      %1316 = vmatpush1.msra.mxu0 0.0
      %1317 = vmatprep.subr.mxu0 0.0
      %1318 = vmatpush1.msra.mxu0 0.0
      %1319 = vmatprep.subr.mxu0 0.0
      %1320 = vmatpush1.msra.mxu0 0.0
      %1321 = vmatprep.subr.mxu0 0.0
      %1322 = vmatpush1.msra.mxu0 0.0
      %1323 = vmatprep.subr.mxu0 0.0
      %1324 = vmatpush1.msra.mxu0 0.0
      %1325 = vmatprep.subr.mxu0 0.0
      %1326 = vmatpush1.msra.mxu0 0.0
      %1327 = vmatprep.subr.mxu0 0.0
      %1328 = vmatpush1.msra.mxu0 0.0
      %1329 = vmatprep.subr.mxu0 0.0
      %1330 = vmatpush1.msra.mxu0 0.0
      %1331 = vmatprep.mubr.f32.mxu0 0.0
      %1332 = vmatmul.mubr.f32.gmra.mrb[0].mxu0 %v1265
      %v1333 = vpop.f32.mrb[0].mxu0
      %v1334 = vadd.f32 %v1261, %v1333
      %v1335 = vpop.f32.mrb[0].mxu0
      %1336 = vdwg.mxu0
      %1337 = vmatprep.subr.mxu0 0.0
      %1338 = vmatpush1.msra.mxu0 %v182
      %1339 = vmatprep.subr.mxu0 0.0
      %1340 = vmatpush1.msra.mxu0 %v183
      %1341 = vmatprep.subr.mxu0 0.0
      %1342 = vmatpush1.msra.mxu0 %v184
      %1343 = vmatprep.subr.mxu0 0.0
      %1344 = vmatpush1.msra.mxu0 %v185
      %1345 = vmatprep.subr.mxu0 0.0
      %1346 = vmatpush1.msra.mxu0 0.0
      %1347 = vmatprep.subr.mxu0 0.0
      %1348 = vmatpush1.msra.mxu0 0.0
      %1349 = vmatprep.subr.mxu0 0.0
      %1350 = vmatpush1.msra.mxu0 0.0
      %1351 = vmatprep.subr.mxu0 0.0
      %1352 = vmatpush1.msra.mxu0 0.0
      %1353 = vmatprep.subr.mxu0 0.0
      %1354 = vmatpush1.msra.mxu0 0.0
      %1355 = vmatprep.subr.mxu0 0.0
      %1356 = vmatpush1.msra.mxu0 0.0
      %1357 = vmatprep.subr.mxu0 0.0
      %1358 = vmatpush1.msra.mxu0 0.0
      %1359 = vmatprep.subr.mxu0 0.0
      %1360 = vmatpush1.msra.mxu0 0.0
      %1361 = vmatprep.subr.mxu0 0.0
      %1362 = vmatpush1.msra.mxu0 0.0
      %1363 = vmatprep.subr.mxu0 0.0
      %1364 = vmatpush1.msra.mxu0 0.0
      %1365 = vmatprep.subr.mxu0 0.0
      %1366 = vmatpush1.msra.mxu0 0.0
      %1367 = vmatprep.subr.mxu0 0.0
      %1368 = vmatpush1.msra.mxu0 0.0
      %1369 = vmatprep.subr.mxu0 0.0
      %1370 = vmatpush1.msra.mxu0 0.0
      %1371 = vmatprep.subr.mxu0 0.0
      %1372 = vmatpush1.msra.mxu0 0.0
      %1373 = vmatprep.subr.mxu0 0.0
      %1374 = vmatpush1.msra.mxu0 0.0
      %1375 = vmatprep.subr.mxu0 0.0
      %1376 = vmatpush1.msra.mxu0 0.0
      %1377 = vmatprep.subr.mxu0 0.0
      %1378 = vmatpush1.msra.mxu0 0.0
      %1379 = vmatprep.subr.mxu0 0.0
      %1380 = vmatpush1.msra.mxu0 0.0
      %1381 = vmatprep.subr.mxu0 0.0
      %1382 = vmatpush1.msra.mxu0 0.0
      %1383 = vmatprep.subr.mxu0 0.0
      %1384 = vmatpush1.msra.mxu0 0.0
      %1385 = vmatprep.subr.mxu0 0.0
      %1386 = vmatpush1.msra.mxu0 0.0
      %1387 = vmatprep.subr.mxu0 0.0
      %1388 = vmatpush1.msra.mxu0 0.0
      %1389 = vmatprep.subr.mxu0 0.0
      %1390 = vmatpush1.msra.mxu0 0.0
      %1391 = vmatprep.subr.mxu0 0.0
      %1392 = vmatpush1.msra.mxu0 0.0
      %1393 = vmatprep.subr.mxu0 0.0
      %1394 = vmatpush1.msra.mxu0 0.0
      %1395 = vmatprep.subr.mxu0 0.0
      %1396 = vmatpush1.msra.mxu0 0.0
      %1397 = vmatprep.subr.mxu0 0.0
      %1398 = vmatpush1.msra.mxu0 0.0
      %1399 = vmatprep.subr.mxu0 0.0
      %1400 = vmatpush1.msra.mxu0 0.0
      %1401 = vmatprep.mubr.f32.mxu0 0.0
      %1402 = vmatmul.mubr.f32.gmra.mrb[0].mxu0 %v400
      %v1403 = vpop.f32.mrb[0].mxu0
      %v1404 = vadd.f32 0.0, %v1403
      %v1405 = vpop.f32.mrb[0].mxu0
      %1406 = vdwg.mxu0
      %v1407 = vadd.f32 %v1334, %v1404
      %v1408 = vxor.u32 %v1407, 2147483648
      %v1409 = vmul.f32 %v1408, 1.442695
      %v1410 = vpow.pop %v1409
      %v1411 = vadd.f32 %v1410, 1.0
      %v1412 = vrcp.pop %v1411
      %v1413 = vmul.f32 1.0, %v1412
      %v1414 = vtanh.pop %v1407
      %v1415 = vmul.f32 %v1413, 0.0
      %1417 = vrot.lane.b32.xlu0 %v1414, 64
      %v1418 = vpop.permute.xlu0 %1417
      %v1420 = vmul.f32 %v1413, %v1418
      %1422 = vrot.lane.b32.xlu0 %v1420, 32
      %v1423 = vpop.permute.xlu0 %1422
      %v1425 = vadd.f32 %v1415, %v1423
      %v1426 = vtanh.pop %v1425
      %1428 = vrot.lane.b32.xlu0 %v1426, 64
      %v1429 = vpop.permute.xlu0 %1428
      %v1431 = vmul.f32 %v1413, %v1429
      %1433 = vrot.lane.b32.xlu0 %v1431, 32
      %v1434 = vpop.permute.xlu0 %1433
      %v1435 = vsel %vm398, %v1434, 0
      %1437 = vmatprep.subr.mxu0 0.0
      %1438 = vmatpush1.msra.mxu0 %v182
      %1439 = vmatprep.subr.mxu0 0.0
      %1440 = vmatpush1.msra.mxu0 %v183
      %1441 = vmatprep.subr.mxu0 0.0
      %1442 = vmatpush1.msra.mxu0 %v184
      %1443 = vmatprep.subr.mxu0 0.0
      %1444 = vmatpush1.msra.mxu0 %v185
      %1445 = vmatprep.subr.mxu0 0.0
      %1446 = vmatpush1.msra.mxu0 0.0
      %1447 = vmatprep.subr.mxu0 0.0
      %1448 = vmatpush1.msra.mxu0 0.0
      %1449 = vmatprep.subr.mxu0 0.0
      %1450 = vmatpush1.msra.mxu0 0.0
      %1451 = vmatprep.subr.mxu0 0.0
      %1452 = vmatpush1.msra.mxu0 0.0
      %1453 = vmatprep.subr.mxu0 0.0
      %1454 = vmatpush1.msra.mxu0 0.0
      %1455 = vmatprep.subr.mxu0 0.0
      %1456 = vmatpush1.msra.mxu0 0.0
      %1457 = vmatprep.subr.mxu0 0.0
      %1458 = vmatpush1.msra.mxu0 0.0
      %1459 = vmatprep.subr.mxu0 0.0
      %1460 = vmatpush1.msra.mxu0 0.0
      %1461 = vmatprep.subr.mxu0 0.0
      %1462 = vmatpush1.msra.mxu0 0.0
      %1463 = vmatprep.subr.mxu0 0.0
      %1464 = vmatpush1.msra.mxu0 0.0
      %1465 = vmatprep.subr.mxu0 0.0
      %1466 = vmatpush1.msra.mxu0 0.0
      %1467 = vmatprep.subr.mxu0 0.0
      %1468 = vmatpush1.msra.mxu0 0.0
      %1469 = vmatprep.subr.mxu0 0.0
      %1470 = vmatpush1.msra.mxu0 0.0
      %1471 = vmatprep.subr.mxu0 0.0
      %1472 = vmatpush1.msra.mxu0 0.0
      %1473 = vmatprep.subr.mxu0 0.0
      %1474 = vmatpush1.msra.mxu0 0.0
      %1475 = vmatprep.subr.mxu0 0.0
      %1476 = vmatpush1.msra.mxu0 0.0
      %1477 = vmatprep.subr.mxu0 0.0
      %1478 = vmatpush1.msra.mxu0 0.0
      %1479 = vmatprep.subr.mxu0 0.0
      %1480 = vmatpush1.msra.mxu0 0.0
      %1481 = vmatprep.subr.mxu0 0.0
      %1482 = vmatpush1.msra.mxu0 0.0
      %1483 = vmatprep.subr.mxu0 0.0
      %1484 = vmatpush1.msra.mxu0 0.0
      %1485 = vmatprep.subr.mxu0 0.0
      %1486 = vmatpush1.msra.mxu0 0.0
      %1487 = vmatprep.subr.mxu0 0.0
      %1488 = vmatpush1.msra.mxu0 0.0
      %1489 = vmatprep.subr.mxu0 0.0
      %1490 = vmatpush1.msra.mxu0 0.0
      %1491 = vmatprep.subr.mxu0 0.0
      %1492 = vmatpush1.msra.mxu0 0.0
      %1493 = vmatprep.subr.mxu0 0.0
      %1494 = vmatpush1.msra.mxu0 0.0
      %1495 = vmatprep.subr.mxu0 0.0
      %1496 = vmatpush1.msra.mxu0 0.0
      %1497 = vmatprep.subr.mxu0 0.0
      %1498 = vmatpush1.msra.mxu0 0.0
      %1499 = vmatprep.subr.mxu0 0.0
      %1500 = vmatpush1.msra.mxu0 0.0
      %1501 = vmatprep.mubr.f32.mxu0 0.0
      %1502 = vmatmul.mubr.f32.gmra.mrb[0].mxu0 %v1435
      %v1503 = vpop.f32.mrb[0].mxu0
      %v1504 = vadd.f32 0.0, %v1503
      %v1505 = vpop.f32.mrb[0].mxu0
      %1506 = vdwg.mxu0
      %v1508 = vrot.slane %v1504, 7
      %v1510 = vadd.f32 %v1334, %v1508
      %v1511 = vxor.u32 %v1510, 2147483648
      %v1512 = vmul.f32 %v1511, 1.442695
      %v1513 = vpow.pop %v1512
      %v1514 = vadd.f32 %v1513, 1.0
      %v1515 = vrcp.pop %v1514
      %v1516 = vmul.f32 1.0, %v1515
      %v1517 = vtanh.pop %v1510
      %v1519 = vrot.slane %v1425, 7
      %v1521 = vmul.f32 %v1516, %v1519
      %1523 = vrot.lane.b32.xlu0 %v1517, 64
      %v1524 = vpop.permute.xlu0 %1523
      %v1526 = vmul.f32 %v1516, %v1524
      %1528 = vrot.lane.b32.xlu0 %v1526, 32
      %v1529 = vpop.permute.xlu0 %1528
      %v1531 = vadd.f32 %v1521, %v1529
      %v1532 = vtanh.pop %v1531
      %1534 = vrot.lane.b32.xlu0 %v1532, 64
      %v1535 = vpop.permute.xlu0 %1534
      %v1537 = vmul.f32 %v1516, %v1535
      %v1539 = vrot.slane %v1537, 1
      %1540 = vrot.lane.b32.xlu0 %v1539, 32
      %v1541 = vpop.permute.xlu0 %1540
      %v1542 = vsel %vm398, %v1541, 0
      %1544 = vmatprep.subr.mxu0 0.0
      %1545 = vmatpush1.msra.mxu0 %v182
      %1546 = vmatprep.subr.mxu0 0.0
      %1547 = vmatpush1.msra.mxu0 %v183
      %1548 = vmatprep.subr.mxu0 0.0
      %1549 = vmatpush1.msra.mxu0 %v184
      %1550 = vmatprep.subr.mxu0 0.0
      %1551 = vmatpush1.msra.mxu0 %v185
      %1552 = vmatprep.subr.mxu0 0.0
      %1553 = vmatpush1.msra.mxu0 0.0
      %1554 = vmatprep.subr.mxu0 0.0
      %1555 = vmatpush1.msra.mxu0 0.0
      %1556 = vmatprep.subr.mxu0 0.0
      %1557 = vmatpush1.msra.mxu0 0.0
      %1558 = vmatprep.subr.mxu0 0.0
      %1559 = vmatpush1.msra.mxu0 0.0
      %1560 = vmatprep.subr.mxu0 0.0
      %1561 = vmatpush1.msra.mxu0 0.0
      %1562 = vmatprep.subr.mxu0 0.0
      %1563 = vmatpush1.msra.mxu0 0.0
      %1564 = vmatprep.subr.mxu0 0.0
      %1565 = vmatpush1.msra.mxu0 0.0
      %1566 = vmatprep.subr.mxu0 0.0
      %1567 = vmatpush1.msra.mxu0 0.0
      %1568 = vmatprep.subr.mxu0 0.0
      %1569 = vmatpush1.msra.mxu0 0.0
      %1570 = vmatprep.subr.mxu0 0.0
      %1571 = vmatpush1.msra.mxu0 0.0
      %1572 = vmatprep.subr.mxu0 0.0
      %1573 = vmatpush1.msra.mxu0 0.0
      %1574 = vmatprep.subr.mxu0 0.0
      %1575 = vmatpush1.msra.mxu0 0.0
      %1576 = vmatprep.subr.mxu0 0.0
      %1577 = vmatpush1.msra.mxu0 0.0
      %1578 = vmatprep.subr.mxu0 0.0
      %1579 = vmatpush1.msra.mxu0 0.0
      %1580 = vmatprep.subr.mxu0 0.0
      %1581 = vmatpush1.msra.mxu0 0.0
      %1582 = vmatprep.subr.mxu0 0.0
      %1583 = vmatpush1.msra.mxu0 0.0
      %1584 = vmatprep.subr.mxu0 0.0
      %1585 = vmatpush1.msra.mxu0 0.0
      %1586 = vmatprep.subr.mxu0 0.0
      %1587 = vmatpush1.msra.mxu0 0.0
      %1588 = vmatprep.subr.mxu0 0.0
      %1589 = vmatpush1.msra.mxu0 0.0
      %1590 = vmatprep.subr.mxu0 0.0
      %1591 = vmatpush1.msra.mxu0 0.0
      %1592 = vmatprep.subr.mxu0 0.0
      %1593 = vmatpush1.msra.mxu0 0.0
      %1594 = vmatprep.subr.mxu0 0.0
      %1595 = vmatpush1.msra.mxu0 0.0
      %1596 = vmatprep.subr.mxu0 0.0
      %1597 = vmatpush1.msra.mxu0 0.0
      %1598 = vmatprep.subr.mxu0 0.0
      %1599 = vmatpush1.msra.mxu0 0.0
      %1600 = vmatprep.subr.mxu0 0.0
      %1601 = vmatpush1.msra.mxu0 0.0
      %1602 = vmatprep.subr.mxu0 0.0
      %1603 = vmatpush1.msra.mxu0 0.0
      %1604 = vmatprep.subr.mxu0 0.0
      %1605 = vmatpush1.msra.mxu0 0.0
      %1606 = vmatprep.subr.mxu0 0.0
      %1607 = vmatpush1.msra.mxu0 0.0
      %1608 = vmatprep.mubr.f32.mxu0 0.0
      %1609 = vmatmul.mubr.f32.gmra.mrb[0].mxu0 %v1542
      %v1610 = vpop.f32.mrb[0].mxu0
      %v1611 = vadd.f32 0.0, %v1610
      %v1612 = vpop.f32.mrb[0].mxu0
      %1613 = vdwg.mxu0
      %v1615 = vrot.slane %v1611, 6
      %v1617 = vadd.f32 %v1334, %v1615
      %v1618 = vxor.u32 %v1617, 2147483648
      %v1619 = vmul.f32 %v1618, 1.442695
      %v1620 = vpow.pop %v1619
      %v1621 = vadd.f32 %v1620, 1.0
      %v1622 = vrcp.pop %v1621
      %v1623 = vmul.f32 1.0, %v1622
      %v1624 = vtanh.pop %v1617
      %v1626 = vrot.slane %v1531, 7
      %v1628 = vmul.f32 %v1623, %v1626
      %1630 = vrot.lane.b32.xlu0 %v1624, 64
      %v1631 = vpop.permute.xlu0 %1630
      %v1633 = vmul.f32 %v1623, %v1631
      %1635 = vrot.lane.b32.xlu0 %v1633, 32
      %v1636 = vpop.permute.xlu0 %1635
      %v1638 = vadd.f32 %v1628, %v1636
      %v1639 = vtanh.pop %v1638
      %1641 = vrot.lane.b32.xlu0 %v1639, 64
      %v1642 = vpop.permute.xlu0 %1641
      %v1644 = vmul.f32 %v1623, %v1642
      %v1646 = vrot.slane %v1644, 2
      %1647 = vrot.lane.b32.xlu0 %v1646, 32
      %v1648 = vpop.permute.xlu0 %1647
      %v1649 = vsel %vm398, %v1648, 0
      %1651 = vmatprep.subr.mxu0 0.0
      %1652 = vmatpush1.msra.mxu0 %v182
      %1653 = vmatprep.subr.mxu0 0.0
      %1654 = vmatpush1.msra.mxu0 %v183
      %1655 = vmatprep.subr.mxu0 0.0
      %1656 = vmatpush1.msra.mxu0 %v184
      %1657 = vmatprep.subr.mxu0 0.0
      %1658 = vmatpush1.msra.mxu0 %v185
      %1659 = vmatprep.subr.mxu0 0.0
      %1660 = vmatpush1.msra.mxu0 0.0
      %1661 = vmatprep.subr.mxu0 0.0
      %1662 = vmatpush1.msra.mxu0 0.0
      %1663 = vmatprep.subr.mxu0 0.0
      %1664 = vmatpush1.msra.mxu0 0.0
      %1665 = vmatprep.subr.mxu0 0.0
      %1666 = vmatpush1.msra.mxu0 0.0
      %1667 = vmatprep.subr.mxu0 0.0
      %1668 = vmatpush1.msra.mxu0 0.0
      %1669 = vmatprep.subr.mxu0 0.0
      %1670 = vmatpush1.msra.mxu0 0.0
      %1671 = vmatprep.subr.mxu0 0.0
      %1672 = vmatpush1.msra.mxu0 0.0
      %1673 = vmatprep.subr.mxu0 0.0
      %1674 = vmatpush1.msra.mxu0 0.0
      %1675 = vmatprep.subr.mxu0 0.0
      %1676 = vmatpush1.msra.mxu0 0.0
      %1677 = vmatprep.subr.mxu0 0.0
      %1678 = vmatpush1.msra.mxu0 0.0
      %1679 = vmatprep.subr.mxu0 0.0
      %1680 = vmatpush1.msra.mxu0 0.0
      %1681 = vmatprep.subr.mxu0 0.0
      %1682 = vmatpush1.msra.mxu0 0.0
      %1683 = vmatprep.subr.mxu0 0.0
      %1684 = vmatpush1.msra.mxu0 0.0
      %1685 = vmatprep.subr.mxu0 0.0
      %1686 = vmatpush1.msra.mxu0 0.0
      %1687 = vmatprep.subr.mxu0 0.0
      %1688 = vmatpush1.msra.mxu0 0.0
      %1689 = vmatprep.subr.mxu0 0.0
      %1690 = vmatpush1.msra.mxu0 0.0
      %1691 = vmatprep.subr.mxu0 0.0
      %1692 = vmatpush1.msra.mxu0 0.0
      %1693 = vmatprep.subr.mxu0 0.0
      %1694 = vmatpush1.msra.mxu0 0.0
      %1695 = vmatprep.subr.mxu0 0.0
      %1696 = vmatpush1.msra.mxu0 0.0
      %1697 = vmatprep.subr.mxu0 0.0
      %1698 = vmatpush1.msra.mxu0 0.0
      %1699 = vmatprep.subr.mxu0 0.0
      %1700 = vmatpush1.msra.mxu0 0.0
      %1701 = vmatprep.subr.mxu0 0.0
      %1702 = vmatpush1.msra.mxu0 0.0
      %1703 = vmatprep.subr.mxu0 0.0
      %1704 = vmatpush1.msra.mxu0 0.0
      %1705 = vmatprep.subr.mxu0 0.0
      %1706 = vmatpush1.msra.mxu0 0.0
      %1707 = vmatprep.subr.mxu0 0.0
      %1708 = vmatpush1.msra.mxu0 0.0
      %1709 = vmatprep.subr.mxu0 0.0
      %1710 = vmatpush1.msra.mxu0 0.0
      %1711 = vmatprep.subr.mxu0 0.0
      %1712 = vmatpush1.msra.mxu0 0.0
      %1713 = vmatprep.subr.mxu0 0.0
      %1714 = vmatpush1.msra.mxu0 0.0
      %1715 = vmatprep.mubr.f32.mxu0 0.0
      %1716 = vmatmul.mubr.f32.gmra.mrb[0].mxu0 %v1649
      %v1717 = vpop.f32.mrb[0].mxu0
      %v1718 = vadd.f32 0.0, %v1717
      %v1719 = vpop.f32.mrb[0].mxu0
      %1720 = vdwg.mxu0
      %v1722 = vrot.slane %v1718, 5
      %v1724 = vadd.f32 %v1334, %v1722
      %v1725 = vxor.u32 %v1724, 2147483648
      %v1726 = vmul.f32 %v1725, 1.442695
      %v1727 = vpow.pop %v1726
      %v1728 = vadd.f32 %v1727, 1.0
      %v1729 = vrcp.pop %v1728
      %v1730 = vmul.f32 1.0, %v1729
      %v1731 = vtanh.pop %v1724
      %v1733 = vrot.slane %v1638, 7
      %v1735 = vmul.f32 %v1730, %v1733
      %1737 = vrot.lane.b32.xlu0 %v1731, 64
      %v1738 = vpop.permute.xlu0 %1737
      %v1740 = vmul.f32 %v1730, %v1738
      %1742 = vrot.lane.b32.xlu0 %v1740, 32
      %v1743 = vpop.permute.xlu0 %1742
      %v1745 = vadd.f32 %v1735, %v1743
      %v1746 = vtanh.pop %v1745
      %1748 = vrot.lane.b32.xlu0 %v1746, 64
      %v1749 = vpop.permute.xlu0 %1748
      %v1751 = vmul.f32 %v1730, %v1749
      %v1753 = vrot.slane %v1751, 3
      %1754 = vrot.lane.b32.xlu0 %v1753, 32
      %v1755 = vpop.permute.xlu0 %1754
      %v1756 = vsel %vm398, %v1755, 0
      %1758 = vmatprep.subr.mxu0 0.0
      %1759 = vmatpush1.msra.mxu0 %v182
      %1760 = vmatprep.subr.mxu0 0.0
      %1761 = vmatpush1.msra.mxu0 %v183
      %1762 = vmatprep.subr.mxu0 0.0
      %1763 = vmatpush1.msra.mxu0 %v184
      %1764 = vmatprep.subr.mxu0 0.0
      %1765 = vmatpush1.msra.mxu0 %v185
      %1766 = vmatprep.subr.mxu0 0.0
      %1767 = vmatpush1.msra.mxu0 0.0
      %1768 = vmatprep.subr.mxu0 0.0
      %1769 = vmatpush1.msra.mxu0 0.0
      %1770 = vmatprep.subr.mxu0 0.0
      %1771 = vmatpush1.msra.mxu0 0.0
      %1772 = vmatprep.subr.mxu0 0.0
      %1773 = vmatpush1.msra.mxu0 0.0
      %1774 = vmatprep.subr.mxu0 0.0
      %1775 = vmatpush1.msra.mxu0 0.0
      %1776 = vmatprep.subr.mxu0 0.0
      %1777 = vmatpush1.msra.mxu0 0.0
      %1778 = vmatprep.subr.mxu0 0.0
      %1779 = vmatpush1.msra.mxu0 0.0
      %1780 = vmatprep.subr.mxu0 0.0
      %1781 = vmatpush1.msra.mxu0 0.0
      %1782 = vmatprep.subr.mxu0 0.0
      %1783 = vmatpush1.msra.mxu0 0.0
      %1784 = vmatprep.subr.mxu0 0.0
      %1785 = vmatpush1.msra.mxu0 0.0
      %1786 = vmatprep.subr.mxu0 0.0
      %1787 = vmatpush1.msra.mxu0 0.0
      %1788 = vmatprep.subr.mxu0 0.0
      %1789 = vmatpush1.msra.mxu0 0.0
      %1790 = vmatprep.subr.mxu0 0.0
      %1791 = vmatpush1.msra.mxu0 0.0
      %1792 = vmatprep.subr.mxu0 0.0
      %1793 = vmatpush1.msra.mxu0 0.0
      %1794 = vmatprep.subr.mxu0 0.0
      %1795 = vmatpush1.msra.mxu0 0.0
      %1796 = vmatprep.subr.mxu0 0.0
      %1797 = vmatpush1.msra.mxu0 0.0
      %1798 = vmatprep.subr.mxu0 0.0
      %1799 = vmatpush1.msra.mxu0 0.0
      %1800 = vmatprep.subr.mxu0 0.0
      %1801 = vmatpush1.msra.mxu0 0.0
      %1802 = vmatprep.subr.mxu0 0.0
      %1803 = vmatpush1.msra.mxu0 0.0
      %1804 = vmatprep.subr.mxu0 0.0
      %1805 = vmatpush1.msra.mxu0 0.0
      %1806 = vmatprep.subr.mxu0 0.0
      %1807 = vmatpush1.msra.mxu0 0.0
      %1808 = vmatprep.subr.mxu0 0.0
      %1809 = vmatpush1.msra.mxu0 0.0
      %1810 = vmatprep.subr.mxu0 0.0
      %1811 = vmatpush1.msra.mxu0 0.0
      %1812 = vmatprep.subr.mxu0 0.0
      %1813 = vmatpush1.msra.mxu0 0.0
      %1814 = vmatprep.subr.mxu0 0.0
      %1815 = vmatpush1.msra.mxu0 0.0
      %1816 = vmatprep.subr.mxu0 0.0
      %1817 = vmatpush1.msra.mxu0 0.0
      %1818 = vmatprep.subr.mxu0 0.0
      %1819 = vmatpush1.msra.mxu0 0.0
      %1820 = vmatprep.subr.mxu0 0.0
      %1821 = vmatpush1.msra.mxu0 0.0
      %1822 = vmatprep.mubr.f32.mxu0 0.0
      %1823 = vmatmul.mubr.f32.gmra.mrb[0].mxu0 %v1756
      %v1824 = vpop.f32.mrb[0].mxu0
      %v1825 = vadd.f32 0.0, %v1824
      %v1826 = vpop.f32.mrb[0].mxu0
      %1827 = vdwg.mxu0
      %v1829 = vrot.slane %v1825, 4
      %v1831 = vadd.f32 %v1334, %v1829
      %v1832 = vxor.u32 %v1831, 2147483648
      %v1833 = vmul.f32 %v1832, 1.442695
      %v1834 = vpow.pop %v1833
      %v1835 = vadd.f32 %v1834, 1.0
      %v1836 = vrcp.pop %v1835
      %v1837 = vmul.f32 1.0, %v1836
      %v1838 = vtanh.pop %v1831
      %v1840 = vrot.slane %v1745, 7
      %v1842 = vmul.f32 %v1837, %v1840
      %1844 = vrot.lane.b32.xlu0 %v1838, 64
      %v1845 = vpop.permute.xlu0 %1844
      %v1847 = vmul.f32 %v1837, %v1845
      %1849 = vrot.lane.b32.xlu0 %v1847, 32
      %v1850 = vpop.permute.xlu0 %1849
      %v1852 = vadd.f32 %v1842, %v1850
      %v1853 = vtanh.pop %v1852
      %1855 = vrot.lane.b32.xlu0 %v1853, 64
      %v1856 = vpop.permute.xlu0 %1855
      %v1858 = vmul.f32 %v1837, %v1856
      %v1860 = vrot.slane %v1858, 4
      %1861 = vrot.lane.b32.xlu0 %v1860, 32
      %v1862 = vpop.permute.xlu0 %1861
      %v1863 = vsel %vm398, %v1862, 0
      %1865 = vmatprep.subr.mxu0 0.0
      %1866 = vmatpush1.msra.mxu0 %v182
      %1867 = vmatprep.subr.mxu0 0.0
      %1868 = vmatpush1.msra.mxu0 %v183
      %1869 = vmatprep.subr.mxu0 0.0
      %1870 = vmatpush1.msra.mxu0 %v184
      %1871 = vmatprep.subr.mxu0 0.0
      %1872 = vmatpush1.msra.mxu0 %v185
      %1873 = vmatprep.subr.mxu0 0.0
      %1874 = vmatpush1.msra.mxu0 0.0
      %1875 = vmatprep.subr.mxu0 0.0
      %1876 = vmatpush1.msra.mxu0 0.0
      %1877 = vmatprep.subr.mxu0 0.0
      %1878 = vmatpush1.msra.mxu0 0.0
      %1879 = vmatprep.subr.mxu0 0.0
      %1880 = vmatpush1.msra.mxu0 0.0
      %1881 = vmatprep.subr.mxu0 0.0
      %1882 = vmatpush1.msra.mxu0 0.0
      %1883 = vmatprep.subr.mxu0 0.0
      %1884 = vmatpush1.msra.mxu0 0.0
      %1885 = vmatprep.subr.mxu0 0.0
      %1886 = vmatpush1.msra.mxu0 0.0
      %1887 = vmatprep.subr.mxu0 0.0
      %1888 = vmatpush1.msra.mxu0 0.0
      %1889 = vmatprep.subr.mxu0 0.0
      %1890 = vmatpush1.msra.mxu0 0.0
      %1891 = vmatprep.subr.mxu0 0.0
      %1892 = vmatpush1.msra.mxu0 0.0
      %1893 = vmatprep.subr.mxu0 0.0
      %1894 = vmatpush1.msra.mxu0 0.0
      %1895 = vmatprep.subr.mxu0 0.0
      %1896 = vmatpush1.msra.mxu0 0.0
      %1897 = vmatprep.subr.mxu0 0.0
      %1898 = vmatpush1.msra.mxu0 0.0
      %1899 = vmatprep.subr.mxu0 0.0
      %1900 = vmatpush1.msra.mxu0 0.0
      %1901 = vmatprep.subr.mxu0 0.0
      %1902 = vmatpush1.msra.mxu0 0.0
      %1903 = vmatprep.subr.mxu0 0.0
      %1904 = vmatpush1.msra.mxu0 0.0
      %1905 = vmatprep.subr.mxu0 0.0
      %1906 = vmatpush1.msra.mxu0 0.0
      %1907 = vmatprep.subr.mxu0 0.0
      %1908 = vmatpush1.msra.mxu0 0.0
      %1909 = vmatprep.subr.mxu0 0.0
      %1910 = vmatpush1.msra.mxu0 0.0
      %1911 = vmatprep.subr.mxu0 0.0
      %1912 = vmatpush1.msra.mxu0 0.0
      %1913 = vmatprep.subr.mxu0 0.0
      %1914 = vmatpush1.msra.mxu0 0.0
      %1915 = vmatprep.subr.mxu0 0.0
      %1916 = vmatpush1.msra.mxu0 0.0
      %1917 = vmatprep.subr.mxu0 0.0
      %1918 = vmatpush1.msra.mxu0 0.0
      %1919 = vmatprep.subr.mxu0 0.0
      %1920 = vmatpush1.msra.mxu0 0.0
      %1921 = vmatprep.subr.mxu0 0.0
      %1922 = vmatpush1.msra.mxu0 0.0
      %1923 = vmatprep.subr.mxu0 0.0
      %1924 = vmatpush1.msra.mxu0 0.0
      %1925 = vmatprep.subr.mxu0 0.0
      %1926 = vmatpush1.msra.mxu0 0.0
      %1927 = vmatprep.subr.mxu0 0.0
      %1928 = vmatpush1.msra.mxu0 0.0
      %1929 = vmatprep.mubr.f32.mxu0 0.0
      %1930 = vmatmul.mubr.f32.gmra.mrb[0].mxu0 %v1863
      %v1931 = vpop.f32.mrb[0].mxu0
      %v1932 = vadd.f32 0.0, %v1931
      %v1933 = vpop.f32.mrb[0].mxu0
      %1934 = vdwg.mxu0
      %v1936 = vrot.slane %v1932, 3
      %v1938 = vadd.f32 %v1334, %v1936
      %v1939 = vxor.u32 %v1938, 2147483648
      %v1940 = vmul.f32 %v1939, 1.442695
      %v1941 = vpow.pop %v1940
      %v1942 = vadd.f32 %v1941, 1.0
      %v1943 = vrcp.pop %v1942
      %v1944 = vmul.f32 1.0, %v1943
      %v1945 = vtanh.pop %v1938
      %v1947 = vrot.slane %v1852, 7
      %v1949 = vmul.f32 %v1944, %v1947
      %1951 = vrot.lane.b32.xlu0 %v1945, 64
      %v1952 = vpop.permute.xlu0 %1951
      %v1954 = vmul.f32 %v1944, %v1952
      %1956 = vrot.lane.b32.xlu0 %v1954, 32
      %v1957 = vpop.permute.xlu0 %1956
      %v1959 = vadd.f32 %v1949, %v1957
      %v1960 = vtanh.pop %v1959
      %1962 = vrot.lane.b32.xlu0 %v1960, 64
      %v1963 = vpop.permute.xlu0 %1962
      %v1965 = vmul.f32 %v1944, %v1963
      %v1967 = vrot.slane %v1965, 5
      %1968 = vrot.lane.b32.xlu0 %v1967, 32
      %v1969 = vpop.permute.xlu0 %1968
      %v1970 = vsel %vm398, %v1969, 0
      %1972 = vmatprep.subr.mxu0 0.0
      %1973 = vmatpush1.msra.mxu0 %v182
      %1974 = vmatprep.subr.mxu0 0.0
      %1975 = vmatpush1.msra.mxu0 %v183
      %1976 = vmatprep.subr.mxu0 0.0
      %1977 = vmatpush1.msra.mxu0 %v184
      %1978 = vmatprep.subr.mxu0 0.0
      %1979 = vmatpush1.msra.mxu0 %v185
      %1980 = vmatprep.subr.mxu0 0.0
      %1981 = vmatpush1.msra.mxu0 0.0
      %1982 = vmatprep.subr.mxu0 0.0
      %1983 = vmatpush1.msra.mxu0 0.0
      %1984 = vmatprep.subr.mxu0 0.0
      %1985 = vmatpush1.msra.mxu0 0.0
      %1986 = vmatprep.subr.mxu0 0.0
      %1987 = vmatpush1.msra.mxu0 0.0
      %1988 = vmatprep.subr.mxu0 0.0
      %1989 = vmatpush1.msra.mxu0 0.0
      %1990 = vmatprep.subr.mxu0 0.0
      %1991 = vmatpush1.msra.mxu0 0.0
      %1992 = vmatprep.subr.mxu0 0.0
      %1993 = vmatpush1.msra.mxu0 0.0
      %1994 = vmatprep.subr.mxu0 0.0
      %1995 = vmatpush1.msra.mxu0 0.0
      %1996 = vmatprep.subr.mxu0 0.0
      %1997 = vmatpush1.msra.mxu0 0.0
      %1998 = vmatprep.subr.mxu0 0.0
      %1999 = vmatpush1.msra.mxu0 0.0
      %2000 = vmatprep.subr.mxu0 0.0
      %2001 = vmatpush1.msra.mxu0 0.0
      %2002 = vmatprep.subr.mxu0 0.0
      %2003 = vmatpush1.msra.mxu0 0.0
      %2004 = vmatprep.subr.mxu0 0.0
      %2005 = vmatpush1.msra.mxu0 0.0
      %2006 = vmatprep.subr.mxu0 0.0
      %2007 = vmatpush1.msra.mxu0 0.0
      %2008 = vmatprep.subr.mxu0 0.0
      %2009 = vmatpush1.msra.mxu0 0.0
      %2010 = vmatprep.subr.mxu0 0.0
      %2011 = vmatpush1.msra.mxu0 0.0
      %2012 = vmatprep.subr.mxu0 0.0
      %2013 = vmatpush1.msra.mxu0 0.0
      %2014 = vmatprep.subr.mxu0 0.0
      %2015 = vmatpush1.msra.mxu0 0.0
      %2016 = vmatprep.subr.mxu0 0.0
      %2017 = vmatpush1.msra.mxu0 0.0
      %2018 = vmatprep.subr.mxu0 0.0
      %2019 = vmatpush1.msra.mxu0 0.0
      %2020 = vmatprep.subr.mxu0 0.0
      %2021 = vmatpush1.msra.mxu0 0.0
      %2022 = vmatprep.subr.mxu0 0.0
      %2023 = vmatpush1.msra.mxu0 0.0
      %2024 = vmatprep.subr.mxu0 0.0
      %2025 = vmatpush1.msra.mxu0 0.0
      %2026 = vmatprep.subr.mxu0 0.0
      %2027 = vmatpush1.msra.mxu0 0.0
      %2028 = vmatprep.subr.mxu0 0.0
      %2029 = vmatpush1.msra.mxu0 0.0
      %2030 = vmatprep.subr.mxu0 0.0
      %2031 = vmatpush1.msra.mxu0 0.0
      %2032 = vmatprep.subr.mxu0 0.0
      %2033 = vmatpush1.msra.mxu0 0.0
      %2034 = vmatprep.subr.mxu0 0.0
      %2035 = vmatpush1.msra.mxu0 0.0
      %2036 = vmatprep.mubr.f32.mxu0 0.0
      %2037 = vmatmul.mubr.f32.gmra.mrb[0].mxu0 %v1970
      %v2038 = vpop.f32.mrb[0].mxu0
      %v2039 = vadd.f32 0.0, %v2038
      %v2040 = vpop.f32.mrb[0].mxu0
      %2041 = vdwg.mxu0
      %v2043 = vrot.slane %v2039, 2
      %v2045 = vadd.f32 %v1334, %v2043
      %v2046 = vxor.u32 %v2045, 2147483648
      %v2047 = vmul.f32 %v2046, 1.442695
      %v2048 = vpow.pop %v2047
      %v2049 = vadd.f32 %v2048, 1.0
      %v2050 = vrcp.pop %v2049
      %v2051 = vmul.f32 1.0, %v2050
      %v2052 = vtanh.pop %v2045
      %v2054 = vrot.slane %v1959, 7
      %v2056 = vmul.f32 %v2051, %v2054
      %2058 = vrot.lane.b32.xlu0 %v2052, 64
      %v2059 = vpop.permute.xlu0 %2058
      %v2061 = vmul.f32 %v2051, %v2059
      %2063 = vrot.lane.b32.xlu0 %v2061, 32
      %v2064 = vpop.permute.xlu0 %2063
      %v2066 = vadd.f32 %v2056, %v2064
      %v2067 = vtanh.pop %v2066
      %2069 = vrot.lane.b32.xlu0 %v2067, 64
      %v2070 = vpop.permute.xlu0 %2069
      %v2072 = vmul.f32 %v2051, %v2070
      %v2074 = vrot.slane %v2072, 6
      %2075 = vrot.lane.b32.xlu0 %v2074, 32
      %v2076 = vpop.permute.xlu0 %2075
      %v2077 = vsel %vm398, %v2076, 0
      %2079 = vmatprep.subr.mxu0 0.0
      %2080 = vmatpush1.msra.mxu0 %v182
      %2081 = vmatprep.subr.mxu0 0.0
      %2082 = vmatpush1.msra.mxu0 %v183
      %2083 = vmatprep.subr.mxu0 0.0
      %2084 = vmatpush1.msra.mxu0 %v184
      %2085 = vmatprep.subr.mxu0 0.0
      %2086 = vmatpush1.msra.mxu0 %v185
      %2087 = vmatprep.subr.mxu0 0.0
      %2088 = vmatpush1.msra.mxu0 0.0
      %2089 = vmatprep.subr.mxu0 0.0
      %2090 = vmatpush1.msra.mxu0 0.0
      %2091 = vmatprep.subr.mxu0 0.0
      %2092 = vmatpush1.msra.mxu0 0.0
      %2093 = vmatprep.subr.mxu0 0.0
      %2094 = vmatpush1.msra.mxu0 0.0
      %2095 = vmatprep.subr.mxu0 0.0
      %2096 = vmatpush1.msra.mxu0 0.0
      %2097 = vmatprep.subr.mxu0 0.0
      %2098 = vmatpush1.msra.mxu0 0.0
      %2099 = vmatprep.subr.mxu0 0.0
      %2100 = vmatpush1.msra.mxu0 0.0
      %2101 = vmatprep.subr.mxu0 0.0
      %2102 = vmatpush1.msra.mxu0 0.0
      %2103 = vmatprep.subr.mxu0 0.0
      %2104 = vmatpush1.msra.mxu0 0.0
      %2105 = vmatprep.subr.mxu0 0.0
      %2106 = vmatpush1.msra.mxu0 0.0
      %2107 = vmatprep.subr.mxu0 0.0
      %2108 = vmatpush1.msra.mxu0 0.0
      %2109 = vmatprep.subr.mxu0 0.0
      %2110 = vmatpush1.msra.mxu0 0.0
      %2111 = vmatprep.subr.mxu0 0.0
      %2112 = vmatpush1.msra.mxu0 0.0
      %2113 = vmatprep.subr.mxu0 0.0
      %2114 = vmatpush1.msra.mxu0 0.0
      %2115 = vmatprep.subr.mxu0 0.0
      %2116 = vmatpush1.msra.mxu0 0.0
      %2117 = vmatprep.subr.mxu0 0.0
      %2118 = vmatpush1.msra.mxu0 0.0
      %2119 = vmatprep.subr.mxu0 0.0
      %2120 = vmatpush1.msra.mxu0 0.0
      %2121 = vmatprep.subr.mxu0 0.0
      %2122 = vmatpush1.msra.mxu0 0.0
      %2123 = vmatprep.subr.mxu0 0.0
      %2124 = vmatpush1.msra.mxu0 0.0
      %2125 = vmatprep.subr.mxu0 0.0
      %2126 = vmatpush1.msra.mxu0 0.0
      %2127 = vmatprep.subr.mxu0 0.0
      %2128 = vmatpush1.msra.mxu0 0.0
      %2129 = vmatprep.subr.mxu0 0.0
      %2130 = vmatpush1.msra.mxu0 0.0
      %2131 = vmatprep.subr.mxu0 0.0
      %2132 = vmatpush1.msra.mxu0 0.0
      %2133 = vmatprep.subr.mxu0 0.0
      %2134 = vmatpush1.msra.mxu0 0.0
      %2135 = vmatprep.subr.mxu0 0.0
      %2136 = vmatpush1.msra.mxu0 0.0
      %2137 = vmatprep.subr.mxu0 0.0
      %2138 = vmatpush1.msra.mxu0 0.0
      %2139 = vmatprep.subr.mxu0 0.0
      %2140 = vmatpush1.msra.mxu0 0.0
      %2141 = vmatprep.subr.mxu0 0.0
      %2142 = vmatpush1.msra.mxu0 0.0
      %2143 = vmatprep.mubr.f32.mxu0 0.0
      %2144 = vmatmul.mubr.f32.gmra.mrb[0].mxu0 %v2077
      %v2145 = vpop.f32.mrb[0].mxu0
      %v2146 = vadd.f32 0.0, %v2145
      %v2147 = vpop.f32.mrb[0].mxu0
      %2148 = vdwg.mxu0
      %v2150 = vrot.slane %v2146, 1
      %v2152 = vadd.f32 %v1334, %v2150
      %v2153 = vxor.u32 %v2152, 2147483648
      %v2154 = vmul.f32 %v2153, 1.442695
      %v2155 = vpow.pop %v2154
      %v2156 = vadd.f32 %v2155, 1.0
      %v2157 = vrcp.pop %v2156
      %v2158 = vmul.f32 1.0, %v2157
      %v2159 = vtanh.pop %v2152
      %v2161 = vrot.slane %v2066, 7
      %v2163 = vmul.f32 %v2158, %v2161
      %2165 = vrot.lane.b32.xlu0 %v2159, 64
      %v2166 = vpop.permute.xlu0 %2165
      %v2168 = vmul.f32 %v2158, %v2166
      %2170 = vrot.lane.b32.xlu0 %v2168, 32
      %v2171 = vpop.permute.xlu0 %2170
      %v2173 = vadd.f32 %v2163, %v2171
      %v2174 = vtanh.pop %v2173
      %2176 = vrot.lane.b32.xlu0 %v2174, 64
      %v2177 = vpop.permute.xlu0 %2176
      %v2179 = vmul.f32 %v2158, %v2177
      %v2180 = vsel %vm1245, %v1431, %v1537
      %v2181 = vsel %vm324, %v2180, %v1644
      %v2182 = vsel %vm1248, %v2181, %v1751
      %v2183 = vsel %vm1250, %v2182, %v1858
      %v2184 = vsel %vm1252, %v2183, %v1965
      %v2185 = vsel %vm1254, %v2184, %v2072
      %v2186 = vsel %vm1256, %v2185, %v2179
      %v2187 = vlaneseq
      %v2188 = vshrl.u32 %v2187, 7
      %v2189 = vsub.s32 0, %v2188
      %v2190 = vrot.slane %v197, %v2189
      %2192 = vrot.lane.b32.xlu0 %v2186, 32
      %v2193 = vpop.permute.xlu0 %2192
      %v2194 = vsel %vm398, %v2193, 0
      %2196 = vmatprep.subr.mxu0 0.0
      %2197 = vmatpush1.msra.mxu0 %v193
      %2198 = vmatprep.subr.mxu0 0.0
      %2199 = vmatpush1.msra.mxu0 %v194
      %2200 = vmatprep.subr.mxu0 0.0
      %2201 = vmatpush1.msra.mxu0 %v195
      %2202 = vmatprep.subr.mxu0 0.0
      %2203 = vmatpush1.msra.mxu0 %v196
      %2204 = vmatprep.subr.mxu0 0.0
      %2205 = vmatpush1.msra.mxu0 0.0
      %2206 = vmatprep.subr.mxu0 0.0
      %2207 = vmatpush1.msra.mxu0 0.0
      %2208 = vmatprep.subr.mxu0 0.0
      %2209 = vmatpush1.msra.mxu0 0.0
      %2210 = vmatprep.subr.mxu0 0.0
      %2211 = vmatpush1.msra.mxu0 0.0
      %2212 = vmatprep.subr.mxu0 0.0
      %2213 = vmatpush1.msra.mxu0 0.0
      %2214 = vmatprep.subr.mxu0 0.0
      %2215 = vmatpush1.msra.mxu0 0.0
      %2216 = vmatprep.subr.mxu0 0.0
      %2217 = vmatpush1.msra.mxu0 0.0
      %2218 = vmatprep.subr.mxu0 0.0
      %2219 = vmatpush1.msra.mxu0 0.0
      %2220 = vmatprep.subr.mxu0 0.0
      %2221 = vmatpush1.msra.mxu0 0.0
      %2222 = vmatprep.subr.mxu0 0.0
      %2223 = vmatpush1.msra.mxu0 0.0
      %2224 = vmatprep.subr.mxu0 0.0
      %2225 = vmatpush1.msra.mxu0 0.0
      %2226 = vmatprep.subr.mxu0 0.0
      %2227 = vmatpush1.msra.mxu0 0.0
      %2228 = vmatprep.subr.mxu0 0.0
      %2229 = vmatpush1.msra.mxu0 0.0
      %2230 = vmatprep.subr.mxu0 0.0
      %2231 = vmatpush1.msra.mxu0 0.0
      %2232 = vmatprep.subr.mxu0 0.0
      %2233 = vmatpush1.msra.mxu0 0.0
      %2234 = vmatprep.subr.mxu0 0.0
      %2235 = vmatpush1.msra.mxu0 0.0
      %2236 = vmatprep.subr.mxu0 0.0
      %2237 = vmatpush1.msra.mxu0 0.0
      %2238 = vmatprep.subr.mxu0 0.0
      %2239 = vmatpush1.msra.mxu0 0.0
      %2240 = vmatprep.subr.mxu0 0.0
      %2241 = vmatpush1.msra.mxu0 0.0
      %2242 = vmatprep.subr.mxu0 0.0
      %2243 = vmatpush1.msra.mxu0 0.0
      %2244 = vmatprep.subr.mxu0 0.0
      %2245 = vmatpush1.msra.mxu0 0.0
      %2246 = vmatprep.subr.mxu0 0.0
      %2247 = vmatpush1.msra.mxu0 0.0
      %2248 = vmatprep.subr.mxu0 0.0
      %2249 = vmatpush1.msra.mxu0 0.0
      %2250 = vmatprep.subr.mxu0 0.0
      %2251 = vmatpush1.msra.mxu0 0.0
      %2252 = vmatprep.subr.mxu0 0.0
      %2253 = vmatpush1.msra.mxu0 0.0
      %2254 = vmatprep.subr.mxu0 0.0
      %2255 = vmatpush1.msra.mxu0 0.0
      %2256 = vmatprep.subr.mxu0 0.0
      %2257 = vmatpush1.msra.mxu0 0.0
      %2258 = vmatprep.subr.mxu0 0.0
      %2259 = vmatpush1.msra.mxu0 0.0
      %2260 = vmatprep.mubr.f32.mxu0 0.0
      %2261 = vmatmul.mubr.f32.gmra.mrb[0].mxu0 %v2194
      %v2262 = vpop.f32.mrb[0].mxu0
      %v2263 = vadd.f32 %v2190, %v2262
      %v2264 = vpop.f32.mrb[0].mxu0
      %2265 = vdwg.mxu0
      %v2266 = vxor.u32 %v2263, 2147483648
      %v2267 = vmul.f32 %v2266, 1.442695
      %v2268 = vpow.pop %v2267
      %v2269 = vadd.f32 %v2268, 1.0
      %v2270 = vrcp.pop %v2269
      %v2271 = vmul.f32 1.0, %v2270
      %2273 = vrot.lane.b32.xlu0 %v2271, 9
      %v2274 = vpop.permute.xlu0 %2273
      %v2276 = vsel %vm314, %v2271, %v2274
      %v2277 = vmul.f32 %v276, %v2276
      %v2279 = vsel %vm320, %v2277, 0
      %v2282 = vsel %vm324, %v192, 0
      %2284 = vmatprep.subr.mxu0 0.0
      %2285 = vmatpush1.msra.mxu0 %v190
      %2286 = vmatprep.subr.mxu0 0.0
      %2287 = vmatpush1.msra.mxu0 %v191
      %2288 = vmatprep.subr.mxu0 0.0
      %2289 = vmatpush1.msra.mxu0 %v2282
      %2290 = vmatprep.subr.mxu0 0.0
      %2291 = vmatpush1.msra.mxu0 0.0
      %2292 = vmatprep.subr.mxu0 0.0
      %2293 = vmatpush1.msra.mxu0 0.0
      %2294 = vmatprep.subr.mxu0 0.0
      %2295 = vmatpush1.msra.mxu0 0.0
      %2296 = vmatprep.subr.mxu0 0.0
      %2297 = vmatpush1.msra.mxu0 0.0
      %2298 = vmatprep.subr.mxu0 0.0
      %2299 = vmatpush1.msra.mxu0 0.0
      %2300 = vmatprep.subr.mxu0 0.0
      %2301 = vmatpush1.msra.mxu0 0.0
      %2302 = vmatprep.subr.mxu0 0.0
      %2303 = vmatpush1.msra.mxu0 0.0
      %2304 = vmatprep.subr.mxu0 0.0
      %2305 = vmatpush1.msra.mxu0 0.0
      %2306 = vmatprep.subr.mxu0 0.0
      %2307 = vmatpush1.msra.mxu0 0.0
      %2308 = vmatprep.subr.mxu0 0.0
      %2309 = vmatpush1.msra.mxu0 0.0
      %2310 = vmatprep.subr.mxu0 0.0
      %2311 = vmatpush1.msra.mxu0 0.0
      %2312 = vmatprep.subr.mxu0 0.0
      %2313 = vmatpush1.msra.mxu0 0.0
      %2314 = vmatprep.subr.mxu0 0.0
      %2315 = vmatpush1.msra.mxu0 0.0
      %2316 = vmatprep.subr.mxu0 0.0
      %2317 = vmatpush1.msra.mxu0 0.0
      %2318 = vmatprep.subr.mxu0 0.0
      %2319 = vmatpush1.msra.mxu0 0.0
      %2320 = vmatprep.subr.mxu0 0.0
      %2321 = vmatpush1.msra.mxu0 0.0
      %2322 = vmatprep.subr.mxu0 0.0
      %2323 = vmatpush1.msra.mxu0 0.0
      %2324 = vmatprep.subr.mxu0 0.0
      %2325 = vmatpush1.msra.mxu0 0.0
      %2326 = vmatprep.subr.mxu0 0.0
      %2327 = vmatpush1.msra.mxu0 0.0
      %2328 = vmatprep.subr.mxu0 0.0
      %2329 = vmatpush1.msra.mxu0 0.0
      %2330 = vmatprep.subr.mxu0 0.0
      %2331 = vmatpush1.msra.mxu0 0.0
      %2332 = vmatprep.subr.mxu0 0.0
      %2333 = vmatpush1.msra.mxu0 0.0
      %2334 = vmatprep.subr.mxu0 0.0
      %2335 = vmatpush1.msra.mxu0 0.0
      %2336 = vmatprep.subr.mxu0 0.0
      %2337 = vmatpush1.msra.mxu0 0.0
      %2338 = vmatprep.subr.mxu0 0.0
      %2339 = vmatpush1.msra.mxu0 0.0
      %2340 = vmatprep.subr.mxu0 0.0
      %2341 = vmatpush1.msra.mxu0 0.0
      %2342 = vmatprep.subr.mxu0 0.0
      %2343 = vmatpush1.msra.mxu0 0.0
      %2344 = vmatprep.subr.mxu0 0.0
      %2345 = vmatpush1.msra.mxu0 0.0
      %2346 = vmatprep.subr.mxu0 0.0
      %2347 = vmatpush1.msra.mxu0 0.0
      %2348 = vmatprep.mubr.f32.mxu0 0.0
      %2349 = vmatmul.mubr.f32.gmra.mrb[0].mxu0 %v2279
      %v2350 = vpop.f32.mrb[0].mxu0
      %v2351 = vadd.f32 0.0, %v2350
      %v2352 = vpop.f32.mrb[0].mxu0
      %2353 = vdwg.mxu0
      %v2355 = vrot.slane %v2351, 7
      %2356 = vrot.lane.b32.xlu0 %v2355, 120
      %v2357 = vpop.permute.xlu0 %2356
      %v2359 = vsel %vm1245, 0.0, %v2357
      %v2360 = vadd.f32 %v2351, %v2359
      %v2361 = vadd.f32 %v2357, 0.0
      %v2362 = vmul.f32 %v2360, %v198
      %v2363 = vmul.f32 %v2361, %v199
      %v2366 = vrot.slane %v2362, 1
      %v2367 = vrot.slane %v2363, 1
      %v2368 = vsel %vm1256, %v2366, %v2367
      %2369 = vrot.lane.b32.xlu0 %v2368, 8
      %v2370 = vpop.permute.xlu0 %2369
      %vm2372 = vcmask 64512
      %v2373 = vsel %vm2372, %v2362, %v2370
      %v2375 = vsel %vm202, %v2373, 0
      %2377 = vmatprep.subr.mxu0 0.0
      %2378 = vmatpush1.msra.mxu0 %v188
      %2379 = vmatprep.subr.mxu0 0.0
      %2380 = vmatpush1.msra.mxu0 %v189
      %2381 = vmatprep.subr.mxu0 0.0
      %2382 = vmatpush1.msra.mxu0 0.0
      %2383 = vmatprep.subr.mxu0 0.0
      %2384 = vmatpush1.msra.mxu0 0.0
      %2385 = vmatprep.subr.mxu0 0.0
      %2386 = vmatpush1.msra.mxu0 0.0
      %2387 = vmatprep.subr.mxu0 0.0
      %2388 = vmatpush1.msra.mxu0 0.0
      %2389 = vmatprep.subr.mxu0 0.0
      %2390 = vmatpush1.msra.mxu0 0.0
      %2391 = vmatprep.subr.mxu0 0.0
      %2392 = vmatpush1.msra.mxu0 0.0
      %2393 = vmatprep.subr.mxu0 0.0
      %2394 = vmatpush1.msra.mxu0 0.0
      %2395 = vmatprep.subr.mxu0 0.0
      %2396 = vmatpush1.msra.mxu0 0.0
      %2397 = vmatprep.subr.mxu0 0.0
      %2398 = vmatpush1.msra.mxu0 0.0
      %2399 = vmatprep.subr.mxu0 0.0
      %2400 = vmatpush1.msra.mxu0 0.0
      %2401 = vmatprep.subr.mxu0 0.0
      %2402 = vmatpush1.msra.mxu0 0.0
      %2403 = vmatprep.subr.mxu0 0.0
      %2404 = vmatpush1.msra.mxu0 0.0
      %2405 = vmatprep.subr.mxu0 0.0
      %2406 = vmatpush1.msra.mxu0 0.0
      %2407 = vmatprep.subr.mxu0 0.0
      %2408 = vmatpush1.msra.mxu0 0.0
      %2409 = vmatprep.subr.mxu0 0.0
      %2410 = vmatpush1.msra.mxu0 0.0
      %2411 = vmatprep.subr.mxu0 0.0
      %2412 = vmatpush1.msra.mxu0 0.0
      %2413 = vmatprep.subr.mxu0 0.0
      %2414 = vmatpush1.msra.mxu0 0.0
      %2415 = vmatprep.subr.mxu0 0.0
      %2416 = vmatpush1.msra.mxu0 0.0
      %2417 = vmatprep.subr.mxu0 0.0
      %2418 = vmatpush1.msra.mxu0 0.0
      %2419 = vmatprep.subr.mxu0 0.0
      %2420 = vmatpush1.msra.mxu0 0.0
      %2421 = vmatprep.subr.mxu0 0.0
      %2422 = vmatpush1.msra.mxu0 0.0
      %2423 = vmatprep.subr.mxu0 0.0
      %2424 = vmatpush1.msra.mxu0 0.0
      %2425 = vmatprep.subr.mxu0 0.0
      %2426 = vmatpush1.msra.mxu0 0.0
      %2427 = vmatprep.subr.mxu0 0.0
      %2428 = vmatpush1.msra.mxu0 0.0
      %2429 = vmatprep.subr.mxu0 0.0
      %2430 = vmatpush1.msra.mxu0 0.0
      %2431 = vmatprep.subr.mxu0 0.0
      %2432 = vmatpush1.msra.mxu0 0.0
      %2433 = vmatprep.subr.mxu0 0.0
      %2434 = vmatpush1.msra.mxu0 0.0
      %2435 = vmatprep.subr.mxu0 0.0
      %2436 = vmatpush1.msra.mxu0 0.0
      %2437 = vmatprep.subr.mxu0 0.0
      %2438 = vmatpush1.msra.mxu0 0.0
      %2439 = vmatprep.subr.mxu0 0.0
      %2440 = vmatpush1.msra.mxu0 0.0
      %2441 = vmatprep.mubr.f32.mxu0 0.0
      %2442 = vmatmul.mubr.f32.gmra.mrb[0].mxu0 %v2375
      %v2443 = vpop.f32.mrb[0].mxu0
      %v2444 = vadd.f32 0.0, %v2443
      %v2445 = vpop.f32.mrb[0].mxu0
      %2446 = vdwg.mxu0
      %v2447 = vmul.f32 %v2444, 0.0
      %2449 = vrot.lane.b32.xlu0 %v2447, 119
      %v2450 = vpop.permute.xlu0 %2449
      %v2452 = vsub.f32 %v2447, %v2450
      %2453 = vrot.lane.b32.xlu0 %v2447, 9
      %v2454 = vpop.permute.xlu0 %2453
      %v2456 = vadd.f32 %v2447, %v2454
      %v2457 = vsub.f32 %v281, %v2452
      %v2458 = vsub.f32 %v281, %v2456
      %v2459 = vmul.f32 %v2444, %v2444
      %2461 = vrot.lane.b32.xlu0 %v2459, 119
      %v2462 = vpop.permute.xlu0 %2461
      %v2464 = vadd.f32 %v2459, %v2462
      %v2465 = vadd.f32 %v2464, 1e-08
      %2467 = vrot.lane.b32.xlu0 %v2465, 9
      %v2468 = vpop.permute.xlu0 %2467
      %v2470 = vrcp.pop %v2468
      %v2471 = vmul.f32 %v2271, %v2470
      %v2472 = vmul.f32 %v2444, %v2457
      %v2473 = vmul.f32 %v2444, %v2458
      %2475 = vrot.lane.b32.xlu0 %v2473, 119
      %v2476 = vpop.permute.xlu0 %2475
      %v2478 = vadd.f32 %v2472, %v2476
      %2480 = vrot.lane.b32.xlu0 %v2478, 9
      %v2481 = vpop.permute.xlu0 %2480
      %v2483 = vmul.f32 %v2471, %v2481
      %v2484 = vadd.f32 %v2483, 0.0
      %2486 = vrot.lane.b32.xlu0 %v2458, 119
      %v2487 = vpop.permute.xlu0 %2486
      %v2489 = vmul.f32 %v2444, %v2487
      %2491 = vrot.lane.b32.xlu0 %v2457, 9
      %v2492 = vpop.permute.xlu0 %2491
      %v2494 = vmul.f32 %v2444, %v2492
      %2496 = vrot.lane.b32.xlu0 %v2494, 119
      %v2497 = vpop.permute.xlu0 %2496
      %v2499 = vsub.f32 %v2489, %v2497
      %2501 = vrot.lane.b32.xlu0 %v2499, 9
      %v2502 = vpop.permute.xlu0 %2501
      %v2504 = vmul.f32 %v2471, %v2502
      %v2505 = vadd.f32 %v2504, 0.0
      %v2507 = vrot.slane %v2444, 1
      %2508 = vrot.lane.b32.xlu0 %v2507, 9
      %v2509 = vpop.permute.xlu0 %2508
      %v2511 = vmul.f32 %v2484, %v2509
      %v2513 = vmul.f32 %v2505, %v2507
      %v2514 = vsub.f32 %v2511, %v2513
      %v2515 = vmul.f32 %v2484, %v2507
      %v2516 = vmul.f32 %v2505, %v2509
      %v2517 = vadd.f32 %v2515, %v2516
      %v2519 = vrot.slane %v2514, 7
      %2520 = vrot.lane.b32.xlu0 %v2519, 119
      %v2521 = vpop.permute.xlu0 %2520
      %v2523 = vsub.f32 %v281, %v2521
      %v2525 = vrot.slane %v2517, 7
      %v2527 = vsub.f32 %v281, %v2525
      %v2528 = vmul.f32 %v2444, %v2523
      %v2529 = vmul.f32 %v2444, %v2527
      %2531 = vrot.lane.b32.xlu0 %v2529, 119
      %v2532 = vpop.permute.xlu0 %2531
      %v2534 = vadd.f32 %v2528, %v2532
      %2536 = vrot.lane.b32.xlu0 %v2534, 9
      %v2537 = vpop.permute.xlu0 %2536
      %v2539 = vmul.f32 %v2471, %v2537
      %v2541 = vrot.slane %v2539, 1
      %v2543 = vadd.f32 %v2484, %v2541
      %2545 = vrot.lane.b32.xlu0 %v2527, 119
      %v2546 = vpop.permute.xlu0 %2545
      %v2548 = vmul.f32 %v2444, %v2546
      %2550 = vrot.lane.b32.xlu0 %v2523, 9
      %v2551 = vpop.permute.xlu0 %2550
      %v2553 = vmul.f32 %v2444, %v2551
      %2555 = vrot.lane.b32.xlu0 %v2553, 119
      %v2556 = vpop.permute.xlu0 %2555
      %v2558 = vsub.f32 %v2548, %v2556
      %2560 = vrot.lane.b32.xlu0 %v2558, 9
      %v2561 = vpop.permute.xlu0 %2560
      %v2563 = vmul.f32 %v2471, %v2561
      %v2565 = vrot.slane %v2563, 1
      %v2567 = vadd.f32 %v2505, %v2565
      %v2568 = vrot.slane %v2444, 2
      %2569 = vrot.lane.b32.xlu0 %v2568, 9
      %v2570 = vpop.permute.xlu0 %2569
      %v2572 = vmul.f32 %v2543, %v2570
      %v2574 = vmul.f32 %v2567, %v2568
      %v2575 = vsub.f32 %v2572, %v2574
      %v2576 = vmul.f32 %v2543, %v2568
      %v2577 = vmul.f32 %v2567, %v2570
      %v2578 = vadd.f32 %v2576, %v2577
      %v2580 = vrot.slane %v2575, 6
      %2581 = vrot.lane.b32.xlu0 %v2580, 119
      %v2582 = vpop.permute.xlu0 %2581
      %v2584 = vsub.f32 %v281, %v2582
      %v2586 = vrot.slane %v2578, 6
      %v2588 = vsub.f32 %v281, %v2586
      %v2589 = vmul.f32 %v2444, %v2584
      %v2590 = vmul.f32 %v2444, %v2588
      %2592 = vrot.lane.b32.xlu0 %v2590, 119
      %v2593 = vpop.permute.xlu0 %2592
      %v2595 = vadd.f32 %v2589, %v2593
      %2597 = vrot.lane.b32.xlu0 %v2595, 9
      %v2598 = vpop.permute.xlu0 %2597
      %v2600 = vmul.f32 %v2471, %v2598
      %v2602 = vrot.slane %v2600, 2
      %v2604 = vadd.f32 %v2543, %v2602
      %2606 = vrot.lane.b32.xlu0 %v2588, 119
      %v2607 = vpop.permute.xlu0 %2606
      %v2609 = vmul.f32 %v2444, %v2607
      %2611 = vrot.lane.b32.xlu0 %v2584, 9
      %v2612 = vpop.permute.xlu0 %2611
      %v2614 = vmul.f32 %v2444, %v2612
      %2616 = vrot.lane.b32.xlu0 %v2614, 119
      %v2617 = vpop.permute.xlu0 %2616
      %v2619 = vsub.f32 %v2609, %v2617
      %2621 = vrot.lane.b32.xlu0 %v2619, 9
      %v2622 = vpop.permute.xlu0 %2621
      %v2624 = vmul.f32 %v2471, %v2622
      %v2626 = vrot.slane %v2624, 2
      %v2628 = vadd.f32 %v2567, %v2626
      %v2629 = vrot.slane %v2444, 3
      %2630 = vrot.lane.b32.xlu0 %v2629, 9
      %v2631 = vpop.permute.xlu0 %2630
      %v2633 = vmul.f32 %v2604, %v2631
      %v2635 = vmul.f32 %v2628, %v2629
      %v2636 = vsub.f32 %v2633, %v2635
      %v2637 = vmul.f32 %v2604, %v2629
      %v2638 = vmul.f32 %v2628, %v2631
      %v2639 = vadd.f32 %v2637, %v2638
      %v2641 = vrot.slane %v2636, 5
      %2642 = vrot.lane.b32.xlu0 %v2641, 119
      %v2643 = vpop.permute.xlu0 %2642
      %v2645 = vsub.f32 %v281, %v2643
      %v2647 = vrot.slane %v2639, 5
      %v2649 = vsub.f32 %v281, %v2647
      %v2650 = vmul.f32 %v2444, %v2645
      %v2651 = vmul.f32 %v2444, %v2649
      %2653 = vrot.lane.b32.xlu0 %v2651, 119
      %v2654 = vpop.permute.xlu0 %2653
      %v2656 = vadd.f32 %v2650, %v2654
      %2658 = vrot.lane.b32.xlu0 %v2656, 9
      %v2659 = vpop.permute.xlu0 %2658
      %v2661 = vmul.f32 %v2471, %v2659
      %v2663 = vrot.slane %v2661, 3
      %v2665 = vadd.f32 %v2604, %v2663
      %2667 = vrot.lane.b32.xlu0 %v2649, 119
      %v2668 = vpop.permute.xlu0 %2667
      %v2670 = vmul.f32 %v2444, %v2668
      %2672 = vrot.lane.b32.xlu0 %v2645, 9
      %v2673 = vpop.permute.xlu0 %2672
      %v2675 = vmul.f32 %v2444, %v2673
      %2677 = vrot.lane.b32.xlu0 %v2675, 119
      %v2678 = vpop.permute.xlu0 %2677
      %v2680 = vsub.f32 %v2670, %v2678
      %2682 = vrot.lane.b32.xlu0 %v2680, 9
      %v2683 = vpop.permute.xlu0 %2682
      %v2685 = vmul.f32 %v2471, %v2683
      %v2687 = vrot.slane %v2685, 3
      %v2689 = vadd.f32 %v2628, %v2687
      %v2690 = vrot.slane %v2444, 4
      %2691 = vrot.lane.b32.xlu0 %v2690, 9
      %v2692 = vpop.permute.xlu0 %2691
      %v2694 = vmul.f32 %v2665, %v2692
      %v2696 = vmul.f32 %v2689, %v2690
      %v2697 = vsub.f32 %v2694, %v2696
      %v2698 = vmul.f32 %v2665, %v2690
      %v2699 = vmul.f32 %v2689, %v2692
      %v2700 = vadd.f32 %v2698, %v2699
      %v2702 = vrot.slane %v2697, 4
      %2703 = vrot.lane.b32.xlu0 %v2702, 119
      %v2704 = vpop.permute.xlu0 %2703
      %v2706 = vsub.f32 %v281, %v2704
      %v2708 = vrot.slane %v2700, 4
      %v2710 = vsub.f32 %v281, %v2708
      %v2711 = vmul.f32 %v2444, %v2706
      %v2712 = vmul.f32 %v2444, %v2710
      %2714 = vrot.lane.b32.xlu0 %v2712, 119
      %v2715 = vpop.permute.xlu0 %2714
      %v2717 = vadd.f32 %v2711, %v2715
      %2719 = vrot.lane.b32.xlu0 %v2717, 9
      %v2720 = vpop.permute.xlu0 %2719
      %v2722 = vmul.f32 %v2471, %v2720
      %v2724 = vrot.slane %v2722, 4
      %v2726 = vadd.f32 %v2665, %v2724
      %2728 = vrot.lane.b32.xlu0 %v2710, 119
      %v2729 = vpop.permute.xlu0 %2728
      %v2731 = vmul.f32 %v2444, %v2729
      %2733 = vrot.lane.b32.xlu0 %v2706, 9
      %v2734 = vpop.permute.xlu0 %2733
      %v2736 = vmul.f32 %v2444, %v2734
      %2738 = vrot.lane.b32.xlu0 %v2736, 119
      %v2739 = vpop.permute.xlu0 %2738
      %v2741 = vsub.f32 %v2731, %v2739
      %2743 = vrot.lane.b32.xlu0 %v2741, 9
      %v2744 = vpop.permute.xlu0 %2743
      %v2746 = vmul.f32 %v2471, %v2744
      %v2748 = vrot.slane %v2746, 4
      %v2750 = vadd.f32 %v2689, %v2748
      %v2751 = vrot.slane %v2444, 5
      %2752 = vrot.lane.b32.xlu0 %v2751, 9
      %v2753 = vpop.permute.xlu0 %2752
      %v2755 = vmul.f32 %v2726, %v2753
      %v2757 = vmul.f32 %v2750, %v2751
      %v2758 = vsub.f32 %v2755, %v2757
      %v2759 = vmul.f32 %v2726, %v2751
      %v2760 = vmul.f32 %v2750, %v2753
      %v2761 = vadd.f32 %v2759, %v2760
      %v2763 = vrot.slane %v2758, 3
      %2764 = vrot.lane.b32.xlu0 %v2763, 119
      %v2765 = vpop.permute.xlu0 %2764
      %v2767 = vsub.f32 %v281, %v2765
      %v2769 = vrot.slane %v2761, 3
      %v2771 = vsub.f32 %v281, %v2769
      %v2772 = vmul.f32 %v2444, %v2767
      %v2773 = vmul.f32 %v2444, %v2771
      %2775 = vrot.lane.b32.xlu0 %v2773, 119
      %v2776 = vpop.permute.xlu0 %2775
      %v2778 = vadd.f32 %v2772, %v2776
      %2780 = vrot.lane.b32.xlu0 %v2778, 9
      %v2781 = vpop.permute.xlu0 %2780
      %v2783 = vmul.f32 %v2471, %v2781
      %v2785 = vrot.slane %v2783, 5
      %v2787 = vadd.f32 %v2726, %v2785
      %2789 = vrot.lane.b32.xlu0 %v2771, 119
      %v2790 = vpop.permute.xlu0 %2789
      %v2792 = vmul.f32 %v2444, %v2790
      %2794 = vrot.lane.b32.xlu0 %v2767, 9
      %v2795 = vpop.permute.xlu0 %2794
      %v2797 = vmul.f32 %v2444, %v2795
      %2799 = vrot.lane.b32.xlu0 %v2797, 119
      %v2800 = vpop.permute.xlu0 %2799
      %v2802 = vsub.f32 %v2792, %v2800
      %2804 = vrot.lane.b32.xlu0 %v2802, 9
      %v2805 = vpop.permute.xlu0 %2804
      %v2807 = vmul.f32 %v2471, %v2805
      %v2809 = vrot.slane %v2807, 5
      %v2811 = vadd.f32 %v2750, %v2809
      %v2812 = vrot.slane %v2444, 6
      %2813 = vrot.lane.b32.xlu0 %v2812, 9
      %v2814 = vpop.permute.xlu0 %2813
      %v2816 = vmul.f32 %v2787, %v2814
      %v2818 = vmul.f32 %v2811, %v2812
      %v2819 = vsub.f32 %v2816, %v2818
      %v2820 = vmul.f32 %v2787, %v2812
      %v2821 = vmul.f32 %v2811, %v2814
      %v2822 = vadd.f32 %v2820, %v2821
      %v2824 = vrot.slane %v2819, 2
      %2825 = vrot.lane.b32.xlu0 %v2824, 119
      %v2826 = vpop.permute.xlu0 %2825
      %v2828 = vsub.f32 %v281, %v2826
      %v2830 = vrot.slane %v2822, 2
      %v2832 = vsub.f32 %v281, %v2830
      %v2833 = vmul.f32 %v2444, %v2828
      %v2834 = vmul.f32 %v2444, %v2832
      %2836 = vrot.lane.b32.xlu0 %v2834, 119
      %v2837 = vpop.permute.xlu0 %2836
      %v2839 = vadd.f32 %v2833, %v2837
      %2841 = vrot.lane.b32.xlu0 %v2839, 9
      %v2842 = vpop.permute.xlu0 %2841
      %v2844 = vmul.f32 %v2471, %v2842
      %v2846 = vrot.slane %v2844, 6
      %v2848 = vadd.f32 %v2787, %v2846
      %2850 = vrot.lane.b32.xlu0 %v2832, 119
      %v2851 = vpop.permute.xlu0 %2850
      %v2853 = vmul.f32 %v2444, %v2851
      %2855 = vrot.lane.b32.xlu0 %v2828, 9
      %v2856 = vpop.permute.xlu0 %2855
      %v2858 = vmul.f32 %v2444, %v2856
      %2860 = vrot.lane.b32.xlu0 %v2858, 119
      %v2861 = vpop.permute.xlu0 %2860
      %v2863 = vsub.f32 %v2853, %v2861
      %2865 = vrot.lane.b32.xlu0 %v2863, 9
      %v2866 = vpop.permute.xlu0 %2865
      %v2868 = vmul.f32 %v2471, %v2866
      %v2870 = vrot.slane %v2868, 6
      %v2872 = vadd.f32 %v2811, %v2870
      %v2873 = vrot.slane %v2444, 7
      %2874 = vrot.lane.b32.xlu0 %v2873, 9
      %v2875 = vpop.permute.xlu0 %2874
      %v2877 = vmul.f32 %v2848, %v2875
      %v2879 = vmul.f32 %v2872, %v2873
      %v2880 = vsub.f32 %v2877, %v2879
      %v2881 = vmul.f32 %v2848, %v2873
      %v2882 = vmul.f32 %v2872, %v2875
      %v2883 = vadd.f32 %v2881, %v2882
      %v2885 = vrot.slane %v2880, 1
      %2886 = vrot.lane.b32.xlu0 %v2885, 119
      %v2887 = vpop.permute.xlu0 %2886
      %v2889 = vsub.f32 %v281, %v2887
      %v2891 = vrot.slane %v2883, 1
      %v2893 = vsub.f32 %v281, %v2891
      %v2894 = vsel %vm1245, %v2457, %v2523
      %v2895 = vsel %vm324, %v2894, %v2584
      %v2896 = vsel %vm1248, %v2895, %v2645
      %v2897 = vsel %vm1250, %v2896, %v2706
      %v2898 = vsel %vm1252, %v2897, %v2767
      %v2899 = vsel %vm1254, %v2898, %v2828
      %v2900 = vsel %vm1256, %v2899, %v2889
      %v2901 = vsel %vm1245, %v2458, %v2527
      %v2902 = vsel %vm324, %v2901, %v2588
      %v2903 = vsel %vm1248, %v2902, %v2649
      %v2904 = vsel %vm1250, %v2903, %v2710
      %v2905 = vsel %vm1252, %v2904, %v2771
      %v2906 = vsel %vm1254, %v2905, %v2832
      %v2907 = vsel %vm1256, %v2906, %v2893
      %v2908 = vsel %vm314, %v2900, %v2907
      %v2910 = vsel %vm320, %v2908, 0
      %2912 = vmatprep.subr.mxu0 0.0
      %2913 = vmatpush1.msra.mxu0 %v190
      %2914 = vmatprep.subr.mxu0 0.0
      %2915 = vmatpush1.msra.mxu0 %v191
      %2916 = vmatprep.subr.mxu0 0.0
      %2917 = vmatpush1.msra.mxu0 %v2282
      %2918 = vmatprep.subr.mxu0 0.0
      %2919 = vmatpush1.msra.mxu0 0.0
      %2920 = vmatprep.subr.mxu0 0.0
      %2921 = vmatpush1.msra.mxu0 0.0
      %2922 = vmatprep.subr.mxu0 0.0
      %2923 = vmatpush1.msra.mxu0 0.0
      %2924 = vmatprep.subr.mxu0 0.0
      %2925 = vmatpush1.msra.mxu0 0.0
      %2926 = vmatprep.subr.mxu0 0.0
      %2927 = vmatpush1.msra.mxu0 0.0
      %2928 = vmatprep.subr.mxu0 0.0
      %2929 = vmatpush1.msra.mxu0 0.0
      %2930 = vmatprep.subr.mxu0 0.0
      %2931 = vmatpush1.msra.mxu0 0.0
      %2932 = vmatprep.subr.mxu0 0.0
      %2933 = vmatpush1.msra.mxu0 0.0
      %2934 = vmatprep.subr.mxu0 0.0
      %2935 = vmatpush1.msra.mxu0 0.0
      %2936 = vmatprep.subr.mxu0 0.0
      %2937 = vmatpush1.msra.mxu0 0.0
      %2938 = vmatprep.subr.mxu0 0.0
      %2939 = vmatpush1.msra.mxu0 0.0
      %2940 = vmatprep.subr.mxu0 0.0
      %2941 = vmatpush1.msra.mxu0 0.0
      %2942 = vmatprep.subr.mxu0 0.0
      %2943 = vmatpush1.msra.mxu0 0.0
      %2944 = vmatprep.subr.mxu0 0.0
      %2945 = vmatpush1.msra.mxu0 0.0
      %2946 = vmatprep.subr.mxu0 0.0
      %2947 = vmatpush1.msra.mxu0 0.0
      %2948 = vmatprep.subr.mxu0 0.0
      %2949 = vmatpush1.msra.mxu0 0.0
      %2950 = vmatprep.subr.mxu0 0.0
      %2951 = vmatpush1.msra.mxu0 0.0
      %2952 = vmatprep.subr.mxu0 0.0
      %2953 = vmatpush1.msra.mxu0 0.0
      %2954 = vmatprep.subr.mxu0 0.0
      %2955 = vmatpush1.msra.mxu0 0.0
      %2956 = vmatprep.subr.mxu0 0.0
      %2957 = vmatpush1.msra.mxu0 0.0
      %2958 = vmatprep.subr.mxu0 0.0
      %2959 = vmatpush1.msra.mxu0 0.0
      %2960 = vmatprep.subr.mxu0 0.0
      %2961 = vmatpush1.msra.mxu0 0.0
      %2962 = vmatprep.subr.mxu0 0.0
      %2963 = vmatpush1.msra.mxu0 0.0
      %2964 = vmatprep.subr.mxu0 0.0
      %2965 = vmatpush1.msra.mxu0 0.0
      %2966 = vmatprep.subr.mxu0 0.0
      %2967 = vmatpush1.msra.mxu0 0.0
      %2968 = vmatprep.subr.mxu0 0.0
      %2969 = vmatpush1.msra.mxu0 0.0
      %2970 = vmatprep.subr.mxu0 0.0
      %2971 = vmatpush1.msra.mxu0 0.0
      %2972 = vmatprep.subr.mxu0 0.0
      %2973 = vmatpush1.msra.mxu0 0.0
      %2974 = vmatprep.subr.mxu0 0.0
      %2975 = vmatpush1.msra.mxu0 0.0
      %2976 = vmatprep.mubr.f32.mxu0 0.0
      %2977 = vmatmul.mubr.f32.gmra.mrb[0].mxu0 %v2910
      %v2978 = vpop.f32.mrb[0].mxu0
      %v2979 = vadd.f32 0.0, %v2978
      %v2980 = vpop.f32.mrb[0].mxu0
      %2981 = vdwg.mxu0
      %v2983 = vrot.slane %v2979, 7
      %2984 = vrot.lane.b32.xlu0 %v2983, 120
      %v2985 = vpop.permute.xlu0 %2984
      %v2987 = vsel %vm1245, 0.0, %v2985
      %v2988 = vadd.f32 %v2979, %v2987
      %v2989 = vadd.f32 %v2985, 0.0
      %v2990 = vmul.f32 %v2988, %v198
      %v2991 = vmul.f32 %v2989, %v199
      %2992 = vst.msk [vmem:[%s170] sm:$0xff] %vm2372, %v2990
      %vm2993 = vcmask 57344
      %2994 = vst.msk [vmem:[%s170 + $0x8] sm:$0x1] %vm2993, %v2991
      %p2995 = scmp.lt.s32.totalorder %s14, 1
      %s2996 = scalar_select %p2995, %s14, 1
      %s2997 = smul.addr %s2996, 2
      %s2998 = smul.addr %s2997, 8
      %s2999 = scalar_lea.vmem %s3, %s2998
      // Predicated region
      $region33: #{naec_with_fdaf_forward.1} parent=31 // pred_check
        %p3000 = pneg %p100
      $region34: #{naec_with_fdaf_forward.1} parent=31 // pred_check_branch
        %3002 = sbr.rel (%p3000) target = $region36
      $region35: #{naec_with_fdaf_forward.1} parent=31 // pred_region
        _
      $region36: #{naec_with_fdaf_forward.1} parent=31 // pred_fallthru
        _
    $region32: #{naec_with_fdaf_forward.1} parent=5 // pred_fallthru
      _
    %p3003 = scmp.le.s32.totalorder 2, %s9
    // Predicated region
    $region37: #{naec_with_fdaf_forward.1} parent=5 // pred_check
      %p3004 = pneg %p3003
    $region38: #{naec_with_fdaf_forward.1} parent=5 // pred_check_branch
      %3006 = sbr.rel (%p3004) target = $region40
    $region39: #{naec_with_fdaf_forward.1} parent=5 // pred_region
      %s3007 = ssub.s32 %s9, 2
      // Predicated region
      $region41: #{naec_with_fdaf_forward.1} parent=39 // pred_check
        %p3008 = pneg %p106
      $region42: #{naec_with_fdaf_forward.1} parent=39 // pred_check_branch
        %3010 = sbr.rel (%p3008) target = $region44
      $region43: #{naec_with_fdaf_forward.1} parent=39 // pred_region
        %p3011 = scmp.lt.s32.totalorder %s15, 1
        %s3012 = scalar_select %p3011, %s15, 1
        %s3013 = smul.addr %s3012, 2
        %s3014 = smul.addr %s3013, 8
        %s3015 = scalar_lea.vmem %s3, %s3014
      $region44: #{naec_with_fdaf_forward.1} parent=39 // pred_fallthru
        _
    $region40: #{naec_with_fdaf_forward.1} parent=5 // pred_fallthru
      _
  $region6: #{naec_with_fdaf_forward.1} parent=0 // loop_footer
    %s13 = sadd.s32 1, %s9
  $region7: #{naec_with_fdaf_forward.1} parent=0 // loop_footer_branch
    %8 = sbr.rel target = $region3
  $region8: #{naec_with_fdaf_forward.1} parent=0 // loop_exit
    _

</llo_original>
